<compile_context>
chip_gen: v5e
topology: v5e:2x2
jax: 0.10.0
libtpu: 0.0.40
codegen_flags: <defaults>
</compile_context>

<pallas_src>
import jax
import jax.numpy as jnp
from jax import lax
from jax.experimental import pallas as pl
from jax.experimental.pallas import tpu as pltpu


def _round_up(x, m):
    return ((x + m - 1) // m) * m


def _vmem_limit_bytes():
    # v5e/v6e have 128 MiB physical VMEM (scoped default 16/32 MiB), v7x 64 MiB.
    # Raise the scoped limit with headroom so big blocks don't force tiny tiles.
    try:
        cap = pltpu.get_tpu_info().vmem_capacity_bytes
        return int(min(96 * 2**20, max(32 * 2**20, cap - 16 * 2**20)))
    except Exception:
        return 48 * 2**20


# ----------------------------------------------------------------------------
# Pallas kernel: K*K per-tap MXU matmuls (bf16 in / f32 acc) + fused BatchNorm
# [+ residual] [+ ReLU], one output tile per (Cout-tile, batch-element).
# ----------------------------------------------------------------------------
def _make_conv_bn_kernel(*, K, S, Ho, Wo8, Cin, relu, add_res):
    taps = [(ky, kx) for ky in range(K) for kx in range(K)]
    m = Ho * Wo8

    def kernel(x_ref, w_ref, scale_ref, shift_ref, *rest):
        if add_res:
            res_ref, o_ref = rest
        else:
            (o_ref,) = rest
        tn = w_ref.shape[-1]
        acc = jnp.zeros((m, tn), jnp.float32)
        # x_ref: (S*S, Hs, Ws, Cin) phase-decomposed padded activation (bf16).
        # Each tap is an unstrided (Ho, Wo8, Cin) window of one phase; merging
        # (Ho, Wo8) is layout-preserving because Wo8 % 8 == 0.
        for t, (ky, kx) in enumerate(taps):
            phase = (ky % S) * S + (kx % S)
            dy, dx = ky // S, kx // S
            lhs = x_ref[phase, dy:dy + Ho, dx:dx + Wo8, :].reshape(m, Cin)
            acc = acc + jnp.dot(lhs, w_ref[t],
                                preferred_element_type=jnp.float32)
        # Fused BatchNorm (inference, folded): per-channel scale + shift in f32.
        y = acc * scale_ref[...] + shift_ref[...]
        if add_res:
            y = y + res_ref[...].astype(jnp.float32)
        if relu:
            y = jnp.maximum(y, 0.0)
        o_ref[...] = y.astype(o_ref.dtype)

    return kernel


def conv_bn_act(x_nhwc, w_hwio, bn_scale, bn_shift, *, stride, relu,
                residual=None, compute_dtype=jnp.bfloat16):
    """KxK conv (no bias, PyTorch padding K//2, stride S) + BN(inference)
    [+ residual] [+ ReLU].  All FLOPs run on the MXU inside the Pallas kernel;
    the wrapper only does one cheap padding / stride-phase pass (1x activation
    bytes, no im2col duplication)."""
    N, H, W, Cin = x_nhwc.shape
    K = w_hwio.shape[0]
    Cout = w_hwio.shape[-1]
    S = stride
    pad = (K - 1) // 2
    Ho = (H + 2 * pad - K) // S + 1
    Wo = (W + 2 * pad - K) // S + 1
    Wo8 = _round_up(Wo, 8)             # lane/sublane-dense output rows
    Mtile = Ho * Wo8
    Cp = _round_up(Cout, 128)
    TN = 256 if Cp % 256 == 0 else 128

    # --- activation prep: conv zero-padding + stride-phase decomposition -----
    # xph[n*S*S + py*S + px, i, j, c] == xpad[n, i*S + py, j*S + px, c]
    Hs = Ho + (K - 1) // S
    Ws = Wo8 + (K - 1) // S
    xp = jnp.pad(x_nhwc.astype(compute_dtype),
                 ((0, 0), (pad, pad), (pad, pad), (0, 0)))
    Hp, Wp = xp.shape[1], xp.shape[2]
    xp = jnp.pad(xp, ((0, 0), (0, max(0, S * Hs - Hp)),
                      (0, max(0, S * Ws - Wp)), (0, 0)))
    xp = xp[:, :S * Hs, :S * Ws, :]
    xph = xp.reshape(N, Hs, S, Ws, S, Cin).transpose(0, 2, 4, 1, 3, 5)
    xph = xph.reshape(N * S * S, Hs, Ws, Cin)

    # --- weights / BN params --------------------------------------------------
    wk = w_hwio.astype(compute_dtype).reshape(K * K, Cin, Cout)
    wk = jnp.pad(wk, ((0, 0), (0, 0), (0, Cp - Cout)))
    scale2 = jnp.pad(bn_scale.reshape(1, Cout).astype(jnp.float32),
                     ((0, 0), (0, Cp - Cout)))
    shift2 = jnp.pad(bn_shift.reshape(1, Cout).astype(jnp.float32),
                     ((0, 0), (0, Cp - Cout)))

    in_specs = [
        # whole phase-decomposed image of one batch element (re-read per Cout tile)
        pl.BlockSpec((S * S, Hs, Ws, Cin), lambda j, n: (n, 0, 0, 0)),
        # weights / BN: index depends only on j (outer axis) -> fetched once
        pl.BlockSpec((K * K, Cin, TN), lambda j, n: (0, 0, j)),
        pl.BlockSpec((1, TN), lambda j, n: (0, j)),
        pl.BlockSpec((1, TN), lambda j, n: (0, j)),
    ]
    args = [xph, wk, scale2, shift2]

    add_res = residual is not None
    if add_res:
        assert residual.shape == (N, Ho, Wo, Cout), residual.shape
        # Residual stays in the network dtype (f32 here); add happens in f32 in
        # the kernel.  (Carrying it in bf16 would halve its DMA bytes.)
        res2 = jnp.pad(residual, ((0, 0), (0, 0), (0, Wo8 - Wo),
                                  (0, Cp - Cout))).reshape(N, Mtile, Cp)
        in_specs.append(pl.BlockSpec((None, Mtile, TN), lambda j, n: (n, 0, j)))
        args.append(res2)

    out = pl.pallas_call(
        _make_conv_bn_kernel(K=K, S=S, Ho=Ho, Wo8=Wo8, Cin=Cin,
                             relu=relu, add_res=add_res),
        out_shape=jax.ShapeDtypeStruct((N, Mtile, Cp), x_nhwc.dtype),
        grid=(Cp // TN, N),   # Cout tiles outermost, batch innermost
        in_specs=in_specs,
        out_specs=pl.BlockSpec((None, Mtile, TN), lambda j, n: (n, 0, j)),
        compiler_params=pltpu.CompilerParams(
            dimension_semantics=("parallel", "parallel"),
            vmem_limit_bytes=_vmem_limit_bytes()),
    )(*args)
    return out.reshape(N, Ho, Wo8, Cp)[:, :, :Wo, :Cout]


# ----------------------------------------------------------------------------
# ResBlock forward (NCHW in / NCHW out, like the PyTorch module)
# ----------------------------------------------------------------------------
def resblock_forward(x_nchw, p, stride, change_channels):
    x = jnp.transpose(x_nchw, (0, 2, 3, 1))                       # NCHW -> NHWC
    y1 = conv_bn_act(x, p["w1"], p["s1"], p["b1"], stride=stride, relu=True)
    if change_channels:
        res = conv_bn_act(x, p["wr"], p["sr"], p["br"], stride=stride,
                          relu=False)
    else:
        assert stride == 1 and x.shape[-1] == p["w2"].shape[-1], (
            "identity shortcut requires stride == 1 and matching channels")
        res = x
    y = conv_bn_act(y1, p["w2"], p["s2"], p["b2"], stride=1, relu=True,
                    residual=res)
    return jnp.transpose(y, (0, 3, 1, 2))                          # NHWC -> NCHW


resblock_jit = jax.jit(resblock_forward, static_argnums=(2, 3))


# ----------------------------------------------------------------------------
# Parameter construction (deterministic, in-script)
# ----------------------------------------------------------------------------
def _fold_bn(gamma, beta, mean, var, eps=1e-5):
    scale = gamma / jnp.sqrt(var + eps)
    shift = beta - mean * scale
    return scale, shift


def make_params(key, IN, OUT, change_channels):
    ks = jax.random.split(key, 9)

    def conv_w(k, kh, cin, cout):
        fan_in = kh * kh * cin
        return jax.random.normal(k, (kh, kh, cin, cout),
                                 jnp.float32) * (2.0 / fan_in) ** 0.5

    def bn(kg, kb, c):
        gamma = 1.0 + 0.1 * jax.random.normal(kg, (c,), jnp.float32)
        beta = 0.1 * jax.random.normal(kb, (c,), jnp.float32)
        mean = jnp.zeros((c,), jnp.float32)
        var = jnp.ones((c,), jnp.float32)
        return _fold_bn(gamma, beta, mean, var)

    p = {}
    p["w1"] = conv_w(ks[0], 3, IN, OUT)
    p["s1"], p["b1"] = bn(ks[1], ks[2], OUT)
    p["w2"] = conv_w(ks[3], 3, OUT, OUT)
    p["s2"], p["b2"] = bn(ks[4], ks[5], OUT)
    if change_channels:
        p["wr"] = conv_w(ks[6], 1, IN, OUT)
        p["sr"], p["br"] = bn(ks[7], ks[8], OUT)
    return p


# ----------------------------------------------------------------------------
# Pure-JAX reference (same bf16-operand / f32-accumulate numerics)
# ----------------------------------------------------------------------------
def _ref_conv(x, w, stride, pad):
    return lax.conv_general_dilated(
        x.astype(jnp.bfloat16), w.astype(jnp.bfloat16),
        (stride, stride), [(pad, pad), (pad, pad)],
        dimension_numbers=("NHWC", "HWIO", "NHWC"),
        preferred_element_type=jnp.float32)


def resblock_reference(x_nchw, p, stride, change_channels):
    x = jnp.transpose(x_nchw, (0, 2, 3, 1))
    y = _ref_conv(x, p["w1"], stride, 1) * p["s1"] + p["b1"]
    y = jnp.maximum(y, 0.0)
    y = _ref_conv(y, p["w2"], 1, 1) * p["s2"] + p["b2"]
    if change_channels:
        res = _ref_conv(x, p["wr"], stride, 0) * p["sr"] + p["br"]
    else:
        res = x
    y = jnp.maximum(y + res, 0.0)
    return jnp.transpose(y, (0, 3, 1, 2))


# ----------------------------------------------------------------------------
if __name__ == "__main__":
    key = jax.random.PRNGKey(0)
    k_x1, k_p1, k_x2, k_p2 = jax.random.split(key, 4)

    # Config 1: downsampling block with channel change (change_channels=True)
    N, IN, OUT, H, W, S = 2, 4, 8, 16, 16, 2
    x1 = jax.random.normal(k_x1, (N, IN, H, W), jnp.float32)
    p1 = make_params(k_p1, IN, OUT, change_channels=True)
    out1 = resblock_jit(x1, p1, S, True)
    jax.block_until_ready(out1)
    ref1 = resblock_reference(x1, p1, S, change_channels=True)
    assert out1.shape == (N, OUT, H // S, W // S), out1.shape
    assert jnp.allclose(out1, ref1, atol=5e-3, rtol=5e-3), (
        float(jnp.max(jnp.abs(out1 - ref1))))

    # Config 2: identity-shortcut block (change_channels=False, IN==OUT, S=1)
    N2, C2, H2 = 2, 8, 8
    x2 = jax.random.normal(k_x2, (N2, C2, H2, H2), jnp.float32)
    p2 = make_params(k_p2, C2, C2, change_channels=False)
    out2 = resblock_jit(x2, p2, 1, False)
    jax.block_until_ready(out2)
    ref2 = resblock_reference(x2, p2, 1, change_channels=False)
    assert out2.shape == (N2, C2, H2, H2), out2.shape
    assert jnp.allclose(out2, ref2, atol=5e-3, rtol=5e-3), (
        float(jnp.max(jnp.abs(out2 - ref2))))

    print("KERNEL_OK")
</pallas_src>

<mosaic_0001>
module attributes {stable_mosaic.version = 11 : i64} {
  func.func @kernel(%arg0: i32, %arg1: i32, %arg2: memref<4x9x9x4xbf16, #tpu.memory_space<vmem>>, %arg3: memref<9x4x128xbf16, #tpu.memory_space<vmem>>, %arg4: memref<1x128xf32, #tpu.memory_space<vmem>>, %arg5: memref<1x128xf32, #tpu.memory_space<vmem>>, %arg6: memref<1x64x128xf32, #tpu.memory_space<vmem>>) attributes {dimension_semantics = [#tpu.dimension_semantics<parallel>, #tpu.dimension_semantics<parallel>], iteration_bounds = array<i64: 1, 2>, scalar_prefetch = 0 : i64, scratch_operands = 0 : i64, tpu.core_type = #tpu.core_type<tc>, window_params = [{transform_indices = @transform_0, window_bounds = array<i64: 4, 9, 9, 4>}, {transform_indices = @transform_1, window_bounds = array<i64: 9, 4, 128>}, {transform_indices = @transform_2, window_bounds = array<i64: 1, 128>}, {transform_indices = @transform_3, window_bounds = array<i64: 1, 128>}, {transform_indices = @transform_4, window_bounds = array<i64: 1, 64, 128>}]} {
    %cst = arith.constant 0.000000e+00 : f32
    %0 = vector.broadcast %cst : f32 to vector<64x128xf32>
    %c0 = arith.constant 0 : index
    %c0_0 = arith.constant 0 : index
    %c0_1 = arith.constant 0 : index
    %c0_2 = arith.constant 0 : index
    %1 = vector.load %arg2[%c0, %c0_0, %c0_1, %c0_2] : memref<4x9x9x4xbf16, #tpu.memory_space<vmem>>, vector<1x8x8x4xbf16>
    %2 = vector.shape_cast %1 : vector<1x8x8x4xbf16> to vector<8x8x4xbf16>
    %3 = vector.shape_cast %2 : vector<8x8x4xbf16> to vector<64x4xbf16>
    %c0_3 = arith.constant 0 : index
    %c0_4 = arith.constant 0 : index
    %c0_5 = arith.constant 0 : index
    %4 = vector.load %arg3[%c0_3, %c0_4, %c0_5] : memref<9x4x128xbf16, #tpu.memory_space<vmem>>, vector<1x4x128xbf16>
    %5 = vector.shape_cast %4 : vector<1x4x128xbf16> to vector<4x128xbf16>
    %cst_6 = arith.constant dense<0.000000e+00> : vector<64x128xf32>
    %6 = tpu.matmul %3, %5, %cst_6 {dimension_numbers = #tpu.dot_dimension_numbers<[1], [0], [0], [1], [0, 0, 1, 1], [], []>} : vector<64x4xbf16>, vector<4x128xbf16>, vector<64x128xf32> -> vector<64x128xf32>
    %7 = arith.addf %0, %6 : vector<64x128xf32>
    %c1 = arith.constant 1 : index
    %c0_7 = arith.constant 0 : index
    %c0_8 = arith.constant 0 : index
    %c0_9 = arith.constant 0 : index
    %8 = vector.load %arg2[%c1, %c0_7, %c0_8, %c0_9] : memref<4x9x9x4xbf16, #tpu.memory_space<vmem>>, vector<1x8x8x4xbf16>
    %9 = vector.shape_cast %8 : vector<1x8x8x4xbf16> to vector<8x8x4xbf16>
    %10 = vector.shape_cast %9 : vector<8x8x4xbf16> to vector<64x4xbf16>
    %c1_10 = arith.constant 1 : index
    %c0_11 = arith.constant 0 : index
    %c0_12 = arith.constant 0 : index
    %11 = vector.load %arg3[%c1_10, %c0_11, %c0_12] : memref<9x4x128xbf16, #tpu.memory_space<vmem>>, vector<1x4x128xbf16>
    %12 = vector.shape_cast %11 : vector<1x4x128xbf16> to vector<4x128xbf16>
    %cst_13 = arith.constant dense<0.000000e+00> : vector<64x128xf32>
    %13 = tpu.matmul %10, %12, %cst_13 {dimension_numbers = #tpu.dot_dimension_numbers<[1], [0], [0], [1], [0, 0, 1, 1], [], []>} : vector<64x4xbf16>, vector<4x128xbf16>, vector<64x128xf32> -> vector<64x128xf32>
    %14 = arith.addf %7, %13 : vector<64x128xf32>
    %c0_14 = arith.constant 0 : index
    %c0_15 = arith.constant 0 : index
    %c1_16 = arith.constant 1 : index
    %c0_17 = arith.constant 0 : index
    %15 = vector.load %arg2[%c0_14, %c0_15, %c1_16, %c0_17] : memref<4x9x9x4xbf16, #tpu.memory_space<vmem>>, vector<1x8x8x4xbf16>
    %16 = vector.shape_cast %15 : vector<1x8x8x4xbf16> to vector<8x8x4xbf16>
    %17 = vector.shape_cast %16 : vector<8x8x4xbf16> to vector<64x4xbf16>
    %c2 = arith.constant 2 : index
    %c0_18 = arith.constant 0 : index
    %c0_19 = arith.constant 0 : index
    %18 = vector.load %arg3[%c2, %c0_18, %c0_19] : memref<9x4x128xbf16, #tpu.memory_space<vmem>>, vector<1x4x128xbf16>
    %19 = vector.shape_cast %18 : vector<1x4x128xbf16> to vector<4x128xbf16>
    %cst_20 = arith.constant dense<0.000000e+00> : vector<64x128xf32>
    %20 = tpu.matmul %17, %19, %cst_20 {dimension_numbers = #tpu.dot_dimension_numbers<[1], [0], [0], [1], [0, 0, 1, 1], [], []>} : vector<64x4xbf16>, vector<4x128xbf16>, vector<64x128xf32> -> vector<64x128xf32>
    %21 = arith.addf %14, %20 : vector<64x128xf32>
    %c2_21 = arith.constant 2 : index
    %c0_22 = arith.constant 0 : index
    %c0_23 = arith.constant 0 : index
    %c0_24 = arith.constant 0 : index
    %22 = vector.load %arg2[%c2_21, %c0_22, %c0_23, %c0_24] : memref<4x9x9x4xbf16, #tpu.memory_space<vmem>>, vector<1x8x8x4xbf16>
    %23 = vector.shape_cast %22 : vector<1x8x8x4xbf16> to vector<8x8x4xbf16>
    %24 = vector.shape_cast %23 : vector<8x8x4xbf16> to vector<64x4xbf16>
    %c3 = arith.constant 3 : index
    %c0_25 = arith.constant 0 : index
    %c0_26 = arith.constant 0 : index
    %25 = vector.load %arg3[%c3, %c0_25, %c0_26] : memref<9x4x128xbf16, #tpu.memory_space<vmem>>, vector<1x4x128xbf16>
    %26 = vector.shape_cast %25 : vector<1x4x128xbf16> to vector<4x128xbf16>
    %cst_27 = arith.constant dense<0.000000e+00> : vector<64x128xf32>
    %27 = tpu.matmul %24, %26, %cst_27 {dimension_numbers = #tpu.dot_dimension_numbers<[1], [0], [0], [1], [0, 0, 1, 1], [], []>} : vector<64x4xbf16>, vector<4x128xbf16>, vector<64x128xf32> -> vector<64x128xf32>
    %28 = arith.addf %21, %27 : vector<64x128xf32>
    %c3_28 = arith.constant 3 : index
    %c0_29 = arith.constant 0 : index
    %c0_30 = arith.constant 0 : index
    %c0_31 = arith.constant 0 : index
    %29 = vector.load %arg2[%c3_28, %c0_29, %c0_30, %c0_31] : memref<4x9x9x4xbf16, #tpu.memory_space<vmem>>, vector<1x8x8x4xbf16>
    %30 = vector.shape_cast %29 : vector<1x8x8x4xbf16> to vector<8x8x4xbf16>
    %31 = vector.shape_cast %30 : vector<8x8x4xbf16> to vector<64x4xbf16>
    %c4 = arith.constant 4 : index
    %c0_32 = arith.constant 0 : index
    %c0_33 = arith.constant 0 : index
    %32 = vector.load %arg3[%c4, %c0_32, %c0_33] : memref<9x4x128xbf16, #tpu.memory_space<vmem>>, vector<1x4x128xbf16>
    %33 = vector.shape_cast %32 : vector<1x4x128xbf16> to vector<4x128xbf16>
    %cst_34 = arith.constant dense<0.000000e+00> : vector<64x128xf32>
    %34 = tpu.matmul %31, %33, %cst_34 {dimension_numbers = #tpu.dot_dimension_numbers<[1], [0], [0], [1], [0, 0, 1, 1], [], []>} : vector<64x4xbf16>, vector<4x128xbf16>, vector<64x128xf32> -> vector<64x128xf32>
    %35 = arith.addf %28, %34 : vector<64x128xf32>
    %c2_35 = arith.constant 2 : index
    %c0_36 = arith.constant 0 : index
    %c1_37 = arith.constant 1 : index
    %c0_38 = arith.constant 0 : index
    %36 = vector.load %arg2[%c2_35, %c0_36, %c1_37, %c0_38] : memref<4x9x9x4xbf16, #tpu.memory_space<vmem>>, vector<1x8x8x4xbf16>
    %37 = vector.shape_cast %36 : vector<1x8x8x4xbf16> to vector<8x8x4xbf16>
    %38 = vector.shape_cast %37 : vector<8x8x4xbf16> to vector<64x4xbf16>
    %c5 = arith.constant 5 : index
    %c0_39 = arith.constant 0 : index
    %c0_40 = arith.constant 0 : index
    %39 = vector.load %arg3[%c5, %c0_39, %c0_40] : memref<9x4x128xbf16, #tpu.memory_space<vmem>>, vector<1x4x128xbf16>
    %40 = vector.shape_cast %39 : vector<1x4x128xbf16> to vector<4x128xbf16>
    %cst_41 = arith.constant dense<0.000000e+00> : vector<64x128xf32>
    %41 = tpu.matmul %38, %40, %cst_41 {dimension_numbers = #tpu.dot_dimension_numbers<[1], [0], [0], [1], [0, 0, 1, 1], [], []>} : vector<64x4xbf16>, vector<4x128xbf16>, vector<64x128xf32> -> vector<64x128xf32>
    %42 = arith.addf %35, %41 : vector<64x128xf32>
    %c0_42 = arith.constant 0 : index
    %c1_43 = arith.constant 1 : index
    %c0_44 = arith.constant 0 : index
    %c0_45 = arith.constant 0 : index
    %43 = vector.load %arg2[%c0_42, %c1_43, %c0_44, %c0_45] : memref<4x9x9x4xbf16, #tpu.memory_space<vmem>>, vector<1x8x8x4xbf16>
    %44 = vector.shape_cast %43 : vector<1x8x8x4xbf16> to vector<8x8x4xbf16>
    %45 = vector.shape_cast %44 : vector<8x8x4xbf16> to vector<64x4xbf16>
    %c6 = arith.constant 6 : index
    %c0_46 = arith.constant 0 : index
    %c0_47 = arith.constant 0 : index
    %46 = vector.load %arg3[%c6, %c0_46, %c0_47] : memref<9x4x128xbf16, #tpu.memory_space<vmem>>, vector<1x4x128xbf16>
    %47 = vector.shape_cast %46 : vector<1x4x128xbf16> to vector<4x128xbf16>
    %cst_48 = arith.constant dense<0.000000e+00> : vector<64x128xf32>
    %48 = tpu.matmul %45, %47, %cst_48 {dimension_numbers = #tpu.dot_dimension_numbers<[1], [0], [0], [1], [0, 0, 1, 1], [], []>} : vector<64x4xbf16>, vector<4x128xbf16>, vector<64x128xf32> -> vector<64x128xf32>
    %49 = arith.addf %42, %48 : vector<64x128xf32>
    %c1_49 = arith.constant 1 : index
    %c1_50 = arith.constant 1 : index
    %c0_51 = arith.constant 0 : index
    %c0_52 = arith.constant 0 : index
    %50 = vector.load %arg2[%c1_49, %c1_50, %c0_51, %c0_52] : memref<4x9x9x4xbf16, #tpu.memory_space<vmem>>, vector<1x8x8x4xbf16>
    %51 = vector.shape_cast %50 : vector<1x8x8x4xbf16> to vector<8x8x4xbf16>
    %52 = vector.shape_cast %51 : vector<8x8x4xbf16> to vector<64x4xbf16>
    %c7 = arith.constant 7 : index
    %c0_53 = arith.constant 0 : index
    %c0_54 = arith.constant 0 : index
    %53 = vector.load %arg3[%c7, %c0_53, %c0_54] : memref<9x4x128xbf16, #tpu.memory_space<vmem>>, vector<1x4x128xbf16>
    %54 = vector.shape_cast %53 : vector<1x4x128xbf16> to vector<4x128xbf16>
    %cst_55 = arith.constant dense<0.000000e+00> : vector<64x128xf32>
    %55 = tpu.matmul %52, %54, %cst_55 {dimension_numbers = #tpu.dot_dimension_numbers<[1], [0], [0], [1], [0, 0, 1, 1], [], []>} : vector<64x4xbf16>, vector<4x128xbf16>, vector<64x128xf32> -> vector<64x128xf32>
    %56 = arith.addf %49, %55 : vector<64x128xf32>
    %c0_56 = arith.constant 0 : index
    %c1_57 = arith.constant 1 : index
    %c1_58 = arith.constant 1 : index
    %c0_59 = arith.constant 0 : index
    %57 = vector.load %arg2[%c0_56, %c1_57, %c1_58, %c0_59] : memref<4x9x9x4xbf16, #tpu.memory_space<vmem>>, vector<1x8x8x4xbf16>
    %58 = vector.shape_cast %57 : vector<1x8x8x4xbf16> to vector<8x8x4xbf16>
    %59 = vector.shape_cast %58 : vector<8x8x4xbf16> to vector<64x4xbf16>
    %c8 = arith.constant 8 : index
    %c0_60 = arith.constant 0 : index
    %c0_61 = arith.constant 0 : index
    %60 = vector.load %arg3[%c8, %c0_60, %c0_61] : memref<9x4x128xbf16, #tpu.memory_space<vmem>>, vector<1x4x128xbf16>
    %61 = vector.shape_cast %60 : vector<1x4x128xbf16> to vector<4x128xbf16>
    %cst_62 = arith.constant dense<0.000000e+00> : vector<64x128xf32>
    %62 = tpu.matmul %59, %61, %cst_62 {dimension_numbers = #tpu.dot_dimension_numbers<[1], [0], [0], [1], [0, 0, 1, 1], [], []>} : vector<64x4xbf16>, vector<4x128xbf16>, vector<64x128xf32> -> vector<64x128xf32>
    %63 = arith.addf %56, %62 : vector<64x128xf32>
    %c0_63 = arith.constant 0 : index
    %c0_64 = arith.constant 0 : index
    %64 = vector.load %arg4[%c0_63, %c0_64] : memref<1x128xf32, #tpu.memory_space<vmem>>, vector<1x128xf32>
    %65 = vector.broadcast %64 : vector<1x128xf32> to vector<64x128xf32>
    %66 = arith.mulf %63, %65 : vector<64x128xf32>
    %c0_65 = arith.constant 0 : index
    %c0_66 = arith.constant 0 : index
    %67 = vector.load %arg5[%c0_65, %c0_66] : memref<1x128xf32, #tpu.memory_space<vmem>>, vector<1x128xf32>
    %68 = vector.broadcast %67 : vector<1x128xf32> to vector<64x128xf32>
    %69 = arith.addf %66, %68 : vector<64x128xf32>
    %cst_67 = arith.constant 0.000000e+00 : f32
    %70 = vector.broadcast %cst_67 : f32 to vector<64x128xf32>
    %71 = arith.maximumf %69, %70 : vector<64x128xf32>
    %c0_68 = arith.constant 0 : index
    %c0_69 = arith.constant 0 : index
    %c0_70 = arith.constant 0 : index
    %72 = vector.load %arg6[%c0_68, %c0_69, %c0_70] : memref<1x64x128xf32, #tpu.memory_space<vmem>>, vector<1x64x128xf32>
    %73 = vector.shape_cast %72 : vector<1x64x128xf32> to vector<64x128xf32>
    %74 = vector.shape_cast %71 : vector<64x128xf32> to vector<1x64x128xf32>
    tpu.vector_store %arg6[%c0_68, %c0_69, %c0_70], %74 {strides = array<i32>} : memref<1x64x128xf32, #tpu.memory_space<vmem>>, vector<1x64x128xf32>,
    return
  }
  func.func @transform_0(%arg0: i32, %arg1: i32) -> (i32, i32, i32, i32) {
    %c0_i32 = arith.constant 0 : i32
    %c0_i32_0 = arith.constant 0 : i32
    %c0_i32_1 = arith.constant 0 : i32
    %c0_i32_2 = arith.constant 0 : i32
    return %arg1, %c0_i32, %c0_i32_0, %c0_i32_1 : i32, i32, i32, i32
  }
  func.func @transform_1(%arg0: i32, %arg1: i32) -> (i32, i32, i32) {
    %c0_i32 = arith.constant 0 : i32
    %c0_i32_0 = arith.constant 0 : i32
    %c0_i32_1 = arith.constant 0 : i32
    return %c0_i32, %c0_i32_0, %arg0 : i32, i32, i32
  }
  func.func @transform_2(%arg0: i32, %arg1: i32) -> (i32, i32) {
    %c0_i32 = arith.constant 0 : i32
    %c0_i32_0 = arith.constant 0 : i32
    return %c0_i32, %arg0 : i32, i32
  }
  func.func @transform_3(%arg0: i32, %arg1: i32) -> (i32, i32) {
    %c0_i32 = arith.constant 0 : i32
    %c0_i32_0 = arith.constant 0 : i32
    return %c0_i32, %arg0 : i32, i32
  }
  func.func @transform_4(%arg0: i32, %arg1: i32) -> (i32, i32, i32) {
    %c0_i32 = arith.constant 0 : i32
    %c0_i32_0 = arith.constant 0 : i32
    return %arg1, %c0_i32, %arg0 : i32, i32, i32
  }
}

module attributes {stable_mosaic.version = 11 : i64} {
  func.func @kernel(%arg0: i32, %arg1: i32, %arg2: memref<4x8x8x4xbf16, #tpu.memory_space<vmem>>, %arg3: memref<1x4x128xbf16, #tpu.memory_space<vmem>>, %arg4: memref<1x128xf32, #tpu.memory_space<vmem>>, %arg5: memref<1x128xf32, #tpu.memory_space<vmem>>, %arg6: memref<1x64x128xf32, #tpu.memory_space<vmem>>) attributes {dimension_semantics = [#tpu.dimension_semantics<parallel>, #tpu.dimension_semantics<parallel>], iteration_bounds = array<i64: 1, 2>, scalar_prefetch = 0 : i64, scratch_operands = 0 : i64, tpu.core_type = #tpu.core_type<tc>, window_params = [{transform_indices = @transform_0, window_bounds = array<i64: 4, 8, 8, 4>}, {transform_indices = @transform_1, window_bounds = array<i64: 1, 4, 128>}, {transform_indices = @transform_2, window_bounds = array<i64: 1, 128>}, {transform_indices = @transform_3, window_bounds = array<i64: 1, 128>}, {transform_indices = @transform_4, window_bounds = array<i64: 1, 64, 128>}]} {
    %cst = arith.constant 0.000000e+00 : f32
    %0 = vector.broadcast %cst : f32 to vector<64x128xf32>
    %c0 = arith.constant 0 : index
    %c0_0 = arith.constant 0 : index
    %c0_1 = arith.constant 0 : index
    %c0_2 = arith.constant 0 : index
    %1 = vector.load %arg2[%c0, %c0_0, %c0_1, %c0_2] : memref<4x8x8x4xbf16, #tpu.memory_space<vmem>>, vector<1x8x8x4xbf16>
    %2 = vector.shape_cast %1 : vector<1x8x8x4xbf16> to vector<8x8x4xbf16>
    %3 = vector.shape_cast %2 : vector<8x8x4xbf16> to vector<64x4xbf16>
    %c0_3 = arith.constant 0 : index
    %c0_4 = arith.constant 0 : index
    %c0_5 = arith.constant 0 : index
    %4 = vector.load %arg3[%c0_3, %c0_4, %c0_5] : memref<1x4x128xbf16, #tpu.memory_space<vmem>>, vector<1x4x128xbf16>
    %5 = vector.shape_cast %4 : vector<1x4x128xbf16> to vector<4x128xbf16>
    %cst_6 = arith.constant dense<0.000000e+00> : vector<64x128xf32>
    %6 = tpu.matmul %3, %5, %cst_6 {dimension_numbers = #tpu.dot_dimension_numbers<[1], [0], [0], [1], [0, 0, 1, 1], [], []>} : vector<64x4xbf16>, vector<4x128xbf16>, vector<64x128xf32> -> vector<64x128xf32>
    %7 = arith.addf %0, %6 : vector<64x128xf32>
    %c0_7 = arith.constant 0 : index
    %c0_8 = arith.constant 0 : index
    %8 = vector.load %arg4[%c0_7, %c0_8] : memref<1x128xf32, #tpu.memory_space<vmem>>, vector<1x128xf32>
    %9 = vector.broadcast %8 : vector<1x128xf32> to vector<64x128xf32>
    %10 = arith.mulf %7, %9 : vector<64x128xf32>
    %c0_9 = arith.constant 0 : index
    %c0_10 = arith.constant 0 : index
    %11 = vector.load %arg5[%c0_9, %c0_10] : memref<1x128xf32, #tpu.memory_space<vmem>>, vector<1x128xf32>
    %12 = vector.broadcast %11 : vector<1x128xf32> to vector<64x128xf32>
    %13 = arith.addf %10, %12 : vector<64x128xf32>
    %c0_11 = arith.constant 0 : index
    %c0_12 = arith.constant 0 : index
    %c0_13 = arith.constant 0 : index
    %14 = vector.load %arg6[%c0_11, %c0_12, %c0_13] : memref<1x64x128xf32, #tpu.memory_space<vmem>>, vector<1x64x128xf32>
    %15 = vector.shape_cast %14 : vector<1x64x128xf32> to vector<64x128xf32>
    %16 = vector.shape_cast %13 : vector<64x128xf32> to vector<1x64x128xf32>
    tpu.vector_store %arg6[%c0_11, %c0_12, %c0_13], %16 {strides = array<i32>} : memref<1x64x128xf32, #tpu.memory_space<vmem>>, vector<1x64x128xf32>,
    return
  }
  func.func @transform_0(%arg0: i32, %arg1: i32) -> (i32, i32, i32, i32) {
    %c0_i32 = arith.constant 0 : i32
    %c0_i32_0 = arith.constant 0 : i32
    %c0_i32_1 = arith.constant 0 : i32
    %c0_i32_2 = arith.constant 0 : i32
    return %arg1, %c0_i32, %c0_i32_0, %c0_i32_1 : i32, i32, i32, i32
  }
  func.func @transform_1(%arg0: i32, %arg1: i32) -> (i32, i32, i32) {
    %c0_i32 = arith.constant 0 : i32
    %c0_i32_0 = arith.constant 0 : i32
    %c0_i32_1 = arith.constant 0 : i32
    return %c0_i32, %c0_i32_0, %arg0 : i32, i32, i32
  }
  func.func @transform_2(%arg0: i32, %arg1: i32) -> (i32, i32) {
    %c0_i32 = arith.constant 0 : i32
    %c0_i32_0 = arith.constant 0 : i32
    return %c0_i32, %arg0 : i32, i32
  }
  func.func @transform_3(%arg0: i32, %arg1: i32) -> (i32, i32) {
    %c0_i32 = arith.constant 0 : i32
    %c0_i32_0 = arith.constant 0 : i32
    return %c0_i32, %arg0 : i32, i32
  }
  func.func @transform_4(%arg0: i32, %arg1: i32) -> (i32, i32, i32) {
    %c0_i32 = arith.constant 0 : i32
    %c0_i32_0 = arith.constant 0 : i32
    return %arg1, %c0_i32, %arg0 : i32, i32, i32
  }
}

module attributes {stable_mosaic.version = 11 : i64} {
  func.func @kernel(%arg0: i32, %arg1: i32, %arg2: memref<1x10x10x8xbf16, #tpu.memory_space<vmem>>, %arg3: memref<9x8x128xbf16, #tpu.memory_space<vmem>>, %arg4: memref<1x128xf32, #tpu.memory_space<vmem>>, %arg5: memref<1x128xf32, #tpu.memory_space<vmem>>, %arg6: memref<1x64x128xf32, #tpu.memory_space<vmem>>, %arg7: memref<1x64x128xf32, #tpu.memory_space<vmem>>) attributes {dimension_semantics = [#tpu.dimension_semantics<parallel>, #tpu.dimension_semantics<parallel>], iteration_bounds = array<i64: 1, 2>, scalar_prefetch = 0 : i64, scratch_operands = 0 : i64, tpu.core_type = #tpu.core_type<tc>, window_params = [{transform_indices = @transform_0, window_bounds = array<i64: 1, 10, 10, 8>}, {transform_indices = @transform_1, window_bounds = array<i64: 9, 8, 128>}, {transform_indices = @transform_2, window_bounds = array<i64: 1, 128>}, {transform_indices = @transform_3, window_bounds = array<i64: 1, 128>}, {transform_indices = @transform_4, window_bounds = array<i64: 1, 64, 128>}, {transform_indices = @transform_5, window_bounds = array<i64: 1, 64, 128>}]} {
    %cst = arith.constant 0.000000e+00 : f32
    %0 = vector.broadcast %cst : f32 to vector<64x128xf32>
    %c0 = arith.constant 0 : index
    %c0_0 = arith.constant 0 : index
    %c0_1 = arith.constant 0 : index
    %c0_2 = arith.constant 0 : index
    %1 = vector.load %arg2[%c0, %c0_0, %c0_1, %c0_2] : memref<1x10x10x8xbf16, #tpu.memory_space<vmem>>, vector<1x8x8x8xbf16>
    %2 = vector.shape_cast %1 : vector<1x8x8x8xbf16> to vector<8x8x8xbf16>
    %3 = vector.shape_cast %2 : vector<8x8x8xbf16> to vector<64x8xbf16>
    %c0_3 = arith.constant 0 : index
    %c0_4 = arith.constant 0 : index
    %c0_5 = arith.constant 0 : index
    %4 = vector.load %arg3[%c0_3, %c0_4, %c0_5] : memref<9x8x128xbf16, #tpu.memory_space<vmem>>, vector<1x8x128xbf16>
    %5 = vector.shape_cast %4 : vector<1x8x128xbf16> to vector<8x128xbf16>
    %cst_6 = arith.constant dense<0.000000e+00> : vector<64x128xf32>
    %6 = tpu.matmul %3, %5, %cst_6 {dimension_numbers = #tpu.dot_dimension_numbers<[1], [0], [0], [1], [0, 0, 1, 1], [], []>} : vector<64x8xbf16>, vector<8x128xbf16>, vector<64x128xf32> -> vector<64x128xf32>
    %7 = arith.addf %0, %6 : vector<64x128xf32>
    %c0_7 = arith.constant 0 : index
    %c0_8 = arith.constant 0 : index
    %c1 = arith.constant 1 : index
    %c0_9 = arith.constant 0 : index
    %8 = vector.load %arg2[%c0_7, %c0_8, %c1, %c0_9] : memref<1x10x10x8xbf16, #tpu.memory_space<vmem>>, vector<1x8x8x8xbf16>
    %9 = vector.shape_cast %8 : vector<1x8x8x8xbf16> to vector<8x8x8xbf16>
    %10 = vector.shape_cast %9 : vector<8x8x8xbf16> to vector<64x8xbf16>
    %c1_10 = arith.constant 1 : index
    %c0_11 = arith.constant 0 : index
    %c0_12 = arith.constant 0 : index
    %11 = vector.load %arg3[%c1_10, %c0_11, %c0_12] : memref<9x8x128xbf16, #tpu.memory_space<vmem>>, vector<1x8x128xbf16>
    %12 = vector.shape_cast %11 : vector<1x8x128xbf16> to vector<8x128xbf16>
    %cst_13 = arith.constant dense<0.000000e+00> : vector<64x128xf32>
    %13 = tpu.matmul %10, %12, %cst_13 {dimension_numbers = #tpu.dot_dimension_numbers<[1], [0], [0], [1], [0, 0, 1, 1], [], []>} : vector<64x8xbf16>, vector<8x128xbf16>, vector<64x128xf32> -> vector<64x128xf32>
    %14 = arith.addf %7, %13 : vector<64x128xf32>
    %c0_14 = arith.constant 0 : index
    %c0_15 = arith.constant 0 : index
    %c2 = arith.constant 2 : index
    %c0_16 = arith.constant 0 : index
    %15 = vector.load %arg2[%c0_14, %c0_15, %c2, %c0_16] : memref<1x10x10x8xbf16, #tpu.memory_space<vmem>>, vector<1x8x8x8xbf16>
    %16 = vector.shape_cast %15 : vector<1x8x8x8xbf16> to vector<8x8x8xbf16>
    %17 = vector.shape_cast %16 : vector<8x8x8xbf16> to vector<64x8xbf16>
    %c2_17 = arith.constant 2 : index
    %c0_18 = arith.constant 0 : index
    %c0_19 = arith.constant 0 : index
    %18 = vector.load %arg3[%c2_17, %c0_18, %c0_19] : memref<9x8x128xbf16, #tpu.memory_space<vmem>>, vector<1x8x128xbf16>
    %19 = vector.shape_cast %18 : vector<1x8x128xbf16> to vector<8x128xbf16>
    %cst_20 = arith.constant dense<0.000000e+00> : vector<64x128xf32>
    %20 = tpu.matmul %17, %19, %cst_20 {dimension_numbers = #tpu.dot_dimension_numbers<[1], [0], [0], [1], [0, 0, 1, 1], [], []>} : vector<64x8xbf16>, vector<8x128xbf16>, vector<64x128xf32> -> vector<64x128xf32>
    %21 = arith.addf %14, %20 : vector<64x128xf32>
    %c0_21 = arith.constant 0 : index
    %c1_22 = arith.constant 1 : index
    %c0_23 = arith.constant 0 : index
    %c0_24 = arith.constant 0 : index
    %22 = vector.load %arg2[%c0_21, %c1_22, %c0_23, %c0_24] : memref<1x10x10x8xbf16, #tpu.memory_space<vmem>>, vector<1x8x8x8xbf16>
    %23 = vector.shape_cast %22 : vector<1x8x8x8xbf16> to vector<8x8x8xbf16>
    %24 = vector.shape_cast %23 : vector<8x8x8xbf16> to vector<64x8xbf16>
    %c3 = arith.constant 3 : index
    %c0_25 = arith.constant 0 : index
    %c0_26 = arith.constant 0 : index
    %25 = vector.load %arg3[%c3, %c0_25, %c0_26] : memref<9x8x128xbf16, #tpu.memory_space<vmem>>, vector<1x8x128xbf16>
    %26 = vector.shape_cast %25 : vector<1x8x128xbf16> to vector<8x128xbf16>
    %cst_27 = arith.constant dense<0.000000e+00> : vector<64x128xf32>
    %27 = tpu.matmul %24, %26, %cst_27 {dimension_numbers = #tpu.dot_dimension_numbers<[1], [0], [0], [1], [0, 0, 1, 1], [], []>} : vector<64x8xbf16>, vector<8x128xbf16>, vector<64x128xf32> -> vector<64x128xf32>
    %28 = arith.addf %21, %27 : vector<64x128xf32>
    %c0_28 = arith.constant 0 : index
    %c1_29 = arith.constant 1 : index
    %c1_30 = arith.constant 1 : index
    %c0_31 = arith.constant 0 : index
    %29 = vector.load %arg2[%c0_28, %c1_29, %c1_30, %c0_31] : memref<1x10x10x8xbf16, #tpu.memory_space<vmem>>, vector<1x8x8x8xbf16>
    %30 = vector.shape_cast %29 : vector<1x8x8x8xbf16> to vector<8x8x8xbf16>
    %31 = vector.shape_cast %30 : vector<8x8x8xbf16> to vector<64x8xbf16>
    %c4 = arith.constant 4 : index
    %c0_32 = arith.constant 0 : index
    %c0_33 = arith.constant 0 : index
    %32 = vector.load %arg3[%c4, %c0_32, %c0_33] : memref<9x8x128xbf16, #tpu.memory_space<vmem>>, vector<1x8x128xbf16>
    %33 = vector.shape_cast %32 : vector<1x8x128xbf16> to vector<8x128xbf16>
    %cst_34 = arith.constant dense<0.000000e+00> : vector<64x128xf32>
    %34 = tpu.matmul %31, %33, %cst_34 {dimension_numbers = #tpu.dot_dimension_numbers<[1], [0], [0], [1], [0, 0, 1, 1], [], []>} : vector<64x8xbf16>, vector<8x128xbf16>, vector<64x128xf32> -> vector<64x128xf32>
    %35 = arith.addf %28, %34 : vector<64x128xf32>
    %c0_35 = arith.constant 0 : index
    %c1_36 = arith.constant 1 : index
    %c2_37 = arith.constant 2 : index
    %c0_38 = arith.constant 0 : index
    %36 = vector.load %arg2[%c0_35, %c1_36, %c2_37, %c0_38] : memref<1x10x10x8xbf16, #tpu.memory_space<vmem>>, vector<1x8x8x8xbf16>
    %37 = vector.shape_cast %36 : vector<1x8x8x8xbf16> to vector<8x8x8xbf16>
    %38 = vector.shape_cast %37 : vector<8x8x8xbf16> to vector<64x8xbf16>
    %c5 = arith.constant 5 : index
    %c0_39 = arith.constant 0 : index
    %c0_40 = arith.constant 0 : index
    %39 = vector.load %arg3[%c5, %c0_39, %c0_40] : memref<9x8x128xbf16, #tpu.memory_space<vmem>>, vector<1x8x128xbf16>
    %40 = vector.shape_cast %39 : vector<1x8x128xbf16> to vector<8x128xbf16>
    %cst_41 = arith.constant dense<0.000000e+00> : vector<64x128xf32>
    %41 = tpu.matmul %38, %40, %cst_41 {dimension_numbers = #tpu.dot_dimension_numbers<[1], [0], [0], [1], [0, 0, 1, 1], [], []>} : vector<64x8xbf16>, vector<8x128xbf16>, vector<64x128xf32> -> vector<64x128xf32>
    %42 = arith.addf %35, %41 : vector<64x128xf32>
    %c0_42 = arith.constant 0 : index
    %c2_43 = arith.constant 2 : index
    %c0_44 = arith.constant 0 : index
    %c0_45 = arith.constant 0 : index
    %43 = vector.load %arg2[%c0_42, %c2_43, %c0_44, %c0_45] : memref<1x10x10x8xbf16, #tpu.memory_space<vmem>>, vector<1x8x8x8xbf16>
    %44 = vector.shape_cast %43 : vector<1x8x8x8xbf16> to vector<8x8x8xbf16>
    %45 = vector.shape_cast %44 : vector<8x8x8xbf16> to vector<64x8xbf16>
    %c6 = arith.constant 6 : index
    %c0_46 = arith.constant 0 : index
    %c0_47 = arith.constant 0 : index
    %46 = vector.load %arg3[%c6, %c0_46, %c0_47] : memref<9x8x128xbf16, #tpu.memory_space<vmem>>, vector<1x8x128xbf16>
    %47 = vector.shape_cast %46 : vector<1x8x128xbf16> to vector<8x128xbf16>
    %cst_48 = arith.constant dense<0.000000e+00> : vector<64x128xf32>
    %48 = tpu.matmul %45, %47, %cst_48 {dimension_numbers = #tpu.dot_dimension_numbers<[1], [0], [0], [1], [0, 0, 1, 1], [], []>} : vector<64x8xbf16>, vector<8x128xbf16>, vector<64x128xf32> -> vector<64x128xf32>
    %49 = arith.addf %42, %48 : vector<64x128xf32>
    %c0_49 = arith.constant 0 : index
    %c2_50 = arith.constant 2 : index
    %c1_51 = arith.constant 1 : index
    %c0_52 = arith.constant 0 : index
    %50 = vector.load %arg2[%c0_49, %c2_50, %c1_51, %c0_52] : memref<1x10x10x8xbf16, #tpu.memory_space<vmem>>, vector<1x8x8x8xbf16>
    %51 = vector.shape_cast %50 : vector<1x8x8x8xbf16> to vector<8x8x8xbf16>
    %52 = vector.shape_cast %51 : vector<8x8x8xbf16> to vector<64x8xbf16>
    %c7 = arith.constant 7 : index
    %c0_53 = arith.constant 0 : index
    %c0_54 = arith.constant 0 : index
    %53 = vector.load %arg3[%c7, %c0_53, %c0_54] : memref<9x8x128xbf16, #tpu.memory_space<vmem>>, vector<1x8x128xbf16>
    %54 = vector.shape_cast %53 : vector<1x8x128xbf16> to vector<8x128xbf16>
    %cst_55 = arith.constant dense<0.000000e+00> : vector<64x128xf32>
    %55 = tpu.matmul %52, %54, %cst_55 {dimension_numbers = #tpu.dot_dimension_numbers<[1], [0], [0], [1], [0, 0, 1, 1], [], []>} : vector<64x8xbf16>, vector<8x128xbf16>, vector<64x128xf32> -> vector<64x128xf32>
    %56 = arith.addf %49, %55 : vector<64x128xf32>
    %c0_56 = arith.constant 0 : index
    %c2_57 = arith.constant 2 : index
    %c2_58 = arith.constant 2 : index
    %c0_59 = arith.constant 0 : index
    %57 = vector.load %arg2[%c0_56, %c2_57, %c2_58, %c0_59] : memref<1x10x10x8xbf16, #tpu.memory_space<vmem>>, vector<1x8x8x8xbf16>
    %58 = vector.shape_cast %57 : vector<1x8x8x8xbf16> to vector<8x8x8xbf16>
    %59 = vector.shape_cast %58 : vector<8x8x8xbf16> to vector<64x8xbf16>
    %c8 = arith.constant 8 : index
    %c0_60 = arith.constant 0 : index
    %c0_61 = arith.constant 0 : index
    %60 = vector.load %arg3[%c8, %c0_60, %c0_61] : memref<9x8x128xbf16, #tpu.memory_space<vmem>>, vector<1x8x128xbf16>
    %61 = vector.shape_cast %60 : vector<1x8x128xbf16> to vector<8x128xbf16>
    %cst_62 = arith.constant dense<0.000000e+00> : vector<64x128xf32>
    %62 = tpu.matmul %59, %61, %cst_62 {dimension_numbers = #tpu.dot_dimension_numbers<[1], [0], [0], [1], [0, 0, 1, 1], [], []>} : vector<64x8xbf16>, vector<8x128xbf16>, vector<64x128xf32> -> vector<64x128xf32>
    %63 = arith.addf %56, %62 : vector<64x128xf32>
    %c0_63 = arith.constant 0 : index
    %c0_64 = arith.constant 0 : index
    %64 = vector.load %arg4[%c0_63, %c0_64] : memref<1x128xf32, #tpu.memory_space<vmem>>, vector<1x128xf32>
    %65 = vector.broadcast %64 : vector<1x128xf32> to vector<64x128xf32>
    %66 = arith.mulf %63, %65 : vector<64x128xf32>
    %c0_65 = arith.constant 0 : index
    %c0_66 = arith.constant 0 : index
    %67 = vector.load %arg5[%c0_65, %c0_66] : memref<1x128xf32, #tpu.memory_space<vmem>>, vector<1x128xf32>
    %68 = vector.broadcast %67 : vector<1x128xf32> to vector<64x128xf32>
    %69 = arith.addf %66, %68 : vector<64x128xf32>
    %c0_67 = arith.constant 0 : index
    %c0_68 = arith.constant 0 : index
    %c0_69 = arith.constant 0 : index
    %70 = vector.load %arg6[%c0_67, %c0_68, %c0_69] : memref<1x64x128xf32, #tpu.memory_space<vmem>>, vector<1x64x128xf32>
    %71 = vector.shape_cast %70 : vector<1x64x128xf32> to vector<64x128xf32>
    %72 = arith.addf %69, %71 : vector<64x128xf32>
    %cst_70 = arith.constant 0.000000e+00 : f32
    %73 = vector.broadcast %cst_70 : f32 to vector<64x128xf32>
    %74 = arith.maximumf %72, %73 : vector<64x128xf32>
    %c0_71 = arith.constant 0 : index
    %c0_72 = arith.constant 0 : index
    %c0_73 = arith.constant 0 : index
    %75 = vector.load %arg7[%c0_71, %c0_72, %c0_73] : memref<1x64x128xf32, #tpu.memory_space<vmem>>, vector<1x64x128xf32>
    %76 = vector.shape_cast %75 : vector<1x64x128xf32> to vector<64x128xf32>
    %77 = vector.shape_cast %74 : vector<64x128xf32> to vector<1x64x128xf32>
    tpu.vector_store %arg7[%c0_71, %c0_72, %c0_73], %77 {strides = array<i32>} : memref<1x64x128xf32, #tpu.memory_space<vmem>>, vector<1x64x128xf32>,
    return
  }
  func.func @transform_0(%arg0: i32, %arg1: i32) -> (i32, i32, i32, i32) {
    %c0_i32 = arith.constant 0 : i32
    %c0_i32_0 = arith.constant 0 : i32
    %c0_i32_1 = arith.constant 0 : i32
    %c0_i32_2 = arith.constant 0 : i32
    return %arg1, %c0_i32, %c0_i32_0, %c0_i32_1 : i32, i32, i32, i32
  }
  func.func @transform_1(%arg0: i32, %arg1: i32) -> (i32, i32, i32) {
    %c0_i32 = arith.constant 0 : i32
    %c0_i32_0 = arith.constant 0 : i32
    %c0_i32_1 = arith.constant 0 : i32
    return %c0_i32, %c0_i32_0, %arg0 : i32, i32, i32
  }
  func.func @transform_2(%arg0: i32, %arg1: i32) -> (i32, i32) {
    %c0_i32 = arith.constant 0 : i32
    %c0_i32_0 = arith.constant 0 : i32
    return %c0_i32, %arg0 : i32, i32
  }
  func.func @transform_3(%arg0: i32, %arg1: i32) -> (i32, i32) {
    %c0_i32 = arith.constant 0 : i32
    %c0_i32_0 = arith.constant 0 : i32
    return %c0_i32, %arg0 : i32, i32
  }
  func.func @transform_4(%arg0: i32, %arg1: i32) -> (i32, i32, i32) {
    %c0_i32 = arith.constant 0 : i32
    %c0_i32_0 = arith.constant 0 : i32
    return %arg1, %c0_i32, %arg0 : i32, i32, i32
  }
  func.func @transform_5(%arg0: i32, %arg1: i32) -> (i32, i32, i32) {
    %c0_i32 = arith.constant 0 : i32
    %c0_i32_0 = arith.constant 0 : i32
    return %arg1, %c0_i32, %arg0 : i32, i32, i32
  }
}

</mosaic_0001>

<llo_original>
// kernel: resblock_forward.4
$region0: #{resblock_forward.4}
  #allocation0 [shape = 'u32[]', space=smem, size = 0x4, offset = 0x4, fixed_abs, tag = 'smem constant byte address 0x4 - core index']
  #allocation1 [shape = 'u32[72,128]{1,0:T(1,128)}', space=vmem, size = 0x9000, scoped, tag = 'internal scratch']
  %s0 = inlined_call_operand.vmem [shape: bf16[8,8,8,4], index: 0, kind: input, shape index: {}]
  %s1 = inlined_call_operand.vmem [shape: bf16[1,4,128], index: 1, kind: input, shape index: {}]
  %s2 = inlined_call_operand.vmem [shape: f32[1,128], index: 2, kind: input, shape index: {}]
  %s3 = inlined_call_operand.vmem [shape: f32[1,128], index: 3, kind: input, shape index: {}]
  %s4 = inlined_call_operand.vmem [shape: f32[2,64,128], index: 4, kind: output, shape index: {}]
  %s5 = sld [smem:[#allocation0]]
  $region49: #{resblock_forward.4} parent=0
    _
  %s7 = ssub.s32 1, %s5
  %s8 = scalar_select 0, %s7, %s5
  loop: start=0, step=1, limit=4
  $region2: #{resblock_forward.4} parent=0 // loop_pre_header
    _
  $region3: #{resblock_forward.4} parent=0 // loop_header
    %s10 = sphi 0, %s14
    %p11 = scmp.ge.s32.totalorder %s10, 4
    %s17 = sphi 0, %s29
    %s18 = sphi 0, %s25
    %s19 = sphi 0, %s17
    %s20 = sphi 0, %s18
    %s21 = sphi 0, %s19
    %s22 = sphi 0, %s20
    %s32 = sphi 0, %s34
    %s35 = sphi 0, %s32
    %s36 = sphi 0, %s35
    %s52 = sphi 0, %s36
    %s58 = sphi 0, %s60
    %s61 = sphi 0, %s58
    %s62 = sphi 0, %s61
    %s78 = sphi 0, %s62
    %s84 = sphi 0, %s86
    %s87 = sphi 0, %s84
    %s88 = sphi 0, %s87
    %s104 = sphi 0, %s88
    %s110 = sphi 0, %s112
    %s113 = sphi 0, %s110
    %s114 = sphi 0, %s113
    %s130 = sphi 0, %s114
    %s138 = sphi 0, %s140
    %s141 = sphi 0, %s138
    %s142 = sphi 0, %s141
    %s158 = sphi 0, %s142
  $region4: #{resblock_forward.4} parent=0 // loop_header_branch
    %13 = sbr.rel (%p11) target = $region8
  $region5: #{resblock_forward.4} parent=0 // loop_body
    %s15 = ssub.s32 %s10, 1
    %s16 = ssub.s32 %s10, 2
    %s23 = sadd.s32 1, %s18
    %p24 = scmp.ge.s32.totalorder %s23, 2
    %s25 = scalar_select %p24, 0, %s23
    %s26 = sadd.s32 1, %s17
    %s27 = scalar_select %p24, %s26, %s17
    %p28 = scmp.ge.s32.totalorder %s27, 1
    %s29 = scalar_select %p28, 0, %s27
    %s30 = ssub.s32 %s18, %s25
    %p31 = scmp.eq.s32.totalorder %s30, 0
    %s33 = sadd.s32 %s32, 1
    %s34 = scalar_select %p31, %s32, %s33
    %p37 = pneg %p31
    %p38 = scmp.eq.s32.totalorder %s10, 1
    %p39 = por %p37, %p38
    %p40 = scmp.ne.s32.totalorder %s32, %s35
    %p41 = scmp.eq.s32.totalorder %s10, 0
    %p42 = por %p40, %p41
    %p43 = scmp.ne.s32.totalorder %s32, %s35
    %p44 = scmp.eq.s32.totalorder %s15, 1
    %p45 = por %p43, %p44
    %p46 = scmp.ne.s32.totalorder %s35, %s36
    %p47 = scmp.eq.s32.totalorder %s15, 0
    %p48 = por %p46, %p47
    %p49 = scmp.ne.s32.totalorder %s35, %s36
    %p50 = scmp.eq.s32.totalorder %s16, 1
    %p51 = por %p49, %p50
    %p53 = scmp.ne.s32.totalorder %s36, %s52
    %p54 = scmp.eq.s32.totalorder %s16, 0
    %p55 = por %p53, %p54
    %s56 = ssub.s32 %s17, %s29
    %p57 = scmp.eq.s32.totalorder %s56, 0
    %s59 = sadd.s32 %s58, 1
    %s60 = scalar_select %p57, %s58, %s59
    %p63 = pneg %p57
    %p64 = scmp.eq.s32.totalorder %s10, 1
    %p65 = por %p63, %p64
    %p66 = scmp.ne.s32.totalorder %s58, %s61
    %p67 = scmp.eq.s32.totalorder %s10, 0
    %p68 = por %p66, %p67
    %p69 = scmp.ne.s32.totalorder %s58, %s61
    %p70 = scmp.eq.s32.totalorder %s15, 1
    %p71 = por %p69, %p70
    %p72 = scmp.ne.s32.totalorder %s61, %s62
    %p73 = scmp.eq.s32.totalorder %s15, 0
    %p74 = por %p72, %p73
    %p75 = scmp.ne.s32.totalorder %s61, %s62
    %p76 = scmp.eq.s32.totalorder %s16, 1
    %p77 = por %p75, %p76
    %p79 = scmp.ne.s32.totalorder %s62, %s78
    %p80 = scmp.eq.s32.totalorder %s16, 0
    %p81 = por %p79, %p80
    %s82 = ssub.s32 %s17, %s29
    %p83 = scmp.eq.s32.totalorder %s82, 0
    %s85 = sadd.s32 %s84, 1
    %s86 = scalar_select %p83, %s84, %s85
    %p89 = pneg %p83
    %p90 = scmp.eq.s32.totalorder %s10, 1
    %p91 = por %p89, %p90
    %p92 = scmp.ne.s32.totalorder %s84, %s87
    %p93 = scmp.eq.s32.totalorder %s10, 0
    %p94 = por %p92, %p93
    %p95 = scmp.ne.s32.totalorder %s84, %s87
    %p96 = scmp.eq.s32.totalorder %s15, 1
    %p97 = por %p95, %p96
    %p98 = scmp.ne.s32.totalorder %s87, %s88
    %p99 = scmp.eq.s32.totalorder %s15, 0
    %p100 = por %p98, %p99
    %p101 = scmp.ne.s32.totalorder %s87, %s88
    %p102 = scmp.eq.s32.totalorder %s16, 1
    %p103 = por %p101, %p102
    %p105 = scmp.ne.s32.totalorder %s88, %s104
    %p106 = scmp.eq.s32.totalorder %s16, 0
    %p107 = por %p105, %p106
    %s108 = ssub.s32 %s17, %s29
    %p109 = scmp.eq.s32.totalorder %s108, 0
    %s111 = sadd.s32 %s110, 1
    %s112 = scalar_select %p109, %s110, %s111
    %p115 = pneg %p109
    %p116 = scmp.eq.s32.totalorder %s10, 1
    %p117 = por %p115, %p116
    %p118 = scmp.ne.s32.totalorder %s110, %s113
    %p119 = scmp.eq.s32.totalorder %s10, 0
    %p120 = por %p118, %p119
    %p121 = scmp.ne.s32.totalorder %s110, %s113
    %p122 = scmp.eq.s32.totalorder %s15, 1
    %p123 = por %p121, %p122
    %p124 = scmp.ne.s32.totalorder %s113, %s114
    %p125 = scmp.eq.s32.totalorder %s15, 0
    %p126 = por %p124, %p125
    %p127 = scmp.ne.s32.totalorder %s113, %s114
    %p128 = scmp.eq.s32.totalorder %s16, 1
    %p129 = por %p127, %p128
    %p131 = scmp.ne.s32.totalorder %s114, %s130
    %p132 = scmp.eq.s32.totalorder %s16, 0
    %p133 = por %p131, %p132
    %s134 = ssub.s32 %s18, %s25
    %s135 = ssub.s32 %s17, %s29
    %s136 = sor.u32 %s134, %s135
    %p137 = scmp.eq.s32.totalorder %s136, 0
    %s139 = sadd.s32 %s138, 1
    %s140 = scalar_select %p137, %s138, %s139
    %p143 = pneg %p137
    %p144 = scmp.eq.s32.totalorder %s10, 1
    %p145 = por %p143, %p144
    %p146 = scmp.ne.s32.totalorder %s138, %s141
    %p147 = scmp.eq.s32.totalorder %s10, 0
    %p148 = por %p146, %p147
    %p149 = scmp.ne.s32.totalorder %s138, %s141
    %p150 = scmp.eq.s32.totalorder %s15, 1
    %p151 = por %p149, %p150
    %p152 = scmp.ne.s32.totalorder %s141, %s142
    %p153 = scmp.eq.s32.totalorder %s15, 0
    %p154 = por %p152, %p153
    %p155 = scmp.ne.s32.totalorder %s141, %s142
    %p156 = scmp.eq.s32.totalorder %s16, 1
    %p157 = por %p155, %p156
    %p159 = scmp.ne.s32.totalorder %s142, %s158
    %p160 = scmp.eq.s32.totalorder %s16, 0
    %p161 = por %p159, %p160
    %p162 = scmp.le.s32.totalorder 1, %s10
    %p163 = scmp.lt.s32.totalorder %s10, 3
    %p164 = pnand %p162, %p163
    %p165 = pneg %p164
    // Predicated region
    $region9: #{resblock_forward.4} parent=5 // pred_check
      _
    $region10: #{resblock_forward.4} parent=5 // pred_check_branch
      %167 = sbr.rel (%p164) target = $region12
    $region11: #{resblock_forward.4} parent=5 // pred_region
      %s168 = ssub.s32 %s10, 1
      // Predicated region
      $region13: #{resblock_forward.4} parent=11 // pred_check
        %p169 = pneg %p74
      $region14: #{resblock_forward.4} parent=11 // pred_check_branch
        %171 = sbr.rel (%p169) target = $region16
      $region15: #{resblock_forward.4} parent=11 // pred_region
        %p172 = scmp.lt.s32.totalorder %s19, 0
        %s173 = scalar_select %p172, %s19, 0
        %s174 = smul.addr %s173, 2
        %s175 = scalar_lea.vmem %s1, %s174
      $region16: #{resblock_forward.4} parent=11 // pred_fallthru
        _
      // Predicated region
      $region17: #{resblock_forward.4} parent=11 // pred_check
        %p176 = pneg %p100
      $region18: #{resblock_forward.4} parent=11 // pred_check_branch
        %178 = sbr.rel (%p176) target = $region20
      $region19: #{resblock_forward.4} parent=11 // pred_region
        %p179 = scmp.lt.s32.totalorder %s19, 0
        %s180 = scalar_select %p179, %s19, 0
        %s181 = scalar_lea.vmem %s2, %s180
      $region20: #{resblock_forward.4} parent=11 // pred_fallthru
        _
      // Predicated region
      $region21: #{resblock_forward.4} parent=11 // pred_check
        %p182 = pneg %p126
      $region22: #{resblock_forward.4} parent=11 // pred_check_branch
        %184 = sbr.rel (%p182) target = $region24
      $region23: #{resblock_forward.4} parent=11 // pred_region
        %p185 = scmp.lt.s32.totalorder %s19, 0
        %s186 = scalar_select %p185, %s19, 0
        %s187 = scalar_lea.vmem %s3, %s186
      $region24: #{resblock_forward.4} parent=11 // pred_fallthru
        _
    $region12: #{resblock_forward.4} parent=5 // pred_fallthru
      _
    %p188 = scmp.lt.s32.totalorder %s10, 2
    // Predicated region
    $region25: #{resblock_forward.4} parent=5 // pred_check
      %p189 = pneg %p188
    $region26: #{resblock_forward.4} parent=5 // pred_check_branch
      %191 = sbr.rel (%p189) target = $region28
    $region27: #{resblock_forward.4} parent=5 // pred_region
      // Predicated region
      $region29: #{resblock_forward.4} parent=27 // pred_check
        %p192 = pneg %p42
      $region30: #{resblock_forward.4} parent=27 // pred_check_branch
        %194 = sbr.rel (%p192) target = $region32
      $region31: #{resblock_forward.4} parent=27 // pred_region
        %s195 = smul.u32 4, %s18
        %p196 = scmp.lt.s32.totalorder %s195, 7
        %s197 = scalar_select %p196, %s195, 7
        %s198 = smul.addr %s197, 8
        %s199 = smul.addr %s198, 4
        %s200 = scalar_lea.vmem %s0, %s199
        %s201 = smul.u32 4, %s18
      $region32: #{resblock_forward.4} parent=27 // pred_fallthru
        _
    $region28: #{resblock_forward.4} parent=5 // pred_fallthru
      _
    %p202 = scmp.le.s32.totalorder 1, %s10
    %p203 = scmp.lt.s32.totalorder %s10, 3
    %p204 = pnand %p202, %p203
    %p205 = pneg %p204
    // Predicated region
    $region33: #{resblock_forward.4} parent=5 // pred_check
      _
    $region34: #{resblock_forward.4} parent=5 // pred_check_branch
      %207 = sbr.rel (%p204) target = $region36
    $region35: #{resblock_forward.4} parent=5 // pred_region
      %s208 = ssub.s32 %s10, 1
      %s209 = smul.u32 4, %s20
      %p210 = scmp.lt.s32.totalorder %s209, 7
      %s211 = scalar_select %p210, %s209, 7
      %s212 = smul.addr %s211, 8
      %s213 = smul.addr %s212, 4
      %s214 = scalar_lea.vmem %s0, %s213
      %p215 = pneg %p48
      %p216 = pneg %p45
      %p217 = scmp.lt.s32.totalorder %s19, 0
      %s218 = scalar_select %p217, %s19, 0
      %s219 = smul.addr %s218, 2
      %s220 = scalar_lea.vmem %s1, %s219
      %p221 = pneg %p74
      %p222 = pneg %p71
      %p223 = scmp.lt.s32.totalorder %s19, 0
      %s224 = scalar_select %p223, %s19, 0
      %s225 = scalar_lea.vmem %s2, %s224
      %p226 = pneg %p100
      %p227 = pneg %p97
      %p228 = scmp.lt.s32.totalorder %s19, 0
      %s229 = scalar_select %p228, %s19, 0
      %s230 = scalar_lea.vmem %s3, %s229
      %p231 = pneg %p126
      %p232 = pneg %p123
      %p233 = pneg %p154
      %p234 = pneg %p151
      %p235 = scmp.lt.s32.totalorder %s20, 1
      %s236 = scalar_select %p235, %s20, 1
      %p237 = scmp.lt.s32.totalorder %s19, 0
      %s238 = scalar_select %p237, %s19, 0
      %s239 = smul.addr %s236, 8
      %s240 = sadd.s32 %s238, %s239
      %s241 = smul.addr %s240, 8
      %s242 = scalar_lea.vmem %s4, %s241
      %s243 = smul.u32 4, %s20
      %p244 = scmp.lt.s32.totalorder %s243, 7
      %s245 = scalar_select %p244, %s243, 7
      %s246 = smul.addr %s245, 8
      %s247 = smul.addr %s246, 4
      %s248 = scalar_lea.vmem %s0, %s247
      %s249 = smul.u32 4, %s20
      %p250 = scmp.lt.s32.totalorder %s19, 0
      %s251 = scalar_select %p250, %s19, 0
      %s252 = smul.addr %s251, 2
      %s253 = scalar_lea.vmem %s1, %s252
      %p254 = scmp.lt.s32.totalorder %s19, 0
      %s255 = scalar_select %p254, %s19, 0
      %s256 = scalar_lea.vmem %s2, %s255
      %p257 = scmp.lt.s32.totalorder %s19, 0
      %s258 = scalar_select %p257, %s19, 0
      %s259 = scalar_lea.vmem %s3, %s258
      %p260 = scmp.lt.s32.totalorder %s20, 1
      %s261 = scalar_select %p260, %s20, 1
      %p262 = scmp.lt.s32.totalorder %s19, 0
      %s263 = scalar_select %p262, %s19, 0
      %s264 = smul.addr %s261, 8
      %s265 = sadd.s32 %s263, %s264
      %s266 = smul.addr %s265, 8
      %s267 = scalar_lea.vmem %s4, %s266
      %v269 = vld [vmem:[%s248] sm:$0xf]
      %v270 = vld [vmem:[%s248 + $0x4] sm:$0xf]
      %v271 = vld [vmem:[%s248 + $0x8] sm:$0xf]
      %v272 = vld [vmem:[%s248 + $0xc] sm:$0xf]
      %v273 = vld [vmem:[%s248 + $0x10] sm:$0xf]
      %v274 = vld [vmem:[%s248 + $0x14] sm:$0xf]
      %v275 = vld [vmem:[%s248 + $0x18] sm:$0xf]
      %v276 = vld [vmem:[%s248 + $0x1c] sm:$0xf]
      %v277 = vld [vmem:[%s253] sm:$0x3]
      %v286 = vunpack.c.l.b16 %v269
      %v287 = vunpack.c.l.b16 %v270
      %v288 = vunpack.c.l.b16 %v271
      %v289 = vunpack.c.l.b16 %v272
      %v290 = vunpack.c.l.b16 %v273
      %v291 = vunpack.c.l.b16 %v274
      %v292 = vunpack.c.l.b16 %v275
      %v293 = vunpack.c.l.b16 %v276
      %v294 = vpack.c.b16 %v287, %v286
      %v295 = vpack.c.b16 %v289, %v288
      %v296 = vpack.c.b16 %v291, %v290
      %v297 = vpack.c.b16 %v293, %v292
      %vm298 = vcmask 31744
      %v300 = vsel %vm298, %v294, 0
      %v303 = vsel %vm298, %v295, 0
      %v306 = vsel %vm298, %v296, 0
      %v309 = vsel %vm298, %v297, 0
      %vm311 = vcmask 1041408
      %v313 = vsel %vm311, %v277, 0
      %315 = vmatpush.bf16.msra.mxu0 0
      %316 = vmatpush.bf16.msra.mxu0 0
      %317 = vmatpush.bf16.msra.mxu0 0
      %318 = vmatpush.bf16.msra.mxu0 0
      %319 = vmatpush.bf16.msra.mxu0 0
      %320 = vmatpush.bf16.msra.mxu0 0
      %321 = vmatpush.bf16.msra.mxu0 0
      %322 = vmatpush.bf16.msra.mxu0 %v313
      %323 = vmatmul.bf16.gmra.mxu0 %v300
      %v324 = vpop.f32.mrf.mxu0
      %v325 = vadd.f32 0.0, %v324
      %v326 = vpop.f32.mrf.mxu0
      %v327 = vadd.f32 0.0, %v326
      %328 = vmatmul.bf16.gmra.mxu0 %v303
      %v329 = vpop.f32.mrf.mxu0
      %v330 = vadd.f32 0.0, %v329
      %v331 = vpop.f32.mrf.mxu0
      %v332 = vadd.f32 0.0, %v331
      %333 = vmatmul.bf16.gmra.mxu0 %v306
      %v334 = vpop.f32.mrf.mxu0
      %v335 = vadd.f32 0.0, %v334
      %v336 = vpop.f32.mrf.mxu0
      %v337 = vadd.f32 0.0, %v336
      %338 = vmatmul.bf16.gmra.mxu0 %v309
      %v339 = vpop.f32.mrf.mxu0
      %v340 = vadd.f32 0.0, %v339
      %v341 = vpop.f32.mrf.mxu0
      %v342 = vadd.f32 0.0, %v341
      %343 = vdwg.mxu0
      %v344 = vld [vmem:[%s256] sm:$0x1]
      %v346 = vperm.slane %v344, 0
      %v348 = vmul.f32 %v325, %v346
      %v349 = vmul.f32 %v327, %v346
      %v350 = vmul.f32 %v330, %v346
      %v351 = vmul.f32 %v332, %v346
      %v352 = vmul.f32 %v335, %v346
      %v353 = vmul.f32 %v337, %v346
      %v354 = vmul.f32 %v340, %v346
      %v355 = vmul.f32 %v342, %v346
      %v356 = vld [vmem:[%s259] sm:$0x1]
      %v358 = vperm.slane %v356, 0
      %v360 = vadd.f32 %v348, %v358
      %v361 = vadd.f32 %v349, %v358
      %v362 = vadd.f32 %v350, %v358
      %v363 = vadd.f32 %v351, %v358
      %v364 = vadd.f32 %v352, %v358
      %v365 = vadd.f32 %v353, %v358
      %v366 = vadd.f32 %v354, %v358
      %v367 = vadd.f32 %v355, %v358
      %368 = vst [vmem:[%s267] sm:$0xff] %v360
      %369 = vst [vmem:[%s267 + $0x8] sm:$0xff] %v361
      %370 = vst [vmem:[%s267 + $0x10] sm:$0xff] %v362
      %371 = vst [vmem:[%s267 + $0x18] sm:$0xff] %v363
      %372 = vst [vmem:[%s267 + $0x20] sm:$0xff] %v364
      %373 = vst [vmem:[%s267 + $0x28] sm:$0xff] %v365
      %374 = vst [vmem:[%s267 + $0x30] sm:$0xff] %v366
      %375 = vst [vmem:[%s267 + $0x38] sm:$0xff] %v367
      %p376 = scmp.lt.s32.totalorder %s20, 1
      %s377 = scalar_select %p376, %s20, 1
      %p378 = scmp.lt.s32.totalorder %s19, 0
      %s379 = scalar_select %p378, %s19, 0
      %s380 = smul.addr %s377, 8
      %s381 = sadd.s32 %s379, %s380
      %s382 = smul.addr %s381, 8
      %s383 = scalar_lea.vmem %s4, %s382
      // Predicated region
      $region37: #{resblock_forward.4} parent=35 // pred_check
        %p384 = pneg %p151
      $region38: #{resblock_forward.4} parent=35 // pred_check_branch
        %386 = sbr.rel (%p384) target = $region40
      $region39: #{resblock_forward.4} parent=35 // pred_region
        _
      $region40: #{resblock_forward.4} parent=35 // pred_fallthru
        _
    $region36: #{resblock_forward.4} parent=5 // pred_fallthru
      _
    %p387 = scmp.le.s32.totalorder 2, %s10
    // Predicated region
    $region41: #{resblock_forward.4} parent=5 // pred_check
      %p388 = pneg %p387
    $region42: #{resblock_forward.4} parent=5 // pred_check_branch
      %390 = sbr.rel (%p388) target = $region44
    $region43: #{resblock_forward.4} parent=5 // pred_region
      %s391 = ssub.s32 %s10, 2
      // Predicated region
      $region45: #{resblock_forward.4} parent=43 // pred_check
        %p392 = pneg %p157
      $region46: #{resblock_forward.4} parent=43 // pred_check_branch
        %394 = sbr.rel (%p392) target = $region48
      $region47: #{resblock_forward.4} parent=43 // pred_region
        %p395 = scmp.lt.s32.totalorder %s22, 1
        %s396 = scalar_select %p395, %s22, 1
        %p397 = scmp.lt.s32.totalorder %s21, 0
        %s398 = scalar_select %p397, %s21, 0
        %s399 = smul.addr %s396, 8
        %s400 = sadd.s32 %s398, %s399
        %s401 = smul.addr %s400, 8
        %s402 = scalar_lea.vmem %s4, %s401
      $region48: #{resblock_forward.4} parent=43 // pred_fallthru
        _
    $region44: #{resblock_forward.4} parent=5 // pred_fallthru
      _
  $region6: #{resblock_forward.4} parent=0 // loop_footer
    %s14 = sadd.s32 1, %s10
  $region7: #{resblock_forward.4} parent=0 // loop_footer_branch
    %9 = sbr.rel target = $region3
  $region8: #{resblock_forward.4} parent=0 // loop_exit
    _

// kernel: resblock_forward.3
$region0: #{resblock_forward.3}
  #allocation0 [shape = 'u32[]', space=smem, size = 0x4, offset = 0x4, fixed_abs, tag = 'smem constant byte address 0x4 - core index']
  #allocation1 [shape = 'u32[72,128]{1,0:T(1,128)}', space=vmem, size = 0x9000, scoped, tag = 'internal scratch']
  %s0 = inlined_call_operand.vmem [shape: bf16[8,9,9,4], index: 0, kind: input, shape index: {}]
  %s1 = inlined_call_operand.vmem [shape: bf16[9,4,128], index: 1, kind: input, shape index: {}]
  %s2 = inlined_call_operand.vmem [shape: f32[1,128], index: 2, kind: input, shape index: {}]
  %s3 = inlined_call_operand.vmem [shape: f32[1,128], index: 3, kind: input, shape index: {}]
  %s4 = inlined_call_operand.vmem [shape: f32[2,64,128], index: 4, kind: output, shape index: {}]
  %s5 = sld [smem:[#allocation0]]
  $region49: #{resblock_forward.3} parent=0
    _
  %s7 = ssub.s32 1, %s5
  %s8 = scalar_select 0, %s7, %s5
  loop: start=0, step=1, limit=4
  $region2: #{resblock_forward.3} parent=0 // loop_pre_header
    _
  $region3: #{resblock_forward.3} parent=0 // loop_header
    %s10 = sphi 0, %s14
    %p11 = scmp.ge.s32.totalorder %s10, 4
    %s17 = sphi 0, %s29
    %s18 = sphi 0, %s25
    %s19 = sphi 0, %s17
    %s20 = sphi 0, %s18
    %s21 = sphi 0, %s19
    %s22 = sphi 0, %s20
    %s32 = sphi 0, %s34
    %s35 = sphi 0, %s32
    %s36 = sphi 0, %s35
    %s52 = sphi 0, %s36
    %s58 = sphi 0, %s60
    %s61 = sphi 0, %s58
    %s62 = sphi 0, %s61
    %s78 = sphi 0, %s62
    %s84 = sphi 0, %s86
    %s87 = sphi 0, %s84
    %s88 = sphi 0, %s87
    %s104 = sphi 0, %s88
    %s110 = sphi 0, %s112
    %s113 = sphi 0, %s110
    %s114 = sphi 0, %s113
    %s130 = sphi 0, %s114
    %s138 = sphi 0, %s140
    %s141 = sphi 0, %s138
    %s142 = sphi 0, %s141
    %s158 = sphi 0, %s142
  $region4: #{resblock_forward.3} parent=0 // loop_header_branch
    %13 = sbr.rel (%p11) target = $region8
  $region5: #{resblock_forward.3} parent=0 // loop_body
    %s15 = ssub.s32 %s10, 1
    %s16 = ssub.s32 %s10, 2
    %s23 = sadd.s32 1, %s18
    %p24 = scmp.ge.s32.totalorder %s23, 2
    %s25 = scalar_select %p24, 0, %s23
    %s26 = sadd.s32 1, %s17
    %s27 = scalar_select %p24, %s26, %s17
    %p28 = scmp.ge.s32.totalorder %s27, 1
    %s29 = scalar_select %p28, 0, %s27
    %s30 = ssub.s32 %s18, %s25
    %p31 = scmp.eq.s32.totalorder %s30, 0
    %s33 = sadd.s32 %s32, 1
    %s34 = scalar_select %p31, %s32, %s33
    %p37 = pneg %p31
    %p38 = scmp.eq.s32.totalorder %s10, 1
    %p39 = por %p37, %p38
    %p40 = scmp.ne.s32.totalorder %s32, %s35
    %p41 = scmp.eq.s32.totalorder %s10, 0
    %p42 = por %p40, %p41
    %p43 = scmp.ne.s32.totalorder %s32, %s35
    %p44 = scmp.eq.s32.totalorder %s15, 1
    %p45 = por %p43, %p44
    %p46 = scmp.ne.s32.totalorder %s35, %s36
    %p47 = scmp.eq.s32.totalorder %s15, 0
    %p48 = por %p46, %p47
    %p49 = scmp.ne.s32.totalorder %s35, %s36
    %p50 = scmp.eq.s32.totalorder %s16, 1
    %p51 = por %p49, %p50
    %p53 = scmp.ne.s32.totalorder %s36, %s52
    %p54 = scmp.eq.s32.totalorder %s16, 0
    %p55 = por %p53, %p54
    %s56 = ssub.s32 %s17, %s29
    %p57 = scmp.eq.s32.totalorder %s56, 0
    %s59 = sadd.s32 %s58, 1
    %s60 = scalar_select %p57, %s58, %s59
    %p63 = pneg %p57
    %p64 = scmp.eq.s32.totalorder %s10, 1
    %p65 = por %p63, %p64
    %p66 = scmp.ne.s32.totalorder %s58, %s61
    %p67 = scmp.eq.s32.totalorder %s10, 0
    %p68 = por %p66, %p67
    %p69 = scmp.ne.s32.totalorder %s58, %s61
    %p70 = scmp.eq.s32.totalorder %s15, 1
    %p71 = por %p69, %p70
    %p72 = scmp.ne.s32.totalorder %s61, %s62
    %p73 = scmp.eq.s32.totalorder %s15, 0
    %p74 = por %p72, %p73
    %p75 = scmp.ne.s32.totalorder %s61, %s62
    %p76 = scmp.eq.s32.totalorder %s16, 1
    %p77 = por %p75, %p76
    %p79 = scmp.ne.s32.totalorder %s62, %s78
    %p80 = scmp.eq.s32.totalorder %s16, 0
    %p81 = por %p79, %p80
    %s82 = ssub.s32 %s17, %s29
    %p83 = scmp.eq.s32.totalorder %s82, 0
    %s85 = sadd.s32 %s84, 1
    %s86 = scalar_select %p83, %s84, %s85
    %p89 = pneg %p83
    %p90 = scmp.eq.s32.totalorder %s10, 1
    %p91 = por %p89, %p90
    %p92 = scmp.ne.s32.totalorder %s84, %s87
    %p93 = scmp.eq.s32.totalorder %s10, 0
    %p94 = por %p92, %p93
    %p95 = scmp.ne.s32.totalorder %s84, %s87
    %p96 = scmp.eq.s32.totalorder %s15, 1
    %p97 = por %p95, %p96
    %p98 = scmp.ne.s32.totalorder %s87, %s88
    %p99 = scmp.eq.s32.totalorder %s15, 0
    %p100 = por %p98, %p99
    %p101 = scmp.ne.s32.totalorder %s87, %s88
    %p102 = scmp.eq.s32.totalorder %s16, 1
    %p103 = por %p101, %p102
    %p105 = scmp.ne.s32.totalorder %s88, %s104
    %p106 = scmp.eq.s32.totalorder %s16, 0
    %p107 = por %p105, %p106
    %s108 = ssub.s32 %s17, %s29
    %p109 = scmp.eq.s32.totalorder %s108, 0
    %s111 = sadd.s32 %s110, 1
    %s112 = scalar_select %p109, %s110, %s111
    %p115 = pneg %p109
    %p116 = scmp.eq.s32.totalorder %s10, 1
    %p117 = por %p115, %p116
    %p118 = scmp.ne.s32.totalorder %s110, %s113
    %p119 = scmp.eq.s32.totalorder %s10, 0
    %p120 = por %p118, %p119
    %p121 = scmp.ne.s32.totalorder %s110, %s113
    %p122 = scmp.eq.s32.totalorder %s15, 1
    %p123 = por %p121, %p122
    %p124 = scmp.ne.s32.totalorder %s113, %s114
    %p125 = scmp.eq.s32.totalorder %s15, 0
    %p126 = por %p124, %p125
    %p127 = scmp.ne.s32.totalorder %s113, %s114
    %p128 = scmp.eq.s32.totalorder %s16, 1
    %p129 = por %p127, %p128
    %p131 = scmp.ne.s32.totalorder %s114, %s130
    %p132 = scmp.eq.s32.totalorder %s16, 0
    %p133 = por %p131, %p132
    %s134 = ssub.s32 %s18, %s25
    %s135 = ssub.s32 %s17, %s29
    %s136 = sor.u32 %s134, %s135
    %p137 = scmp.eq.s32.totalorder %s136, 0
    %s139 = sadd.s32 %s138, 1
    %s140 = scalar_select %p137, %s138, %s139
    %p143 = pneg %p137
    %p144 = scmp.eq.s32.totalorder %s10, 1
    %p145 = por %p143, %p144
    %p146 = scmp.ne.s32.totalorder %s138, %s141
    %p147 = scmp.eq.s32.totalorder %s10, 0
    %p148 = por %p146, %p147
    %p149 = scmp.ne.s32.totalorder %s138, %s141
    %p150 = scmp.eq.s32.totalorder %s15, 1
    %p151 = por %p149, %p150
    %p152 = scmp.ne.s32.totalorder %s141, %s142
    %p153 = scmp.eq.s32.totalorder %s15, 0
    %p154 = por %p152, %p153
    %p155 = scmp.ne.s32.totalorder %s141, %s142
    %p156 = scmp.eq.s32.totalorder %s16, 1
    %p157 = por %p155, %p156
    %p159 = scmp.ne.s32.totalorder %s142, %s158
    %p160 = scmp.eq.s32.totalorder %s16, 0
    %p161 = por %p159, %p160
    %p162 = scmp.le.s32.totalorder 1, %s10
    %p163 = scmp.lt.s32.totalorder %s10, 3
    %p164 = pnand %p162, %p163
    %p165 = pneg %p164
    // Predicated region
    $region9: #{resblock_forward.3} parent=5 // pred_check
      _
    $region10: #{resblock_forward.3} parent=5 // pred_check_branch
      %167 = sbr.rel (%p164) target = $region12
    $region11: #{resblock_forward.3} parent=5 // pred_region
      %s168 = ssub.s32 %s10, 1
      // Predicated region
      $region13: #{resblock_forward.3} parent=11 // pred_check
        %p169 = pneg %p74
      $region14: #{resblock_forward.3} parent=11 // pred_check_branch
        %171 = sbr.rel (%p169) target = $region16
      $region15: #{resblock_forward.3} parent=11 // pred_region
        %p172 = scmp.lt.s32.totalorder %s19, 0
        %s173 = scalar_select %p172, %s19, 0
        %s174 = smul.addr %s173, 2
        %s175 = scalar_lea.vmem %s1, %s174
      $region16: #{resblock_forward.3} parent=11 // pred_fallthru
        _
      // Predicated region
      $region17: #{resblock_forward.3} parent=11 // pred_check
        %p176 = pneg %p100
      $region18: #{resblock_forward.3} parent=11 // pred_check_branch
        %178 = sbr.rel (%p176) target = $region20
      $region19: #{resblock_forward.3} parent=11 // pred_region
        %p179 = scmp.lt.s32.totalorder %s19, 0
        %s180 = scalar_select %p179, %s19, 0
        %s181 = scalar_lea.vmem %s2, %s180
      $region20: #{resblock_forward.3} parent=11 // pred_fallthru
        _
      // Predicated region
      $region21: #{resblock_forward.3} parent=11 // pred_check
        %p182 = pneg %p126
      $region22: #{resblock_forward.3} parent=11 // pred_check_branch
        %184 = sbr.rel (%p182) target = $region24
      $region23: #{resblock_forward.3} parent=11 // pred_region
        %p185 = scmp.lt.s32.totalorder %s19, 0
        %s186 = scalar_select %p185, %s19, 0
        %s187 = scalar_lea.vmem %s3, %s186
      $region24: #{resblock_forward.3} parent=11 // pred_fallthru
        _
    $region12: #{resblock_forward.3} parent=5 // pred_fallthru
      _
    %p188 = scmp.lt.s32.totalorder %s10, 2
    // Predicated region
    $region25: #{resblock_forward.3} parent=5 // pred_check
      %p189 = pneg %p188
    $region26: #{resblock_forward.3} parent=5 // pred_check_branch
      %191 = sbr.rel (%p189) target = $region28
    $region27: #{resblock_forward.3} parent=5 // pred_region
      // Predicated region
      $region29: #{resblock_forward.3} parent=27 // pred_check
        %p192 = pneg %p42
      $region30: #{resblock_forward.3} parent=27 // pred_check_branch
        %194 = sbr.rel (%p192) target = $region32
      $region31: #{resblock_forward.3} parent=27 // pred_region
        %s195 = smul.u32 4, %s18
        %p196 = scmp.lt.s32.totalorder %s195, 7
        %s197 = scalar_select %p196, %s195, 7
        %s198 = smul.addr %s197, 18
        %s199 = smul.addr %s198, 4
        %s200 = scalar_lea.vmem %s0, %s199
        %s201 = smul.u32 4, %s18
      $region32: #{resblock_forward.3} parent=27 // pred_fallthru
        _
    $region28: #{resblock_forward.3} parent=5 // pred_fallthru
      _
    %p202 = scmp.le.s32.totalorder 1, %s10
    %p203 = scmp.lt.s32.totalorder %s10, 3
    %p204 = pnand %p202, %p203
    %p205 = pneg %p204
    // Predicated region
    $region33: #{resblock_forward.3} parent=5 // pred_check
      _
    $region34: #{resblock_forward.3} parent=5 // pred_check_branch
      %207 = sbr.rel (%p204) target = $region36
    $region35: #{resblock_forward.3} parent=5 // pred_region
      %s208 = ssub.s32 %s10, 1
      %s209 = smul.u32 4, %s20
      %p210 = scmp.lt.s32.totalorder %s209, 7
      %s211 = scalar_select %p210, %s209, 7
      %s212 = smul.addr %s211, 18
      %s213 = smul.addr %s212, 4
      %s214 = scalar_lea.vmem %s0, %s213
      %p215 = pneg %p48
      %p216 = pneg %p45
      %p217 = scmp.lt.s32.totalorder %s19, 0
      %s218 = scalar_select %p217, %s19, 0
      %s219 = smul.addr %s218, 2
      %s220 = scalar_lea.vmem %s1, %s219
      %p221 = pneg %p74
      %p222 = pneg %p71
      %p223 = scmp.lt.s32.totalorder %s19, 0
      %s224 = scalar_select %p223, %s19, 0
      %s225 = scalar_lea.vmem %s2, %s224
      %p226 = pneg %p100
      %p227 = pneg %p97
      %p228 = scmp.lt.s32.totalorder %s19, 0
      %s229 = scalar_select %p228, %s19, 0
      %s230 = scalar_lea.vmem %s3, %s229
      %p231 = pneg %p126
      %p232 = pneg %p123
      %p233 = pneg %p154
      %p234 = pneg %p151
      %p235 = scmp.lt.s32.totalorder %s20, 1
      %s236 = scalar_select %p235, %s20, 1
      %p237 = scmp.lt.s32.totalorder %s19, 0
      %s238 = scalar_select %p237, %s19, 0
      %s239 = smul.addr %s236, 8
      %s240 = sadd.s32 %s238, %s239
      %s241 = smul.addr %s240, 8
      %s242 = scalar_lea.vmem %s4, %s241
      %s243 = smul.u32 4, %s20
      %p244 = scmp.lt.s32.totalorder %s243, 7
      %s245 = scalar_select %p244, %s243, 7
      %s246 = smul.addr %s245, 18
      %s247 = smul.addr %s246, 4
      %s248 = scalar_lea.vmem %s0, %s247
      %s249 = smul.u32 4, %s20
      %p250 = scmp.lt.s32.totalorder %s19, 0
      %s251 = scalar_select %p250, %s19, 0
      %s252 = smul.addr %s251, 2
      %s253 = scalar_lea.vmem %s1, %s252
      %p254 = scmp.lt.s32.totalorder %s19, 0
      %s255 = scalar_select %p254, %s19, 0
      %s256 = scalar_lea.vmem %s2, %s255
      %p257 = scmp.lt.s32.totalorder %s19, 0
      %s258 = scalar_select %p257, %s19, 0
      %s259 = scalar_lea.vmem %s3, %s258
      %p260 = scmp.lt.s32.totalorder %s20, 1
      %s261 = scalar_select %p260, %s20, 1
      %p262 = scmp.lt.s32.totalorder %s19, 0
      %s263 = scalar_select %p262, %s19, 0
      %s264 = smul.addr %s261, 8
      %s265 = sadd.s32 %s263, %s264
      %s266 = smul.addr %s265, 8
      %s267 = scalar_lea.vmem %s4, %s266
      %v269 = vld [vmem:[%s248] sm:$0xf]
      %v270 = vld [vmem:[%s248 + $0x8] sm:$0xf]
      %v271 = vld [vmem:[%s248 + $0x10] sm:$0xf]
      %v272 = vld [vmem:[%s248 + $0x18] sm:$0xf]
      %v273 = vld [vmem:[%s248 + $0x20] sm:$0xf]
      %v274 = vld [vmem:[%s248 + $0x28] sm:$0xf]
      %v275 = vld [vmem:[%s248 + $0x30] sm:$0xf]
      %v276 = vld [vmem:[%s248 + $0x38] sm:$0xf]
      %v277 = vld [vmem:[%s253] sm:$0x3]
      %s278 = scalar_lea.vmem %s248, 72
      %v279 = vld [vmem:[%s278] sm:$0xf]
      %v280 = vld [vmem:[%s278 + $0x8] sm:$0xf]
      %v281 = vld [vmem:[%s278 + $0x10] sm:$0xf]
      %v282 = vld [vmem:[%s278 + $0x18] sm:$0xf]
      %v283 = vld [vmem:[%s278 + $0x20] sm:$0xf]
      %v284 = vld [vmem:[%s278 + $0x28] sm:$0xf]
      %v285 = vld [vmem:[%s278 + $0x30] sm:$0xf]
      %v286 = vld [vmem:[%s278 + $0x38] sm:$0xf]
      %s287 = scalar_lea.vmem %s253, 2
      %v288 = vld [vmem:[%s287] sm:$0x3]
      %v297 = vunpack.c.l.b16 %v279
      %v298 = vunpack.c.l.b16 %v280
      %v299 = vunpack.c.l.b16 %v281
      %v300 = vunpack.c.l.b16 %v282
      %v301 = vunpack.c.l.b16 %v283
      %v302 = vunpack.c.l.b16 %v284
      %v303 = vunpack.c.l.b16 %v285
      %v304 = vunpack.c.l.b16 %v286
      %v305 = vpack.c.b16 %v298, %v297
      %v306 = vpack.c.b16 %v300, %v299
      %v307 = vpack.c.b16 %v302, %v301
      %v308 = vpack.c.b16 %v304, %v303
      %vm309 = vcmask 31744
      %v311 = vsel %vm309, %v305, 0
      %v314 = vsel %vm309, %v306, 0
      %v317 = vsel %vm309, %v307, 0
      %v320 = vsel %vm309, %v308, 0
      %vm322 = vcmask 1041408
      %v324 = vsel %vm322, %v288, 0
      %326 = vmatpush.bf16.msra.mxu0 0
      %327 = vmatpush.bf16.msra.mxu0 0
      %328 = vmatpush.bf16.msra.mxu0 0
      %329 = vmatpush.bf16.msra.mxu0 0
      %330 = vmatpush.bf16.msra.mxu0 0
      %331 = vmatpush.bf16.msra.mxu0 0
      %332 = vmatpush.bf16.msra.mxu0 0
      %333 = vmatpush.bf16.msra.mxu0 %v324
      %334 = vmatmul.bf16.gmra.mxu0 %v311
      %v335 = vpop.f32.mrf.mxu0
      %v336 = vadd.f32 0.0, %v335
      %v337 = vpop.f32.mrf.mxu0
      %v338 = vadd.f32 0.0, %v337
      %339 = vmatmul.bf16.gmra.mxu0 %v314
      %v340 = vpop.f32.mrf.mxu0
      %v341 = vadd.f32 0.0, %v340
      %v342 = vpop.f32.mrf.mxu0
      %v343 = vadd.f32 0.0, %v342
      %344 = vmatmul.bf16.gmra.mxu0 %v317
      %v345 = vpop.f32.mrf.mxu0
      %v346 = vadd.f32 0.0, %v345
      %v347 = vpop.f32.mrf.mxu0
      %v348 = vadd.f32 0.0, %v347
      %349 = vmatmul.bf16.gmra.mxu0 %v320
      %v350 = vpop.f32.mrf.mxu0
      %v351 = vadd.f32 0.0, %v350
      %v352 = vpop.f32.mrf.mxu0
      %v353 = vadd.f32 0.0, %v352
      %354 = vdwg.mxu0
      %v363 = vunpack.c.l.b16 %v269
      %v364 = vunpack.c.l.b16 %v270
      %v365 = vunpack.c.l.b16 %v271
      %v366 = vunpack.c.l.b16 %v272
      %v367 = vunpack.c.l.b16 %v273
      %v368 = vunpack.c.l.b16 %v274
      %v369 = vunpack.c.l.b16 %v275
      %v370 = vunpack.c.l.b16 %v276
      %v371 = vpack.c.b16 %v364, %v363
      %v372 = vpack.c.b16 %v366, %v365
      %v373 = vpack.c.b16 %v368, %v367
      %v374 = vpack.c.b16 %v370, %v369
      %v376 = vsel %vm309, %v371, 0
      %v379 = vsel %vm309, %v372, 0
      %v382 = vsel %vm309, %v373, 0
      %v385 = vsel %vm309, %v374, 0
      %v388 = vsel %vm322, %v277, 0
      %390 = vmatpush.bf16.msra.mxu0 0
      %391 = vmatpush.bf16.msra.mxu0 0
      %392 = vmatpush.bf16.msra.mxu0 0
      %393 = vmatpush.bf16.msra.mxu0 0
      %394 = vmatpush.bf16.msra.mxu0 0
      %395 = vmatpush.bf16.msra.mxu0 0
      %396 = vmatpush.bf16.msra.mxu0 0
      %397 = vmatpush.bf16.msra.mxu0 %v388
      %398 = vmatmul.bf16.gmra.mxu0 %v376
      %v399 = vpop.f32.mrf.mxu0
      %v400 = vadd.f32 %v336, %v399
      %v401 = vpop.f32.mrf.mxu0
      %v402 = vadd.f32 %v338, %v401
      %403 = vmatmul.bf16.gmra.mxu0 %v379
      %v404 = vpop.f32.mrf.mxu0
      %v405 = vadd.f32 %v341, %v404
      %v406 = vpop.f32.mrf.mxu0
      %v407 = vadd.f32 %v343, %v406
      %408 = vmatmul.bf16.gmra.mxu0 %v382
      %v409 = vpop.f32.mrf.mxu0
      %v410 = vadd.f32 %v346, %v409
      %v411 = vpop.f32.mrf.mxu0
      %v412 = vadd.f32 %v348, %v411
      %413 = vmatmul.bf16.gmra.mxu0 %v385
      %v414 = vpop.f32.mrf.mxu0
      %v415 = vadd.f32 %v351, %v414
      %v416 = vpop.f32.mrf.mxu0
      %v417 = vadd.f32 %v353, %v416
      %418 = vdwg.mxu0
      %v419 = vld [vmem:[%s248] sm:$0xf]
      %v420 = vld [vmem:[%s248 + $0x4] sm:$0x1]
      %v421 = vld [vmem:[%s248 + $0x8] sm:$0xf]
      %v422 = vld [vmem:[%s248 + $0xc] sm:$0x1]
      %v423 = vld [vmem:[%s248 + $0x10] sm:$0xf]
      %v424 = vld [vmem:[%s248 + $0x14] sm:$0x1]
      %v425 = vld [vmem:[%s248 + $0x18] sm:$0xf]
      %v426 = vld [vmem:[%s248 + $0x1c] sm:$0x1]
      %v427 = vld [vmem:[%s248 + $0x20] sm:$0xf]
      %v428 = vld [vmem:[%s248 + $0x24] sm:$0x1]
      %v429 = vld [vmem:[%s248 + $0x28] sm:$0xf]
      %v430 = vld [vmem:[%s248 + $0x2c] sm:$0x1]
      %v431 = vld [vmem:[%s248 + $0x30] sm:$0xf]
      %v432 = vld [vmem:[%s248 + $0x34] sm:$0x1]
      %v433 = vld [vmem:[%s248 + $0x38] sm:$0xf]
      %v434 = vld [vmem:[%s248 + $0x3c] sm:$0x1]
      %vm435 = vsmask.f32 3328
      %vm436 = vsmask.f32 7440
      %vm437 = vmor %vm435, %vm436
      %v439 = vshrl.u32 %v419, 16
      %v441 = vrot.slane %v439, 4
      %v442 = vshll.u32 %v419, 16
      %v444 = vrot.slane %v442, 5
      %v445 = vor.u32 %v441, %v444
      %v446 = vrot.slane %v445, 4
      %v448 = vshll.u32 %v420, 16
      %v450 = vrot.slane %v448, 5
      %v451 = vsel %vm437, %v446, %v450
      %v453 = vshrl.u32 %v421, 16
      %v455 = vrot.slane %v453, 4
      %v456 = vshll.u32 %v421, 16
      %v458 = vrot.slane %v456, 5
      %v459 = vor.u32 %v455, %v458
      %v460 = vrot.slane %v459, 4
      %v462 = vshll.u32 %v422, 16
      %v464 = vrot.slane %v462, 5
      %v465 = vsel %vm437, %v460, %v464
      %v467 = vshrl.u32 %v423, 16
      %v469 = vrot.slane %v467, 4
      %v470 = vshll.u32 %v423, 16
      %v472 = vrot.slane %v470, 5
      %v473 = vor.u32 %v469, %v472
      %v474 = vrot.slane %v473, 4
      %v476 = vshll.u32 %v424, 16
      %v478 = vrot.slane %v476, 5
      %v479 = vsel %vm437, %v474, %v478
      %v481 = vshrl.u32 %v425, 16
      %v483 = vrot.slane %v481, 4
      %v484 = vshll.u32 %v425, 16
      %v486 = vrot.slane %v484, 5
      %v487 = vor.u32 %v483, %v486
      %v488 = vrot.slane %v487, 4
      %v490 = vshll.u32 %v426, 16
      %v492 = vrot.slane %v490, 5
      %v493 = vsel %vm437, %v488, %v492
      %v495 = vshrl.u32 %v427, 16
      %v497 = vrot.slane %v495, 4
      %v498 = vshll.u32 %v427, 16
      %v500 = vrot.slane %v498, 5
      %v501 = vor.u32 %v497, %v500
      %v502 = vrot.slane %v501, 4
      %v504 = vshll.u32 %v428, 16
      %v506 = vrot.slane %v504, 5
      %v507 = vsel %vm437, %v502, %v506
      %v509 = vshrl.u32 %v429, 16
      %v511 = vrot.slane %v509, 4
      %v512 = vshll.u32 %v429, 16
      %v514 = vrot.slane %v512, 5
      %v515 = vor.u32 %v511, %v514
      %v516 = vrot.slane %v515, 4
      %v518 = vshll.u32 %v430, 16
      %v520 = vrot.slane %v518, 5
      %v521 = vsel %vm437, %v516, %v520
      %v523 = vshrl.u32 %v431, 16
      %v525 = vrot.slane %v523, 4
      %v526 = vshll.u32 %v431, 16
      %v528 = vrot.slane %v526, 5
      %v529 = vor.u32 %v525, %v528
      %v530 = vrot.slane %v529, 4
      %v532 = vshll.u32 %v432, 16
      %v534 = vrot.slane %v532, 5
      %v535 = vsel %vm437, %v530, %v534
      %v537 = vshrl.u32 %v433, 16
      %v539 = vrot.slane %v537, 4
      %v540 = vshll.u32 %v433, 16
      %v542 = vrot.slane %v540, 5
      %v543 = vor.u32 %v539, %v542
      %v544 = vrot.slane %v543, 4
      %v546 = vshll.u32 %v434, 16
      %v548 = vrot.slane %v546, 5
      %v549 = vsel %vm437, %v544, %v548
      %s550 = scalar_lea.vmem %s253, 4
      %v551 = vld [vmem:[%s550] sm:$0x3]
      %v552 = vunpack.c.l.b16 %v451
      %v553 = vunpack.c.l.b16 %v465
      %v554 = vunpack.c.l.b16 %v479
      %v555 = vunpack.c.l.b16 %v493
      %v556 = vunpack.c.l.b16 %v507
      %v557 = vunpack.c.l.b16 %v521
      %v558 = vunpack.c.l.b16 %v535
      %v559 = vunpack.c.l.b16 %v549
      %v560 = vpack.c.b16 %v553, %v552
      %v561 = vpack.c.b16 %v555, %v554
      %v562 = vpack.c.b16 %v557, %v556
      %v563 = vpack.c.b16 %v559, %v558
      %v565 = vsel %vm309, %v560, 0
      %v568 = vsel %vm309, %v561, 0
      %v571 = vsel %vm309, %v562, 0
      %v574 = vsel %vm309, %v563, 0
      %v577 = vsel %vm322, %v551, 0
      %579 = vmatpush.bf16.msra.mxu0 0
      %580 = vmatpush.bf16.msra.mxu0 0
      %581 = vmatpush.bf16.msra.mxu0 0
      %582 = vmatpush.bf16.msra.mxu0 0
      %583 = vmatpush.bf16.msra.mxu0 0
      %584 = vmatpush.bf16.msra.mxu0 0
      %585 = vmatpush.bf16.msra.mxu0 0
      %586 = vmatpush.bf16.msra.mxu0 %v577
      %587 = vmatmul.bf16.gmra.mxu0 %v565
      %v588 = vpop.f32.mrf.mxu0
      %v589 = vadd.f32 0.0, %v588
      %v590 = vpop.f32.mrf.mxu0
      %v591 = vadd.f32 0.0, %v590
      %592 = vmatmul.bf16.gmra.mxu0 %v568
      %v593 = vpop.f32.mrf.mxu0
      %v594 = vadd.f32 0.0, %v593
      %v595 = vpop.f32.mrf.mxu0
      %v596 = vadd.f32 0.0, %v595
      %597 = vmatmul.bf16.gmra.mxu0 %v571
      %v598 = vpop.f32.mrf.mxu0
      %v599 = vadd.f32 0.0, %v598
      %v600 = vpop.f32.mrf.mxu0
      %v601 = vadd.f32 0.0, %v600
      %602 = vmatmul.bf16.gmra.mxu0 %v574
      %v603 = vpop.f32.mrf.mxu0
      %v604 = vadd.f32 0.0, %v603
      %v605 = vpop.f32.mrf.mxu0
      %v606 = vadd.f32 0.0, %v605
      %607 = vdwg.mxu0
      %v608 = vadd.f32 %v400, %v589
      %v609 = vadd.f32 %v402, %v591
      %v610 = vadd.f32 %v405, %v594
      %v611 = vadd.f32 %v407, %v596
      %v612 = vadd.f32 %v410, %v599
      %v613 = vadd.f32 %v412, %v601
      %v614 = vadd.f32 %v415, %v604
      %v615 = vadd.f32 %v417, %v606
      %s616 = scalar_lea.vmem %s248, 144
      %v617 = vld [vmem:[%s616] sm:$0xf]
      %v618 = vld [vmem:[%s616 + $0x8] sm:$0xf]
      %v619 = vld [vmem:[%s616 + $0x10] sm:$0xf]
      %v620 = vld [vmem:[%s616 + $0x18] sm:$0xf]
      %v621 = vld [vmem:[%s616 + $0x20] sm:$0xf]
      %v622 = vld [vmem:[%s616 + $0x28] sm:$0xf]
      %v623 = vld [vmem:[%s616 + $0x30] sm:$0xf]
      %v624 = vld [vmem:[%s616 + $0x38] sm:$0xf]
      %s625 = scalar_lea.vmem %s253, 6
      %v626 = vld [vmem:[%s625] sm:$0x3]
      %v635 = vunpack.c.l.b16 %v617
      %v636 = vunpack.c.l.b16 %v618
      %v637 = vunpack.c.l.b16 %v619
      %v638 = vunpack.c.l.b16 %v620
      %v639 = vunpack.c.l.b16 %v621
      %v640 = vunpack.c.l.b16 %v622
      %v641 = vunpack.c.l.b16 %v623
      %v642 = vunpack.c.l.b16 %v624
      %v643 = vpack.c.b16 %v636, %v635
      %v644 = vpack.c.b16 %v638, %v637
      %v645 = vpack.c.b16 %v640, %v639
      %v646 = vpack.c.b16 %v642, %v641
      %v648 = vsel %vm309, %v643, 0
      %v651 = vsel %vm309, %v644, 0
      %v654 = vsel %vm309, %v645, 0
      %v657 = vsel %vm309, %v646, 0
      %v660 = vsel %vm322, %v626, 0
      %662 = vmatpush.bf16.msra.mxu0 0
      %663 = vmatpush.bf16.msra.mxu0 0
      %664 = vmatpush.bf16.msra.mxu0 0
      %665 = vmatpush.bf16.msra.mxu0 0
      %666 = vmatpush.bf16.msra.mxu0 0
      %667 = vmatpush.bf16.msra.mxu0 0
      %668 = vmatpush.bf16.msra.mxu0 0
      %669 = vmatpush.bf16.msra.mxu0 %v660
      %670 = vmatmul.bf16.gmra.mxu0 %v648
      %v671 = vpop.f32.mrf.mxu0
      %v672 = vadd.f32 0.0, %v671
      %v673 = vpop.f32.mrf.mxu0
      %v674 = vadd.f32 0.0, %v673
      %675 = vmatmul.bf16.gmra.mxu0 %v651
      %v676 = vpop.f32.mrf.mxu0
      %v677 = vadd.f32 0.0, %v676
      %v678 = vpop.f32.mrf.mxu0
      %v679 = vadd.f32 0.0, %v678
      %680 = vmatmul.bf16.gmra.mxu0 %v654
      %v681 = vpop.f32.mrf.mxu0
      %v682 = vadd.f32 0.0, %v681
      %v683 = vpop.f32.mrf.mxu0
      %v684 = vadd.f32 0.0, %v683
      %685 = vmatmul.bf16.gmra.mxu0 %v657
      %v686 = vpop.f32.mrf.mxu0
      %v687 = vadd.f32 0.0, %v686
      %v688 = vpop.f32.mrf.mxu0
      %v689 = vadd.f32 0.0, %v688
      %690 = vdwg.mxu0
      %v691 = vadd.f32 %v608, %v672
      %v692 = vadd.f32 %v609, %v674
      %v693 = vadd.f32 %v610, %v677
      %v694 = vadd.f32 %v611, %v679
      %v695 = vadd.f32 %v612, %v682
      %v696 = vadd.f32 %v613, %v684
      %v697 = vadd.f32 %v614, %v687
      %v698 = vadd.f32 %v615, %v689
      %s699 = scalar_lea.vmem %s248, 216
      %v700 = vld [vmem:[%s699] sm:$0xf]
      %v701 = vld [vmem:[%s699 + $0x8] sm:$0xf]
      %v702 = vld [vmem:[%s699 + $0x10] sm:$0xf]
      %v703 = vld [vmem:[%s699 + $0x18] sm:$0xf]
      %v704 = vld [vmem:[%s699 + $0x20] sm:$0xf]
      %v705 = vld [vmem:[%s699 + $0x28] sm:$0xf]
      %v706 = vld [vmem:[%s699 + $0x30] sm:$0xf]
      %v707 = vld [vmem:[%s699 + $0x38] sm:$0xf]
      %s708 = scalar_lea.vmem %s253, 8
      %v709 = vld [vmem:[%s708] sm:$0x3]
      %v718 = vunpack.c.l.b16 %v700
      %v719 = vunpack.c.l.b16 %v701
      %v720 = vunpack.c.l.b16 %v702
      %v721 = vunpack.c.l.b16 %v703
      %v722 = vunpack.c.l.b16 %v704
      %v723 = vunpack.c.l.b16 %v705
      %v724 = vunpack.c.l.b16 %v706
      %v725 = vunpack.c.l.b16 %v707
      %v726 = vpack.c.b16 %v719, %v718
      %v727 = vpack.c.b16 %v721, %v720
      %v728 = vpack.c.b16 %v723, %v722
      %v729 = vpack.c.b16 %v725, %v724
      %v731 = vsel %vm309, %v726, 0
      %v734 = vsel %vm309, %v727, 0
      %v737 = vsel %vm309, %v728, 0
      %v740 = vsel %vm309, %v729, 0
      %v743 = vsel %vm322, %v709, 0
      %745 = vmatpush.bf16.msra.mxu0 0
      %746 = vmatpush.bf16.msra.mxu0 0
      %747 = vmatpush.bf16.msra.mxu0 0
      %748 = vmatpush.bf16.msra.mxu0 0
      %749 = vmatpush.bf16.msra.mxu0 0
      %750 = vmatpush.bf16.msra.mxu0 0
      %751 = vmatpush.bf16.msra.mxu0 0
      %752 = vmatpush.bf16.msra.mxu0 %v743
      %753 = vmatmul.bf16.gmra.mxu0 %v731
      %v754 = vpop.f32.mrf.mxu0
      %v755 = vadd.f32 0.0, %v754
      %v756 = vpop.f32.mrf.mxu0
      %v757 = vadd.f32 0.0, %v756
      %758 = vmatmul.bf16.gmra.mxu0 %v734
      %v759 = vpop.f32.mrf.mxu0
      %v760 = vadd.f32 0.0, %v759
      %v761 = vpop.f32.mrf.mxu0
      %v762 = vadd.f32 0.0, %v761
      %763 = vmatmul.bf16.gmra.mxu0 %v737
      %v764 = vpop.f32.mrf.mxu0
      %v765 = vadd.f32 0.0, %v764
      %v766 = vpop.f32.mrf.mxu0
      %v767 = vadd.f32 0.0, %v766
      %768 = vmatmul.bf16.gmra.mxu0 %v740
      %v769 = vpop.f32.mrf.mxu0
      %v770 = vadd.f32 0.0, %v769
      %v771 = vpop.f32.mrf.mxu0
      %v772 = vadd.f32 0.0, %v771
      %773 = vdwg.mxu0
      %v774 = vadd.f32 %v691, %v755
      %v775 = vadd.f32 %v692, %v757
      %v776 = vadd.f32 %v693, %v760
      %v777 = vadd.f32 %v694, %v762
      %v778 = vadd.f32 %v695, %v765
      %v779 = vadd.f32 %v696, %v767
      %v780 = vadd.f32 %v697, %v770
      %v781 = vadd.f32 %v698, %v772
      %v782 = vld [vmem:[%s616] sm:$0xf]
      %v783 = vld [vmem:[%s616 + $0x4] sm:$0x1]
      %v784 = vld [vmem:[%s616 + $0x8] sm:$0xf]
      %v785 = vld [vmem:[%s616 + $0xc] sm:$0x1]
      %v786 = vld [vmem:[%s616 + $0x10] sm:$0xf]
      %v787 = vld [vmem:[%s616 + $0x14] sm:$0x1]
      %v788 = vld [vmem:[%s616 + $0x18] sm:$0xf]
      %v789 = vld [vmem:[%s616 + $0x1c] sm:$0x1]
      %v790 = vld [vmem:[%s616 + $0x20] sm:$0xf]
      %v791 = vld [vmem:[%s616 + $0x24] sm:$0x1]
      %v792 = vld [vmem:[%s616 + $0x28] sm:$0xf]
      %v793 = vld [vmem:[%s616 + $0x2c] sm:$0x1]
      %v794 = vld [vmem:[%s616 + $0x30] sm:$0xf]
      %v795 = vld [vmem:[%s616 + $0x34] sm:$0x1]
      %v796 = vld [vmem:[%s616 + $0x38] sm:$0xf]
      %v797 = vld [vmem:[%s616 + $0x3c] sm:$0x1]
      %v799 = vshrl.u32 %v782, 16
      %v801 = vrot.slane %v799, 4
      %v802 = vshll.u32 %v782, 16
      %v804 = vrot.slane %v802, 5
      %v805 = vor.u32 %v801, %v804
      %v806 = vrot.slane %v805, 4
      %v808 = vshll.u32 %v783, 16
      %v810 = vrot.slane %v808, 5
      %v811 = vsel %vm437, %v806, %v810
      %v813 = vshrl.u32 %v784, 16
      %v815 = vrot.slane %v813, 4
      %v816 = vshll.u32 %v784, 16
      %v818 = vrot.slane %v816, 5
      %v819 = vor.u32 %v815, %v818
      %v820 = vrot.slane %v819, 4
      %v822 = vshll.u32 %v785, 16
      %v824 = vrot.slane %v822, 5
      %v825 = vsel %vm437, %v820, %v824
      %v827 = vshrl.u32 %v786, 16
      %v829 = vrot.slane %v827, 4
      %v830 = vshll.u32 %v786, 16
      %v832 = vrot.slane %v830, 5
      %v833 = vor.u32 %v829, %v832
      %v834 = vrot.slane %v833, 4
      %v836 = vshll.u32 %v787, 16
      %v838 = vrot.slane %v836, 5
      %v839 = vsel %vm437, %v834, %v838
      %v841 = vshrl.u32 %v788, 16
      %v843 = vrot.slane %v841, 4
      %v844 = vshll.u32 %v788, 16
      %v846 = vrot.slane %v844, 5
      %v847 = vor.u32 %v843, %v846
      %v848 = vrot.slane %v847, 4
      %v850 = vshll.u32 %v789, 16
      %v852 = vrot.slane %v850, 5
      %v853 = vsel %vm437, %v848, %v852
      %v855 = vshrl.u32 %v790, 16
      %v857 = vrot.slane %v855, 4
      %v858 = vshll.u32 %v790, 16
      %v860 = vrot.slane %v858, 5
      %v861 = vor.u32 %v857, %v860
      %v862 = vrot.slane %v861, 4
      %v864 = vshll.u32 %v791, 16
      %v866 = vrot.slane %v864, 5
      %v867 = vsel %vm437, %v862, %v866
      %v869 = vshrl.u32 %v792, 16
      %v871 = vrot.slane %v869, 4
      %v872 = vshll.u32 %v792, 16
      %v874 = vrot.slane %v872, 5
      %v875 = vor.u32 %v871, %v874
      %v876 = vrot.slane %v875, 4
      %v878 = vshll.u32 %v793, 16
      %v880 = vrot.slane %v878, 5
      %v881 = vsel %vm437, %v876, %v880
      %v883 = vshrl.u32 %v794, 16
      %v885 = vrot.slane %v883, 4
      %v886 = vshll.u32 %v794, 16
      %v888 = vrot.slane %v886, 5
      %v889 = vor.u32 %v885, %v888
      %v890 = vrot.slane %v889, 4
      %v892 = vshll.u32 %v795, 16
      %v894 = vrot.slane %v892, 5
      %v895 = vsel %vm437, %v890, %v894
      %v897 = vshrl.u32 %v796, 16
      %v899 = vrot.slane %v897, 4
      %v900 = vshll.u32 %v796, 16
      %v902 = vrot.slane %v900, 5
      %v903 = vor.u32 %v899, %v902
      %v904 = vrot.slane %v903, 4
      %v906 = vshll.u32 %v797, 16
      %v908 = vrot.slane %v906, 5
      %v909 = vsel %vm437, %v904, %v908
      %s910 = scalar_lea.vmem %s253, 10
      %v911 = vld [vmem:[%s910] sm:$0x3]
      %v912 = vunpack.c.l.b16 %v811
      %v913 = vunpack.c.l.b16 %v825
      %v914 = vunpack.c.l.b16 %v839
      %v915 = vunpack.c.l.b16 %v853
      %v916 = vunpack.c.l.b16 %v867
      %v917 = vunpack.c.l.b16 %v881
      %v918 = vunpack.c.l.b16 %v895
      %v919 = vunpack.c.l.b16 %v909
      %v920 = vpack.c.b16 %v913, %v912
      %v921 = vpack.c.b16 %v915, %v914
      %v922 = vpack.c.b16 %v917, %v916
      %v923 = vpack.c.b16 %v919, %v918
      %v925 = vsel %vm309, %v920, 0
      %v928 = vsel %vm309, %v921, 0
      %v931 = vsel %vm309, %v922, 0
      %v934 = vsel %vm309, %v923, 0
      %v937 = vsel %vm322, %v911, 0
      %939 = vmatpush.bf16.msra.mxu0 0
      %940 = vmatpush.bf16.msra.mxu0 0
      %941 = vmatpush.bf16.msra.mxu0 0
      %942 = vmatpush.bf16.msra.mxu0 0
      %943 = vmatpush.bf16.msra.mxu0 0
      %944 = vmatpush.bf16.msra.mxu0 0
      %945 = vmatpush.bf16.msra.mxu0 0
      %946 = vmatpush.bf16.msra.mxu0 %v937
      %947 = vmatmul.bf16.gmra.mxu0 %v925
      %v948 = vpop.f32.mrf.mxu0
      %v949 = vadd.f32 0.0, %v948
      %v950 = vpop.f32.mrf.mxu0
      %v951 = vadd.f32 0.0, %v950
      %952 = vmatmul.bf16.gmra.mxu0 %v928
      %v953 = vpop.f32.mrf.mxu0
      %v954 = vadd.f32 0.0, %v953
      %v955 = vpop.f32.mrf.mxu0
      %v956 = vadd.f32 0.0, %v955
      %957 = vmatmul.bf16.gmra.mxu0 %v931
      %v958 = vpop.f32.mrf.mxu0
      %v959 = vadd.f32 0.0, %v958
      %v960 = vpop.f32.mrf.mxu0
      %v961 = vadd.f32 0.0, %v960
      %962 = vmatmul.bf16.gmra.mxu0 %v934
      %v963 = vpop.f32.mrf.mxu0
      %v964 = vadd.f32 0.0, %v963
      %v965 = vpop.f32.mrf.mxu0
      %v966 = vadd.f32 0.0, %v965
      %967 = vdwg.mxu0
      %v968 = vadd.f32 %v774, %v949
      %v969 = vadd.f32 %v775, %v951
      %v970 = vadd.f32 %v776, %v954
      %v971 = vadd.f32 %v777, %v956
      %v972 = vadd.f32 %v778, %v959
      %v973 = vadd.f32 %v779, %v961
      %v974 = vadd.f32 %v780, %v964
      %v975 = vadd.f32 %v781, %v966
      %s976 = scalar_lea.vmem %s248, 8
      %v977 = vld [vmem:[%s976] sm:$0xf]
      %v978 = vld [vmem:[%s976 + $0x8] sm:$0xf]
      %v979 = vld [vmem:[%s976 + $0x10] sm:$0xf]
      %v980 = vld [vmem:[%s976 + $0x18] sm:$0xf]
      %v981 = vld [vmem:[%s976 + $0x20] sm:$0xf]
      %v982 = vld [vmem:[%s976 + $0x28] sm:$0xf]
      %v983 = vld [vmem:[%s976 + $0x30] sm:$0xf]
      %v984 = vld [vmem:[%s976 + $0x38] sm:$0xf]
      %s985 = scalar_lea.vmem %s253, 12
      %v986 = vld [vmem:[%s985] sm:$0x3]
      %v995 = vunpack.c.l.b16 %v977
      %v996 = vunpack.c.l.b16 %v978
      %v997 = vunpack.c.l.b16 %v979
      %v998 = vunpack.c.l.b16 %v980
      %v999 = vunpack.c.l.b16 %v981
      %v1000 = vunpack.c.l.b16 %v982
      %v1001 = vunpack.c.l.b16 %v983
      %v1002 = vunpack.c.l.b16 %v984
      %v1003 = vpack.c.b16 %v996, %v995
      %v1004 = vpack.c.b16 %v998, %v997
      %v1005 = vpack.c.b16 %v1000, %v999
      %v1006 = vpack.c.b16 %v1002, %v1001
      %v1008 = vsel %vm309, %v1003, 0
      %v1011 = vsel %vm309, %v1004, 0
      %v1014 = vsel %vm309, %v1005, 0
      %v1017 = vsel %vm309, %v1006, 0
      %v1020 = vsel %vm322, %v986, 0
      %1022 = vmatpush.bf16.msra.mxu0 0
      %1023 = vmatpush.bf16.msra.mxu0 0
      %1024 = vmatpush.bf16.msra.mxu0 0
      %1025 = vmatpush.bf16.msra.mxu0 0
      %1026 = vmatpush.bf16.msra.mxu0 0
      %1027 = vmatpush.bf16.msra.mxu0 0
      %1028 = vmatpush.bf16.msra.mxu0 0
      %1029 = vmatpush.bf16.msra.mxu0 %v1020
      %1030 = vmatmul.bf16.gmra.mxu0 %v1008
      %v1031 = vpop.f32.mrf.mxu0
      %v1032 = vadd.f32 0.0, %v1031
      %v1033 = vpop.f32.mrf.mxu0
      %v1034 = vadd.f32 0.0, %v1033
      %1035 = vmatmul.bf16.gmra.mxu0 %v1011
      %v1036 = vpop.f32.mrf.mxu0
      %v1037 = vadd.f32 0.0, %v1036
      %v1038 = vpop.f32.mrf.mxu0
      %v1039 = vadd.f32 0.0, %v1038
      %1040 = vmatmul.bf16.gmra.mxu0 %v1014
      %v1041 = vpop.f32.mrf.mxu0
      %v1042 = vadd.f32 0.0, %v1041
      %v1043 = vpop.f32.mrf.mxu0
      %v1044 = vadd.f32 0.0, %v1043
      %1045 = vmatmul.bf16.gmra.mxu0 %v1017
      %v1046 = vpop.f32.mrf.mxu0
      %v1047 = vadd.f32 0.0, %v1046
      %v1048 = vpop.f32.mrf.mxu0
      %v1049 = vadd.f32 0.0, %v1048
      %1050 = vdwg.mxu0
      %v1051 = vadd.f32 %v968, %v1032
      %v1052 = vadd.f32 %v969, %v1034
      %v1053 = vadd.f32 %v970, %v1037
      %v1054 = vadd.f32 %v971, %v1039
      %v1055 = vadd.f32 %v972, %v1042
      %v1056 = vadd.f32 %v973, %v1044
      %v1057 = vadd.f32 %v974, %v1047
      %v1058 = vadd.f32 %v975, %v1049
      %s1059 = scalar_lea.vmem %s248, 80
      %v1060 = vld [vmem:[%s1059] sm:$0xf]
      %v1061 = vld [vmem:[%s1059 + $0x8] sm:$0xf]
      %v1062 = vld [vmem:[%s1059 + $0x10] sm:$0xf]
      %v1063 = vld [vmem:[%s1059 + $0x18] sm:$0xf]
      %v1064 = vld [vmem:[%s1059 + $0x20] sm:$0xf]
      %v1065 = vld [vmem:[%s1059 + $0x28] sm:$0xf]
      %v1066 = vld [vmem:[%s1059 + $0x30] sm:$0xf]
      %v1067 = vld [vmem:[%s1059 + $0x38] sm:$0xf]
      %s1068 = scalar_lea.vmem %s253, 14
      %v1069 = vld [vmem:[%s1068] sm:$0x3]
      %v1078 = vunpack.c.l.b16 %v1060
      %v1079 = vunpack.c.l.b16 %v1061
      %v1080 = vunpack.c.l.b16 %v1062
      %v1081 = vunpack.c.l.b16 %v1063
      %v1082 = vunpack.c.l.b16 %v1064
      %v1083 = vunpack.c.l.b16 %v1065
      %v1084 = vunpack.c.l.b16 %v1066
      %v1085 = vunpack.c.l.b16 %v1067
      %v1086 = vpack.c.b16 %v1079, %v1078
      %v1087 = vpack.c.b16 %v1081, %v1080
      %v1088 = vpack.c.b16 %v1083, %v1082
      %v1089 = vpack.c.b16 %v1085, %v1084
      %v1091 = vsel %vm309, %v1086, 0
      %v1094 = vsel %vm309, %v1087, 0
      %v1097 = vsel %vm309, %v1088, 0
      %v1100 = vsel %vm309, %v1089, 0
      %v1103 = vsel %vm322, %v1069, 0
      %1105 = vmatpush.bf16.msra.mxu0 0
      %1106 = vmatpush.bf16.msra.mxu0 0
      %1107 = vmatpush.bf16.msra.mxu0 0
      %1108 = vmatpush.bf16.msra.mxu0 0
      %1109 = vmatpush.bf16.msra.mxu0 0
      %1110 = vmatpush.bf16.msra.mxu0 0
      %1111 = vmatpush.bf16.msra.mxu0 0
      %1112 = vmatpush.bf16.msra.mxu0 %v1103
      %1113 = vmatmul.bf16.gmra.mxu0 %v1091
      %v1114 = vpop.f32.mrf.mxu0
      %v1115 = vadd.f32 0.0, %v1114
      %v1116 = vpop.f32.mrf.mxu0
      %v1117 = vadd.f32 0.0, %v1116
      %1118 = vmatmul.bf16.gmra.mxu0 %v1094
      %v1119 = vpop.f32.mrf.mxu0
      %v1120 = vadd.f32 0.0, %v1119
      %v1121 = vpop.f32.mrf.mxu0
      %v1122 = vadd.f32 0.0, %v1121
      %1123 = vmatmul.bf16.gmra.mxu0 %v1097
      %v1124 = vpop.f32.mrf.mxu0
      %v1125 = vadd.f32 0.0, %v1124
      %v1126 = vpop.f32.mrf.mxu0
      %v1127 = vadd.f32 0.0, %v1126
      %1128 = vmatmul.bf16.gmra.mxu0 %v1100
      %v1129 = vpop.f32.mrf.mxu0
      %v1130 = vadd.f32 0.0, %v1129
      %v1131 = vpop.f32.mrf.mxu0
      %v1132 = vadd.f32 0.0, %v1131
      %1133 = vdwg.mxu0
      %v1134 = vadd.f32 %v1051, %v1115
      %v1135 = vadd.f32 %v1052, %v1117
      %v1136 = vadd.f32 %v1053, %v1120
      %v1137 = vadd.f32 %v1054, %v1122
      %v1138 = vadd.f32 %v1055, %v1125
      %v1139 = vadd.f32 %v1056, %v1127
      %v1140 = vadd.f32 %v1057, %v1130
      %v1141 = vadd.f32 %v1058, %v1132
      %v1142 = vld [vmem:[%s976] sm:$0xf]
      %v1143 = vld [vmem:[%s976 + $0x4] sm:$0x1]
      %v1144 = vld [vmem:[%s976 + $0x8] sm:$0xf]
      %v1145 = vld [vmem:[%s976 + $0xc] sm:$0x1]
      %v1146 = vld [vmem:[%s976 + $0x10] sm:$0xf]
      %v1147 = vld [vmem:[%s976 + $0x14] sm:$0x1]
      %v1148 = vld [vmem:[%s976 + $0x18] sm:$0xf]
      %v1149 = vld [vmem:[%s976 + $0x1c] sm:$0x1]
      %v1150 = vld [vmem:[%s976 + $0x20] sm:$0xf]
      %v1151 = vld [vmem:[%s976 + $0x24] sm:$0x1]
      %v1152 = vld [vmem:[%s976 + $0x28] sm:$0xf]
      %v1153 = vld [vmem:[%s976 + $0x2c] sm:$0x1]
      %v1154 = vld [vmem:[%s976 + $0x30] sm:$0xf]
      %v1155 = vld [vmem:[%s976 + $0x34] sm:$0x1]
      %v1156 = vld [vmem:[%s976 + $0x38] sm:$0xf]
      %v1157 = vld [vmem:[%s976 + $0x3c] sm:$0x1]
      %v1159 = vshrl.u32 %v1142, 16
      %v1161 = vrot.slane %v1159, 4
      %v1162 = vshll.u32 %v1142, 16
      %v1164 = vrot.slane %v1162, 5
      %v1165 = vor.u32 %v1161, %v1164
      %v1166 = vrot.slane %v1165, 4
      %v1168 = vshll.u32 %v1143, 16
      %v1170 = vrot.slane %v1168, 5
      %v1171 = vsel %vm437, %v1166, %v1170
      %v1173 = vshrl.u32 %v1144, 16
      %v1175 = vrot.slane %v1173, 4
      %v1176 = vshll.u32 %v1144, 16
      %v1178 = vrot.slane %v1176, 5
      %v1179 = vor.u32 %v1175, %v1178
      %v1180 = vrot.slane %v1179, 4
      %v1182 = vshll.u32 %v1145, 16
      %v1184 = vrot.slane %v1182, 5
      %v1185 = vsel %vm437, %v1180, %v1184
      %v1187 = vshrl.u32 %v1146, 16
      %v1189 = vrot.slane %v1187, 4
      %v1190 = vshll.u32 %v1146, 16
      %v1192 = vrot.slane %v1190, 5
      %v1193 = vor.u32 %v1189, %v1192
      %v1194 = vrot.slane %v1193, 4
      %v1196 = vshll.u32 %v1147, 16
      %v1198 = vrot.slane %v1196, 5
      %v1199 = vsel %vm437, %v1194, %v1198
      %v1201 = vshrl.u32 %v1148, 16
      %v1203 = vrot.slane %v1201, 4
      %v1204 = vshll.u32 %v1148, 16
      %v1206 = vrot.slane %v1204, 5
      %v1207 = vor.u32 %v1203, %v1206
      %v1208 = vrot.slane %v1207, 4
      %v1210 = vshll.u32 %v1149, 16
      %v1212 = vrot.slane %v1210, 5
      %v1213 = vsel %vm437, %v1208, %v1212
      %v1215 = vshrl.u32 %v1150, 16
      %v1217 = vrot.slane %v1215, 4
      %v1218 = vshll.u32 %v1150, 16
      %v1220 = vrot.slane %v1218, 5
      %v1221 = vor.u32 %v1217, %v1220
      %v1222 = vrot.slane %v1221, 4
      %v1224 = vshll.u32 %v1151, 16
      %v1226 = vrot.slane %v1224, 5
      %v1227 = vsel %vm437, %v1222, %v1226
      %v1229 = vshrl.u32 %v1152, 16
      %v1231 = vrot.slane %v1229, 4
      %v1232 = vshll.u32 %v1152, 16
      %v1234 = vrot.slane %v1232, 5
      %v1235 = vor.u32 %v1231, %v1234
      %v1236 = vrot.slane %v1235, 4
      %v1238 = vshll.u32 %v1153, 16
      %v1240 = vrot.slane %v1238, 5
      %v1241 = vsel %vm437, %v1236, %v1240
      %v1243 = vshrl.u32 %v1154, 16
      %v1245 = vrot.slane %v1243, 4
      %v1246 = vshll.u32 %v1154, 16
      %v1248 = vrot.slane %v1246, 5
      %v1249 = vor.u32 %v1245, %v1248
      %v1250 = vrot.slane %v1249, 4
      %v1252 = vshll.u32 %v1155, 16
      %v1254 = vrot.slane %v1252, 5
      %v1255 = vsel %vm437, %v1250, %v1254
      %v1257 = vshrl.u32 %v1156, 16
      %v1259 = vrot.slane %v1257, 4
      %v1260 = vshll.u32 %v1156, 16
      %v1262 = vrot.slane %v1260, 5
      %v1263 = vor.u32 %v1259, %v1262
      %v1264 = vrot.slane %v1263, 4
      %v1266 = vshll.u32 %v1157, 16
      %v1268 = vrot.slane %v1266, 5
      %v1269 = vsel %vm437, %v1264, %v1268
      %s1270 = scalar_lea.vmem %s253, 16
      %v1271 = vld [vmem:[%s1270] sm:$0x3]
      %v1272 = vunpack.c.l.b16 %v1171
      %v1273 = vunpack.c.l.b16 %v1185
      %v1274 = vunpack.c.l.b16 %v1199
      %v1275 = vunpack.c.l.b16 %v1213
      %v1276 = vunpack.c.l.b16 %v1227
      %v1277 = vunpack.c.l.b16 %v1241
      %v1278 = vunpack.c.l.b16 %v1255
      %v1279 = vunpack.c.l.b16 %v1269
      %v1280 = vpack.c.b16 %v1273, %v1272
      %v1281 = vpack.c.b16 %v1275, %v1274
      %v1282 = vpack.c.b16 %v1277, %v1276
      %v1283 = vpack.c.b16 %v1279, %v1278
      %v1285 = vsel %vm309, %v1280, 0
      %v1288 = vsel %vm309, %v1281, 0
      %v1291 = vsel %vm309, %v1282, 0
      %v1294 = vsel %vm309, %v1283, 0
      %v1297 = vsel %vm322, %v1271, 0
      %1299 = vmatpush.bf16.msra.mxu0 0
      %1300 = vmatpush.bf16.msra.mxu0 0
      %1301 = vmatpush.bf16.msra.mxu0 0
      %1302 = vmatpush.bf16.msra.mxu0 0
      %1303 = vmatpush.bf16.msra.mxu0 0
      %1304 = vmatpush.bf16.msra.mxu0 0
      %1305 = vmatpush.bf16.msra.mxu0 0
      %1306 = vmatpush.bf16.msra.mxu0 %v1297
      %1307 = vmatmul.bf16.gmra.mxu0 %v1285
      %v1308 = vpop.f32.mrf.mxu0
      %v1309 = vadd.f32 0.0, %v1308
      %v1310 = vpop.f32.mrf.mxu0
      %v1311 = vadd.f32 0.0, %v1310
      %1312 = vmatmul.bf16.gmra.mxu0 %v1288
      %v1313 = vpop.f32.mrf.mxu0
      %v1314 = vadd.f32 0.0, %v1313
      %v1315 = vpop.f32.mrf.mxu0
      %v1316 = vadd.f32 0.0, %v1315
      %1317 = vmatmul.bf16.gmra.mxu0 %v1291
      %v1318 = vpop.f32.mrf.mxu0
      %v1319 = vadd.f32 0.0, %v1318
      %v1320 = vpop.f32.mrf.mxu0
      %v1321 = vadd.f32 0.0, %v1320
      %1322 = vmatmul.bf16.gmra.mxu0 %v1294
      %v1323 = vpop.f32.mrf.mxu0
      %v1324 = vadd.f32 0.0, %v1323
      %v1325 = vpop.f32.mrf.mxu0
      %v1326 = vadd.f32 0.0, %v1325
      %1327 = vdwg.mxu0
      %v1328 = vadd.f32 %v1134, %v1309
      %v1329 = vadd.f32 %v1135, %v1311
      %v1330 = vadd.f32 %v1136, %v1314
      %v1331 = vadd.f32 %v1137, %v1316
      %v1332 = vadd.f32 %v1138, %v1319
      %v1333 = vadd.f32 %v1139, %v1321
      %v1334 = vadd.f32 %v1140, %v1324
      %v1335 = vadd.f32 %v1141, %v1326
      %v1336 = vld [vmem:[%s256] sm:$0x1]
      %v1338 = vperm.slane %v1336, 0
      %v1340 = vmul.f32 %v1328, %v1338
      %v1341 = vmul.f32 %v1329, %v1338
      %v1342 = vmul.f32 %v1330, %v1338
      %v1343 = vmul.f32 %v1331, %v1338
      %v1344 = vmul.f32 %v1332, %v1338
      %v1345 = vmul.f32 %v1333, %v1338
      %v1346 = vmul.f32 %v1334, %v1338
      %v1347 = vmul.f32 %v1335, %v1338
      %v1348 = vld [vmem:[%s259] sm:$0x1]
      %v1350 = vperm.slane %v1348, 0
      %v1352 = vadd.f32 %v1340, %v1350
      %v1353 = vadd.f32 %v1341, %v1350
      %v1354 = vadd.f32 %v1342, %v1350
      %v1355 = vadd.f32 %v1343, %v1350
      %v1356 = vadd.f32 %v1344, %v1350
      %v1357 = vadd.f32 %v1345, %v1350
      %v1358 = vadd.f32 %v1346, %v1350
      %v1359 = vadd.f32 %v1347, %v1350
      %v1360 = vmax.f32 %v1352, 0.0
      %v1361 = vmax.f32 %v1353, 0.0
      %v1362 = vmax.f32 %v1354, 0.0
      %v1363 = vmax.f32 %v1355, 0.0
      %v1364 = vmax.f32 %v1356, 0.0
      %v1365 = vmax.f32 %v1357, 0.0
      %v1366 = vmax.f32 %v1358, 0.0
      %v1367 = vmax.f32 %v1359, 0.0
      %1368 = vst [vmem:[%s267] sm:$0xff] %v1360
      %1369 = vst [vmem:[%s267 + $0x8] sm:$0xff] %v1361
      %1370 = vst [vmem:[%s267 + $0x10] sm:$0xff] %v1362
      %1371 = vst [vmem:[%s267 + $0x18] sm:$0xff] %v1363
      %1372 = vst [vmem:[%s267 + $0x20] sm:$0xff] %v1364
      %1373 = vst [vmem:[%s267 + $0x28] sm:$0xff] %v1365
      %1374 = vst [vmem:[%s267 + $0x30] sm:$0xff] %v1366
      %1375 = vst [vmem:[%s267 + $0x38] sm:$0xff] %v1367
      %p1376 = scmp.lt.s32.totalorder %s20, 1
      %s1377 = scalar_select %p1376, %s20, 1
      %p1378 = scmp.lt.s32.totalorder %s19, 0
      %s1379 = scalar_select %p1378, %s19, 0
      %s1380 = smul.addr %s1377, 8
      %s1381 = sadd.s32 %s1379, %s1380
      %s1382 = smul.addr %s1381, 8
      %s1383 = scalar_lea.vmem %s4, %s1382
      // Predicated region
      $region37: #{resblock_forward.3} parent=35 // pred_check
        %p1384 = pneg %p151
      $region38: #{resblock_forward.3} parent=35 // pred_check_branch
        %1386 = sbr.rel (%p1384) target = $region40
      $region39: #{resblock_forward.3} parent=35 // pred_region
        _
      $region40: #{resblock_forward.3} parent=35 // pred_fallthru
        _
    $region36: #{resblock_forward.3} parent=5 // pred_fallthru
      _
    %p1387 = scmp.le.s32.totalorder 2, %s10
    // Predicated region
    $region41: #{resblock_forward.3} parent=5 // pred_check
      %p1388 = pneg %p1387
    $region42: #{resblock_forward.3} parent=5 // pred_check_branch
      %1390 = sbr.rel (%p1388) target = $region44
    $region43: #{resblock_forward.3} parent=5 // pred_region
      %s1391 = ssub.s32 %s10, 2
      // Predicated region
      $region45: #{resblock_forward.3} parent=43 // pred_check
        %p1392 = pneg %p157
      $region46: #{resblock_forward.3} parent=43 // pred_check_branch
        %1394 = sbr.rel (%p1392) target = $region48
      $region47: #{resblock_forward.3} parent=43 // pred_region
        %p1395 = scmp.lt.s32.totalorder %s22, 1
        %s1396 = scalar_select %p1395, %s22, 1
        %p1397 = scmp.lt.s32.totalorder %s21, 0
        %s1398 = scalar_select %p1397, %s21, 0
        %s1399 = smul.addr %s1396, 8
        %s1400 = sadd.s32 %s1398, %s1399
        %s1401 = smul.addr %s1400, 8
        %s1402 = scalar_lea.vmem %s4, %s1401
      $region48: #{resblock_forward.3} parent=43 // pred_fallthru
        _
    $region44: #{resblock_forward.3} parent=5 // pred_fallthru
      _
  $region6: #{resblock_forward.3} parent=0 // loop_footer
    %s14 = sadd.s32 1, %s10
  $region7: #{resblock_forward.3} parent=0 // loop_footer_branch
    %9 = sbr.rel target = $region3
  $region8: #{resblock_forward.3} parent=0 // loop_exit
    _

// kernel: resblock_forward.5
$region0: #{resblock_forward.5}
  #allocation0 [shape = 'u32[]', space=smem, size = 0x4, offset = 0x4, fixed_abs, tag = 'smem constant byte address 0x4 - core index']
  #allocation1 [shape = 'u32[72,128]{1,0:T(1,128)}', space=vmem, size = 0x9000, scoped, tag = 'internal scratch']
  %s0 = inlined_call_operand.vmem [shape: bf16[2,10,10,8], index: 0, kind: input, shape index: {}]
  %s1 = inlined_call_operand.vmem [shape: bf16[9,8,128], index: 1, kind: input, shape index: {}]
  %s2 = inlined_call_operand.vmem [shape: f32[1,128], index: 2, kind: input, shape index: {}]
  %s3 = inlined_call_operand.vmem [shape: f32[1,128], index: 3, kind: input, shape index: {}]
  %s4 = inlined_call_operand.vmem [shape: f32[2,64,128], index: 4, kind: input, shape index: {}]
  %s5 = inlined_call_operand.vmem [shape: f32[2,64,128], index: 5, kind: output, shape index: {}]
  %s6 = sld [smem:[#allocation0]]
  $region53: #{resblock_forward.5} parent=0
    _
  %s8 = ssub.s32 1, %s6
  %s9 = scalar_select 0, %s8, %s6
  loop: start=0, step=1, limit=4
  $region2: #{resblock_forward.5} parent=0 // loop_pre_header
    _
  $region3: #{resblock_forward.5} parent=0 // loop_header
    %s11 = sphi 0, %s15
    %p12 = scmp.ge.s32.totalorder %s11, 4
    %s18 = sphi 0, %s30
    %s19 = sphi 0, %s26
    %s20 = sphi 0, %s18
    %s21 = sphi 0, %s19
    %s22 = sphi 0, %s20
    %s23 = sphi 0, %s21
    %s33 = sphi 0, %s35
    %s36 = sphi 0, %s33
    %s37 = sphi 0, %s36
    %s53 = sphi 0, %s37
    %s59 = sphi 0, %s61
    %s62 = sphi 0, %s59
    %s63 = sphi 0, %s62
    %s79 = sphi 0, %s63
    %s85 = sphi 0, %s87
    %s88 = sphi 0, %s85
    %s89 = sphi 0, %s88
    %s105 = sphi 0, %s89
    %s111 = sphi 0, %s113
    %s114 = sphi 0, %s111
    %s115 = sphi 0, %s114
    %s131 = sphi 0, %s115
    %s139 = sphi 0, %s141
    %s142 = sphi 0, %s139
    %s143 = sphi 0, %s142
    %s159 = sphi 0, %s143
    %s167 = sphi 0, %s169
    %s170 = sphi 0, %s167
    %s171 = sphi 0, %s170
    %s187 = sphi 0, %s171
  $region4: #{resblock_forward.5} parent=0 // loop_header_branch
    %14 = sbr.rel (%p12) target = $region8
  $region5: #{resblock_forward.5} parent=0 // loop_body
    %s16 = ssub.s32 %s11, 1
    %s17 = ssub.s32 %s11, 2
    %s24 = sadd.s32 1, %s19
    %p25 = scmp.ge.s32.totalorder %s24, 2
    %s26 = scalar_select %p25, 0, %s24
    %s27 = sadd.s32 1, %s18
    %s28 = scalar_select %p25, %s27, %s18
    %p29 = scmp.ge.s32.totalorder %s28, 1
    %s30 = scalar_select %p29, 0, %s28
    %s31 = ssub.s32 %s19, %s26
    %p32 = scmp.eq.s32.totalorder %s31, 0
    %s34 = sadd.s32 %s33, 1
    %s35 = scalar_select %p32, %s33, %s34
    %p38 = pneg %p32
    %p39 = scmp.eq.s32.totalorder %s11, 1
    %p40 = por %p38, %p39
    %p41 = scmp.ne.s32.totalorder %s33, %s36
    %p42 = scmp.eq.s32.totalorder %s11, 0
    %p43 = por %p41, %p42
    %p44 = scmp.ne.s32.totalorder %s33, %s36
    %p45 = scmp.eq.s32.totalorder %s16, 1
    %p46 = por %p44, %p45
    %p47 = scmp.ne.s32.totalorder %s36, %s37
    %p48 = scmp.eq.s32.totalorder %s16, 0
    %p49 = por %p47, %p48
    %p50 = scmp.ne.s32.totalorder %s36, %s37
    %p51 = scmp.eq.s32.totalorder %s17, 1
    %p52 = por %p50, %p51
    %p54 = scmp.ne.s32.totalorder %s37, %s53
    %p55 = scmp.eq.s32.totalorder %s17, 0
    %p56 = por %p54, %p55
    %s57 = ssub.s32 %s18, %s30
    %p58 = scmp.eq.s32.totalorder %s57, 0
    %s60 = sadd.s32 %s59, 1
    %s61 = scalar_select %p58, %s59, %s60
    %p64 = pneg %p58
    %p65 = scmp.eq.s32.totalorder %s11, 1
    %p66 = por %p64, %p65
    %p67 = scmp.ne.s32.totalorder %s59, %s62
    %p68 = scmp.eq.s32.totalorder %s11, 0
    %p69 = por %p67, %p68
    %p70 = scmp.ne.s32.totalorder %s59, %s62
    %p71 = scmp.eq.s32.totalorder %s16, 1
    %p72 = por %p70, %p71
    %p73 = scmp.ne.s32.totalorder %s62, %s63
    %p74 = scmp.eq.s32.totalorder %s16, 0
    %p75 = por %p73, %p74
    %p76 = scmp.ne.s32.totalorder %s62, %s63
    %p77 = scmp.eq.s32.totalorder %s17, 1
    %p78 = por %p76, %p77
    %p80 = scmp.ne.s32.totalorder %s63, %s79
    %p81 = scmp.eq.s32.totalorder %s17, 0
    %p82 = por %p80, %p81
    %s83 = ssub.s32 %s18, %s30
    %p84 = scmp.eq.s32.totalorder %s83, 0
    %s86 = sadd.s32 %s85, 1
    %s87 = scalar_select %p84, %s85, %s86
    %p90 = pneg %p84
    %p91 = scmp.eq.s32.totalorder %s11, 1
    %p92 = por %p90, %p91
    %p93 = scmp.ne.s32.totalorder %s85, %s88
    %p94 = scmp.eq.s32.totalorder %s11, 0
    %p95 = por %p93, %p94
    %p96 = scmp.ne.s32.totalorder %s85, %s88
    %p97 = scmp.eq.s32.totalorder %s16, 1
    %p98 = por %p96, %p97
    %p99 = scmp.ne.s32.totalorder %s88, %s89
    %p100 = scmp.eq.s32.totalorder %s16, 0
    %p101 = por %p99, %p100
    %p102 = scmp.ne.s32.totalorder %s88, %s89
    %p103 = scmp.eq.s32.totalorder %s17, 1
    %p104 = por %p102, %p103
    %p106 = scmp.ne.s32.totalorder %s89, %s105
    %p107 = scmp.eq.s32.totalorder %s17, 0
    %p108 = por %p106, %p107
    %s109 = ssub.s32 %s18, %s30
    %p110 = scmp.eq.s32.totalorder %s109, 0
    %s112 = sadd.s32 %s111, 1
    %s113 = scalar_select %p110, %s111, %s112
    %p116 = pneg %p110
    %p117 = scmp.eq.s32.totalorder %s11, 1
    %p118 = por %p116, %p117
    %p119 = scmp.ne.s32.totalorder %s111, %s114
    %p120 = scmp.eq.s32.totalorder %s11, 0
    %p121 = por %p119, %p120
    %p122 = scmp.ne.s32.totalorder %s111, %s114
    %p123 = scmp.eq.s32.totalorder %s16, 1
    %p124 = por %p122, %p123
    %p125 = scmp.ne.s32.totalorder %s114, %s115
    %p126 = scmp.eq.s32.totalorder %s16, 0
    %p127 = por %p125, %p126
    %p128 = scmp.ne.s32.totalorder %s114, %s115
    %p129 = scmp.eq.s32.totalorder %s17, 1
    %p130 = por %p128, %p129
    %p132 = scmp.ne.s32.totalorder %s115, %s131
    %p133 = scmp.eq.s32.totalorder %s17, 0
    %p134 = por %p132, %p133
    %s135 = ssub.s32 %s19, %s26
    %s136 = ssub.s32 %s18, %s30
    %s137 = sor.u32 %s135, %s136
    %p138 = scmp.eq.s32.totalorder %s137, 0
    %s140 = sadd.s32 %s139, 1
    %s141 = scalar_select %p138, %s139, %s140
    %p144 = pneg %p138
    %p145 = scmp.eq.s32.totalorder %s11, 1
    %p146 = por %p144, %p145
    %p147 = scmp.ne.s32.totalorder %s139, %s142
    %p148 = scmp.eq.s32.totalorder %s11, 0
    %p149 = por %p147, %p148
    %p150 = scmp.ne.s32.totalorder %s139, %s142
    %p151 = scmp.eq.s32.totalorder %s16, 1
    %p152 = por %p150, %p151
    %p153 = scmp.ne.s32.totalorder %s142, %s143
    %p154 = scmp.eq.s32.totalorder %s16, 0
    %p155 = por %p153, %p154
    %p156 = scmp.ne.s32.totalorder %s142, %s143
    %p157 = scmp.eq.s32.totalorder %s17, 1
    %p158 = por %p156, %p157
    %p160 = scmp.ne.s32.totalorder %s143, %s159
    %p161 = scmp.eq.s32.totalorder %s17, 0
    %p162 = por %p160, %p161
    %s163 = ssub.s32 %s19, %s26
    %s164 = ssub.s32 %s18, %s30
    %s165 = sor.u32 %s163, %s164
    %p166 = scmp.eq.s32.totalorder %s165, 0
    %s168 = sadd.s32 %s167, 1
    %s169 = scalar_select %p166, %s167, %s168
    %p172 = pneg %p166
    %p173 = scmp.eq.s32.totalorder %s11, 1
    %p174 = por %p172, %p173
    %p175 = scmp.ne.s32.totalorder %s167, %s170
    %p176 = scmp.eq.s32.totalorder %s11, 0
    %p177 = por %p175, %p176
    %p178 = scmp.ne.s32.totalorder %s167, %s170
    %p179 = scmp.eq.s32.totalorder %s16, 1
    %p180 = por %p178, %p179
    %p181 = scmp.ne.s32.totalorder %s170, %s171
    %p182 = scmp.eq.s32.totalorder %s16, 0
    %p183 = por %p181, %p182
    %p184 = scmp.ne.s32.totalorder %s170, %s171
    %p185 = scmp.eq.s32.totalorder %s17, 1
    %p186 = por %p184, %p185
    %p188 = scmp.ne.s32.totalorder %s171, %s187
    %p189 = scmp.eq.s32.totalorder %s17, 0
    %p190 = por %p188, %p189
    %p191 = scmp.le.s32.totalorder 1, %s11
    %p192 = scmp.lt.s32.totalorder %s11, 3
    %p193 = pnand %p191, %p192
    %p194 = pneg %p193
    // Predicated region
    $region9: #{resblock_forward.5} parent=5 // pred_check
      _
    $region10: #{resblock_forward.5} parent=5 // pred_check_branch
      %196 = sbr.rel (%p193) target = $region12
    $region11: #{resblock_forward.5} parent=5 // pred_region
      %s197 = ssub.s32 %s11, 1
      // Predicated region
      $region13: #{resblock_forward.5} parent=11 // pred_check
        %p198 = pneg %p75
      $region14: #{resblock_forward.5} parent=11 // pred_check_branch
        %200 = sbr.rel (%p198) target = $region16
      $region15: #{resblock_forward.5} parent=11 // pred_region
        %p201 = scmp.lt.s32.totalorder %s20, 0
        %s202 = scalar_select %p201, %s20, 0
        %s203 = smul.addr %s202, 4
        %s204 = scalar_lea.vmem %s1, %s203
      $region16: #{resblock_forward.5} parent=11 // pred_fallthru
        _
      // Predicated region
      $region17: #{resblock_forward.5} parent=11 // pred_check
        %p205 = pneg %p101
      $region18: #{resblock_forward.5} parent=11 // pred_check_branch
        %207 = sbr.rel (%p205) target = $region20
      $region19: #{resblock_forward.5} parent=11 // pred_region
        %p208 = scmp.lt.s32.totalorder %s20, 0
        %s209 = scalar_select %p208, %s20, 0
        %s210 = scalar_lea.vmem %s2, %s209
      $region20: #{resblock_forward.5} parent=11 // pred_fallthru
        _
      // Predicated region
      $region21: #{resblock_forward.5} parent=11 // pred_check
        %p211 = pneg %p127
      $region22: #{resblock_forward.5} parent=11 // pred_check_branch
        %213 = sbr.rel (%p211) target = $region24
      $region23: #{resblock_forward.5} parent=11 // pred_region
        %p214 = scmp.lt.s32.totalorder %s20, 0
        %s215 = scalar_select %p214, %s20, 0
        %s216 = scalar_lea.vmem %s3, %s215
      $region24: #{resblock_forward.5} parent=11 // pred_fallthru
        _
    $region12: #{resblock_forward.5} parent=5 // pred_fallthru
      _
    %p217 = scmp.lt.s32.totalorder %s11, 2
    // Predicated region
    $region25: #{resblock_forward.5} parent=5 // pred_check
      %p218 = pneg %p217
    $region26: #{resblock_forward.5} parent=5 // pred_check_branch
      %220 = sbr.rel (%p218) target = $region28
    $region27: #{resblock_forward.5} parent=5 // pred_region
      // Predicated region
      $region29: #{resblock_forward.5} parent=27 // pred_check
        %p221 = pneg %p43
      $region30: #{resblock_forward.5} parent=27 // pred_check_branch
        %223 = sbr.rel (%p221) target = $region32
      $region31: #{resblock_forward.5} parent=27 // pred_region
        %p224 = scmp.lt.s32.totalorder %s19, 1
        %s225 = scalar_select %p224, %s19, 1
        %s226 = smul.addr %s225, 20
        %s227 = smul.addr %s226, 4
        %s228 = scalar_lea.vmem %s0, %s227
      $region32: #{resblock_forward.5} parent=27 // pred_fallthru
        _
      // Predicated region
      $region33: #{resblock_forward.5} parent=27 // pred_check
        %p229 = pneg %p149
      $region34: #{resblock_forward.5} parent=27 // pred_check_branch
        %231 = sbr.rel (%p229) target = $region36
      $region35: #{resblock_forward.5} parent=27 // pred_region
        %p232 = scmp.lt.s32.totalorder %s19, 1
        %s233 = scalar_select %p232, %s19, 1
        %p234 = scmp.lt.s32.totalorder %s18, 0
        %s235 = scalar_select %p234, %s18, 0
        %s236 = smul.addr %s233, 8
        %s237 = sadd.s32 %s235, %s236
        %s238 = smul.addr %s237, 8
        %s239 = scalar_lea.vmem %s4, %s238
      $region36: #{resblock_forward.5} parent=27 // pred_fallthru
        _
    $region28: #{resblock_forward.5} parent=5 // pred_fallthru
      _
    %p240 = scmp.le.s32.totalorder 1, %s11
    %p241 = scmp.lt.s32.totalorder %s11, 3
    %p242 = pnand %p240, %p241
    %p243 = pneg %p242
    // Predicated region
    $region37: #{resblock_forward.5} parent=5 // pred_check
      _
    $region38: #{resblock_forward.5} parent=5 // pred_check_branch
      %245 = sbr.rel (%p242) target = $region40
    $region39: #{resblock_forward.5} parent=5 // pred_region
      %s246 = ssub.s32 %s11, 1
      %p247 = scmp.lt.s32.totalorder %s21, 1
      %s248 = scalar_select %p247, %s21, 1
      %s249 = smul.addr %s248, 20
      %s250 = smul.addr %s249, 4
      %s251 = scalar_lea.vmem %s0, %s250
      %p252 = pneg %p49
      %p253 = pneg %p46
      %p254 = scmp.lt.s32.totalorder %s20, 0
      %s255 = scalar_select %p254, %s20, 0
      %s256 = smul.addr %s255, 4
      %s257 = scalar_lea.vmem %s1, %s256
      %p258 = pneg %p75
      %p259 = pneg %p72
      %p260 = scmp.lt.s32.totalorder %s20, 0
      %s261 = scalar_select %p260, %s20, 0
      %s262 = scalar_lea.vmem %s2, %s261
      %p263 = pneg %p101
      %p264 = pneg %p98
      %p265 = scmp.lt.s32.totalorder %s20, 0
      %s266 = scalar_select %p265, %s20, 0
      %s267 = scalar_lea.vmem %s3, %s266
      %p268 = pneg %p127
      %p269 = pneg %p124
      %p270 = scmp.lt.s32.totalorder %s21, 1
      %s271 = scalar_select %p270, %s21, 1
      %p272 = scmp.lt.s32.totalorder %s20, 0
      %s273 = scalar_select %p272, %s20, 0
      %s274 = smul.addr %s271, 8
      %s275 = sadd.s32 %s273, %s274
      %s276 = smul.addr %s275, 8
      %s277 = scalar_lea.vmem %s4, %s276
      %p278 = pneg %p155
      %p279 = pneg %p152
      %p280 = pneg %p183
      %p281 = pneg %p180
      %p282 = scmp.lt.s32.totalorder %s21, 1
      %s283 = scalar_select %p282, %s21, 1
      %p284 = scmp.lt.s32.totalorder %s20, 0
      %s285 = scalar_select %p284, %s20, 0
      %s286 = smul.addr %s283, 8
      %s287 = sadd.s32 %s285, %s286
      %s288 = smul.addr %s287, 8
      %s289 = scalar_lea.vmem %s5, %s288
      %p290 = scmp.lt.s32.totalorder %s21, 1
      %s291 = scalar_select %p290, %s21, 1
      %s292 = smul.addr %s291, 20
      %s293 = smul.addr %s292, 4
      %s294 = scalar_lea.vmem %s0, %s293
      %p295 = scmp.lt.s32.totalorder %s20, 0
      %s296 = scalar_select %p295, %s20, 0
      %s297 = smul.addr %s296, 4
      %s298 = scalar_lea.vmem %s1, %s297
      %p299 = scmp.lt.s32.totalorder %s20, 0
      %s300 = scalar_select %p299, %s20, 0
      %s301 = scalar_lea.vmem %s2, %s300
      %p302 = scmp.lt.s32.totalorder %s20, 0
      %s303 = scalar_select %p302, %s20, 0
      %s304 = scalar_lea.vmem %s3, %s303
      %p305 = scmp.lt.s32.totalorder %s21, 1
      %s306 = scalar_select %p305, %s21, 1
      %p307 = scmp.lt.s32.totalorder %s20, 0
      %s308 = scalar_select %p307, %s20, 0
      %s309 = smul.addr %s306, 8
      %s310 = sadd.s32 %s308, %s309
      %s311 = smul.addr %s310, 8
      %s312 = scalar_lea.vmem %s4, %s311
      %p313 = scmp.lt.s32.totalorder %s21, 1
      %s314 = scalar_select %p313, %s21, 1
      %p315 = scmp.lt.s32.totalorder %s20, 0
      %s316 = scalar_select %p315, %s20, 0
      %s317 = smul.addr %s314, 8
      %s318 = sadd.s32 %s316, %s317
      %s319 = smul.addr %s318, 8
      %s320 = scalar_lea.vmem %s5, %s319
      %v322 = vld [vmem:[%s294] sm:$0xf]
      %v323 = vld [vmem:[%s294 + $0x8] sm:$0xf]
      %v324 = vld [vmem:[%s294 + $0x10] sm:$0xf]
      %v325 = vld [vmem:[%s294 + $0x18] sm:$0xf]
      %v326 = vld [vmem:[%s294 + $0x20] sm:$0xf]
      %v327 = vld [vmem:[%s294 + $0x28] sm:$0xf]
      %v328 = vld [vmem:[%s294 + $0x30] sm:$0xf]
      %v329 = vld [vmem:[%s294 + $0x38] sm:$0xf]
      %v330 = vld [vmem:[%s298] sm:$0xf]
      %v331 = vld [vmem:[%s294 + $0x4] sm:$0x1]
      %v332 = vld [vmem:[%s294 + $0xc] sm:$0x1]
      %v333 = vld [vmem:[%s294 + $0x14] sm:$0x1]
      %v334 = vld [vmem:[%s294 + $0x1c] sm:$0x1]
      %v335 = vld [vmem:[%s294 + $0x24] sm:$0x1]
      %v336 = vld [vmem:[%s294 + $0x2c] sm:$0x1]
      %v337 = vld [vmem:[%s294 + $0x34] sm:$0x1]
      %v338 = vld [vmem:[%s294 + $0x3c] sm:$0x1]
      %vm339 = vsmask.f32 3328
      %vm340 = vsmask.f32 7440
      %vm341 = vmor %vm339, %vm340
      %v343 = vshrl.u32 %v322, 16
      %v345 = vrot.slane %v343, 4
      %v346 = vshll.u32 %v322, 16
      %v348 = vrot.slane %v346, 5
      %v349 = vor.u32 %v345, %v348
      %v350 = vrot.slane %v349, 4
      %v352 = vshll.u32 %v331, 16
      %v354 = vrot.slane %v352, 5
      %v355 = vsel %vm341, %v350, %v354
      %v357 = vshrl.u32 %v323, 16
      %v359 = vrot.slane %v357, 4
      %v360 = vshll.u32 %v323, 16
      %v362 = vrot.slane %v360, 5
      %v363 = vor.u32 %v359, %v362
      %v364 = vrot.slane %v363, 4
      %v366 = vshll.u32 %v332, 16
      %v368 = vrot.slane %v366, 5
      %v369 = vsel %vm341, %v364, %v368
      %v371 = vshrl.u32 %v324, 16
      %v373 = vrot.slane %v371, 4
      %v374 = vshll.u32 %v324, 16
      %v376 = vrot.slane %v374, 5
      %v377 = vor.u32 %v373, %v376
      %v378 = vrot.slane %v377, 4
      %v380 = vshll.u32 %v333, 16
      %v382 = vrot.slane %v380, 5
      %v383 = vsel %vm341, %v378, %v382
      %v385 = vshrl.u32 %v325, 16
      %v387 = vrot.slane %v385, 4
      %v388 = vshll.u32 %v325, 16
      %v390 = vrot.slane %v388, 5
      %v391 = vor.u32 %v387, %v390
      %v392 = vrot.slane %v391, 4
      %v394 = vshll.u32 %v334, 16
      %v396 = vrot.slane %v394, 5
      %v397 = vsel %vm341, %v392, %v396
      %v399 = vshrl.u32 %v326, 16
      %v401 = vrot.slane %v399, 4
      %v402 = vshll.u32 %v326, 16
      %v404 = vrot.slane %v402, 5
      %v405 = vor.u32 %v401, %v404
      %v406 = vrot.slane %v405, 4
      %v408 = vshll.u32 %v335, 16
      %v410 = vrot.slane %v408, 5
      %v411 = vsel %vm341, %v406, %v410
      %v413 = vshrl.u32 %v327, 16
      %v415 = vrot.slane %v413, 4
      %v416 = vshll.u32 %v327, 16
      %v418 = vrot.slane %v416, 5
      %v419 = vor.u32 %v415, %v418
      %v420 = vrot.slane %v419, 4
      %v422 = vshll.u32 %v336, 16
      %v424 = vrot.slane %v422, 5
      %v425 = vsel %vm341, %v420, %v424
      %v427 = vshrl.u32 %v328, 16
      %v429 = vrot.slane %v427, 4
      %v430 = vshll.u32 %v328, 16
      %v432 = vrot.slane %v430, 5
      %v433 = vor.u32 %v429, %v432
      %v434 = vrot.slane %v433, 4
      %v436 = vshll.u32 %v337, 16
      %v438 = vrot.slane %v436, 5
      %v439 = vsel %vm341, %v434, %v438
      %v441 = vshrl.u32 %v329, 16
      %v443 = vrot.slane %v441, 4
      %v444 = vshll.u32 %v329, 16
      %v446 = vrot.slane %v444, 5
      %v447 = vor.u32 %v443, %v446
      %v448 = vrot.slane %v447, 4
      %v450 = vshll.u32 %v338, 16
      %v452 = vrot.slane %v450, 5
      %v453 = vsel %vm341, %v448, %v452
      %s454 = scalar_lea.vmem %s298, 4
      %v455 = vld [vmem:[%s454] sm:$0xf]
      %v456 = vunpack.c.l.b16 %v355
      %v457 = vunpack.c.l.b16 %v369
      %v458 = vunpack.c.l.b16 %v383
      %v459 = vunpack.c.l.b16 %v397
      %v460 = vunpack.c.l.b16 %v411
      %v461 = vunpack.c.l.b16 %v425
      %v462 = vunpack.c.l.b16 %v439
      %v463 = vunpack.c.l.b16 %v453
      %v464 = vpack.c.b16 %v457, %v456
      %v465 = vpack.c.b16 %v459, %v458
      %v466 = vpack.c.b16 %v461, %v460
      %v467 = vpack.c.b16 %v463, %v462
      %vm468 = vcmask 64512
      %v470 = vsel %vm468, %v464, 0
      %v473 = vsel %vm468, %v465, 0
      %v476 = vsel %vm468, %v466, 0
      %v479 = vsel %vm468, %v467, 0
      %vm481 = vcmask 1043456
      %v483 = vsel %vm481, %v455, 0
      %485 = vmatpush.bf16.msra.mxu0 0
      %486 = vmatpush.bf16.msra.mxu0 0
      %487 = vmatpush.bf16.msra.mxu0 0
      %488 = vmatpush.bf16.msra.mxu0 0
      %489 = vmatpush.bf16.msra.mxu0 0
      %490 = vmatpush.bf16.msra.mxu0 0
      %491 = vmatpush.bf16.msra.mxu0 0
      %492 = vmatpush.bf16.msra.mxu0 %v483
      %493 = vmatmul.bf16.gmra.mxu0 %v470
      %v494 = vpop.f32.mrf.mxu0
      %v495 = vadd.f32 0.0, %v494
      %v496 = vpop.f32.mrf.mxu0
      %v497 = vadd.f32 0.0, %v496
      %498 = vmatmul.bf16.gmra.mxu0 %v473
      %v499 = vpop.f32.mrf.mxu0
      %v500 = vadd.f32 0.0, %v499
      %v501 = vpop.f32.mrf.mxu0
      %v502 = vadd.f32 0.0, %v501
      %503 = vmatmul.bf16.gmra.mxu0 %v476
      %v504 = vpop.f32.mrf.mxu0
      %v505 = vadd.f32 0.0, %v504
      %v506 = vpop.f32.mrf.mxu0
      %v507 = vadd.f32 0.0, %v506
      %508 = vmatmul.bf16.gmra.mxu0 %v479
      %v509 = vpop.f32.mrf.mxu0
      %v510 = vadd.f32 0.0, %v509
      %v511 = vpop.f32.mrf.mxu0
      %v512 = vadd.f32 0.0, %v511
      %513 = vdwg.mxu0
      %v522 = vunpack.c.l.b16 %v322
      %v523 = vunpack.c.l.b16 %v323
      %v524 = vunpack.c.l.b16 %v324
      %v525 = vunpack.c.l.b16 %v325
      %v526 = vunpack.c.l.b16 %v326
      %v527 = vunpack.c.l.b16 %v327
      %v528 = vunpack.c.l.b16 %v328
      %v529 = vunpack.c.l.b16 %v329
      %v530 = vpack.c.b16 %v523, %v522
      %v531 = vpack.c.b16 %v525, %v524
      %v532 = vpack.c.b16 %v527, %v526
      %v533 = vpack.c.b16 %v529, %v528
      %v535 = vsel %vm468, %v530, 0
      %v538 = vsel %vm468, %v531, 0
      %v541 = vsel %vm468, %v532, 0
      %v544 = vsel %vm468, %v533, 0
      %v547 = vsel %vm481, %v330, 0
      %549 = vmatpush.bf16.msra.mxu0 0
      %550 = vmatpush.bf16.msra.mxu0 0
      %551 = vmatpush.bf16.msra.mxu0 0
      %552 = vmatpush.bf16.msra.mxu0 0
      %553 = vmatpush.bf16.msra.mxu0 0
      %554 = vmatpush.bf16.msra.mxu0 0
      %555 = vmatpush.bf16.msra.mxu0 0
      %556 = vmatpush.bf16.msra.mxu0 %v547
      %557 = vmatmul.bf16.gmra.mxu0 %v535
      %v558 = vpop.f32.mrf.mxu0
      %v559 = vadd.f32 %v495, %v558
      %v560 = vpop.f32.mrf.mxu0
      %v561 = vadd.f32 %v497, %v560
      %562 = vmatmul.bf16.gmra.mxu0 %v538
      %v563 = vpop.f32.mrf.mxu0
      %v564 = vadd.f32 %v500, %v563
      %v565 = vpop.f32.mrf.mxu0
      %v566 = vadd.f32 %v502, %v565
      %567 = vmatmul.bf16.gmra.mxu0 %v541
      %v568 = vpop.f32.mrf.mxu0
      %v569 = vadd.f32 %v505, %v568
      %v570 = vpop.f32.mrf.mxu0
      %v571 = vadd.f32 %v507, %v570
      %572 = vmatmul.bf16.gmra.mxu0 %v544
      %v573 = vpop.f32.mrf.mxu0
      %v574 = vadd.f32 %v510, %v573
      %v575 = vpop.f32.mrf.mxu0
      %v576 = vadd.f32 %v512, %v575
      %577 = vdwg.mxu0
      %v578 = vld [vmem:[%s294] sm:$0xe]
      %v579 = vld [vmem:[%s294 + $0x8] sm:$0xe]
      %v580 = vld [vmem:[%s294 + $0x10] sm:$0xe]
      %v581 = vld [vmem:[%s294 + $0x18] sm:$0xe]
      %v582 = vld [vmem:[%s294 + $0x20] sm:$0xe]
      %v583 = vld [vmem:[%s294 + $0x28] sm:$0xe]
      %v584 = vld [vmem:[%s294 + $0x30] sm:$0xe]
      %v585 = vld [vmem:[%s294 + $0x38] sm:$0xe]
      %vm602 = vcmask 1042432
      %vm603 = vcmask 1046532
      %vm604 = vmor %vm602, %vm603
      %v605 = vrot.slane %v578, 5
      %v606 = vrot.slane %v605, 4
      %v607 = vrot.slane %v331, 5
      %v608 = vsel %vm604, %v606, %v607
      %v609 = vrot.slane %v579, 5
      %v610 = vrot.slane %v609, 4
      %v611 = vrot.slane %v332, 5
      %v612 = vsel %vm604, %v610, %v611
      %v613 = vrot.slane %v580, 5
      %v614 = vrot.slane %v613, 4
      %v615 = vrot.slane %v333, 5
      %v616 = vsel %vm604, %v614, %v615
      %v617 = vrot.slane %v581, 5
      %v618 = vrot.slane %v617, 4
      %v619 = vrot.slane %v334, 5
      %v620 = vsel %vm604, %v618, %v619
      %v621 = vrot.slane %v582, 5
      %v622 = vrot.slane %v621, 4
      %v623 = vrot.slane %v335, 5
      %v624 = vsel %vm604, %v622, %v623
      %v625 = vrot.slane %v583, 5
      %v626 = vrot.slane %v625, 4
      %v627 = vrot.slane %v336, 5
      %v628 = vsel %vm604, %v626, %v627
      %v629 = vrot.slane %v584, 5
      %v630 = vrot.slane %v629, 4
      %v631 = vrot.slane %v337, 5
      %v632 = vsel %vm604, %v630, %v631
      %v633 = vrot.slane %v585, 5
      %v634 = vrot.slane %v633, 4
      %v635 = vrot.slane %v338, 5
      %v636 = vsel %vm604, %v634, %v635
      %s637 = scalar_lea.vmem %s298, 8
      %v638 = vld [vmem:[%s637] sm:$0xf]
      %v639 = vunpack.c.l.b16 %v608
      %v640 = vunpack.c.l.b16 %v612
      %v641 = vunpack.c.l.b16 %v616
      %v642 = vunpack.c.l.b16 %v620
      %v643 = vunpack.c.l.b16 %v624
      %v644 = vunpack.c.l.b16 %v628
      %v645 = vunpack.c.l.b16 %v632
      %v646 = vunpack.c.l.b16 %v636
      %v647 = vpack.c.b16 %v640, %v639
      %v648 = vpack.c.b16 %v642, %v641
      %v649 = vpack.c.b16 %v644, %v643
      %v650 = vpack.c.b16 %v646, %v645
      %v652 = vsel %vm468, %v647, 0
      %v655 = vsel %vm468, %v648, 0
      %v658 = vsel %vm468, %v649, 0
      %v661 = vsel %vm468, %v650, 0
      %v664 = vsel %vm481, %v638, 0
      %666 = vmatpush.bf16.msra.mxu0 0
      %667 = vmatpush.bf16.msra.mxu0 0
      %668 = vmatpush.bf16.msra.mxu0 0
      %669 = vmatpush.bf16.msra.mxu0 0
      %670 = vmatpush.bf16.msra.mxu0 0
      %671 = vmatpush.bf16.msra.mxu0 0
      %672 = vmatpush.bf16.msra.mxu0 0
      %673 = vmatpush.bf16.msra.mxu0 %v664
      %674 = vmatmul.bf16.gmra.mxu0 %v652
      %v675 = vpop.f32.mrf.mxu0
      %v676 = vadd.f32 0.0, %v675
      %v677 = vpop.f32.mrf.mxu0
      %v678 = vadd.f32 0.0, %v677
      %679 = vmatmul.bf16.gmra.mxu0 %v655
      %v680 = vpop.f32.mrf.mxu0
      %v681 = vadd.f32 0.0, %v680
      %v682 = vpop.f32.mrf.mxu0
      %v683 = vadd.f32 0.0, %v682
      %684 = vmatmul.bf16.gmra.mxu0 %v658
      %v685 = vpop.f32.mrf.mxu0
      %v686 = vadd.f32 0.0, %v685
      %v687 = vpop.f32.mrf.mxu0
      %v688 = vadd.f32 0.0, %v687
      %689 = vmatmul.bf16.gmra.mxu0 %v661
      %v690 = vpop.f32.mrf.mxu0
      %v691 = vadd.f32 0.0, %v690
      %v692 = vpop.f32.mrf.mxu0
      %v693 = vadd.f32 0.0, %v692
      %694 = vdwg.mxu0
      %v695 = vadd.f32 %v559, %v676
      %v696 = vadd.f32 %v561, %v678
      %v697 = vadd.f32 %v564, %v681
      %v698 = vadd.f32 %v566, %v683
      %v699 = vadd.f32 %v569, %v686
      %v700 = vadd.f32 %v571, %v688
      %v701 = vadd.f32 %v574, %v691
      %v702 = vadd.f32 %v576, %v693
      %s703 = scalar_lea.vmem %s294, 8
      %v704 = vld [vmem:[%s703] sm:$0xf]
      %v705 = vld [vmem:[%s703 + $0x8] sm:$0xf]
      %v706 = vld [vmem:[%s703 + $0x10] sm:$0xf]
      %v707 = vld [vmem:[%s703 + $0x18] sm:$0xf]
      %v708 = vld [vmem:[%s703 + $0x20] sm:$0xf]
      %v709 = vld [vmem:[%s703 + $0x28] sm:$0xf]
      %v710 = vld [vmem:[%s703 + $0x30] sm:$0xf]
      %v711 = vld [vmem:[%s703 + $0x38] sm:$0xf]
      %s712 = scalar_lea.vmem %s298, 12
      %v713 = vld [vmem:[%s712] sm:$0xf]
      %v722 = vunpack.c.l.b16 %v704
      %v723 = vunpack.c.l.b16 %v705
      %v724 = vunpack.c.l.b16 %v706
      %v725 = vunpack.c.l.b16 %v707
      %v726 = vunpack.c.l.b16 %v708
      %v727 = vunpack.c.l.b16 %v709
      %v728 = vunpack.c.l.b16 %v710
      %v729 = vunpack.c.l.b16 %v711
      %v730 = vpack.c.b16 %v723, %v722
      %v731 = vpack.c.b16 %v725, %v724
      %v732 = vpack.c.b16 %v727, %v726
      %v733 = vpack.c.b16 %v729, %v728
      %v735 = vsel %vm468, %v730, 0
      %v738 = vsel %vm468, %v731, 0
      %v741 = vsel %vm468, %v732, 0
      %v744 = vsel %vm468, %v733, 0
      %v747 = vsel %vm481, %v713, 0
      %749 = vmatpush.bf16.msra.mxu0 0
      %750 = vmatpush.bf16.msra.mxu0 0
      %751 = vmatpush.bf16.msra.mxu0 0
      %752 = vmatpush.bf16.msra.mxu0 0
      %753 = vmatpush.bf16.msra.mxu0 0
      %754 = vmatpush.bf16.msra.mxu0 0
      %755 = vmatpush.bf16.msra.mxu0 0
      %756 = vmatpush.bf16.msra.mxu0 %v747
      %757 = vmatmul.bf16.gmra.mxu0 %v735
      %v758 = vpop.f32.mrf.mxu0
      %v759 = vadd.f32 0.0, %v758
      %v760 = vpop.f32.mrf.mxu0
      %v761 = vadd.f32 0.0, %v760
      %762 = vmatmul.bf16.gmra.mxu0 %v738
      %v763 = vpop.f32.mrf.mxu0
      %v764 = vadd.f32 0.0, %v763
      %v765 = vpop.f32.mrf.mxu0
      %v766 = vadd.f32 0.0, %v765
      %767 = vmatmul.bf16.gmra.mxu0 %v741
      %v768 = vpop.f32.mrf.mxu0
      %v769 = vadd.f32 0.0, %v768
      %v770 = vpop.f32.mrf.mxu0
      %v771 = vadd.f32 0.0, %v770
      %772 = vmatmul.bf16.gmra.mxu0 %v744
      %v773 = vpop.f32.mrf.mxu0
      %v774 = vadd.f32 0.0, %v773
      %v775 = vpop.f32.mrf.mxu0
      %v776 = vadd.f32 0.0, %v775
      %777 = vdwg.mxu0
      %v778 = vadd.f32 %v695, %v759
      %v779 = vadd.f32 %v696, %v761
      %v780 = vadd.f32 %v697, %v764
      %v781 = vadd.f32 %v698, %v766
      %v782 = vadd.f32 %v699, %v769
      %v783 = vadd.f32 %v700, %v771
      %v784 = vadd.f32 %v701, %v774
      %v785 = vadd.f32 %v702, %v776
      %v786 = vld [vmem:[%s703] sm:$0xf]
      %v787 = vld [vmem:[%s703 + $0x4] sm:$0x1]
      %v788 = vld [vmem:[%s703 + $0x8] sm:$0xf]
      %v789 = vld [vmem:[%s703 + $0xc] sm:$0x1]
      %v790 = vld [vmem:[%s703 + $0x10] sm:$0xf]
      %v791 = vld [vmem:[%s703 + $0x14] sm:$0x1]
      %v792 = vld [vmem:[%s703 + $0x18] sm:$0xf]
      %v793 = vld [vmem:[%s703 + $0x1c] sm:$0x1]
      %v794 = vld [vmem:[%s703 + $0x20] sm:$0xf]
      %v795 = vld [vmem:[%s703 + $0x24] sm:$0x1]
      %v796 = vld [vmem:[%s703 + $0x28] sm:$0xf]
      %v797 = vld [vmem:[%s703 + $0x2c] sm:$0x1]
      %v798 = vld [vmem:[%s703 + $0x30] sm:$0xf]
      %v799 = vld [vmem:[%s703 + $0x34] sm:$0x1]
      %v800 = vld [vmem:[%s703 + $0x38] sm:$0xf]
      %v801 = vld [vmem:[%s703 + $0x3c] sm:$0x1]
      %v803 = vshrl.u32 %v786, 16
      %v805 = vrot.slane %v803, 4
      %v806 = vshll.u32 %v786, 16
      %v808 = vrot.slane %v806, 5
      %v809 = vor.u32 %v805, %v808
      %v810 = vrot.slane %v809, 4
      %v812 = vshll.u32 %v787, 16
      %v814 = vrot.slane %v812, 5
      %v815 = vsel %vm341, %v810, %v814
      %v817 = vshrl.u32 %v788, 16
      %v819 = vrot.slane %v817, 4
      %v820 = vshll.u32 %v788, 16
      %v822 = vrot.slane %v820, 5
      %v823 = vor.u32 %v819, %v822
      %v824 = vrot.slane %v823, 4
      %v826 = vshll.u32 %v789, 16
      %v828 = vrot.slane %v826, 5
      %v829 = vsel %vm341, %v824, %v828
      %v831 = vshrl.u32 %v790, 16
      %v833 = vrot.slane %v831, 4
      %v834 = vshll.u32 %v790, 16
      %v836 = vrot.slane %v834, 5
      %v837 = vor.u32 %v833, %v836
      %v838 = vrot.slane %v837, 4
      %v840 = vshll.u32 %v791, 16
      %v842 = vrot.slane %v840, 5
      %v843 = vsel %vm341, %v838, %v842
      %v845 = vshrl.u32 %v792, 16
      %v847 = vrot.slane %v845, 4
      %v848 = vshll.u32 %v792, 16
      %v850 = vrot.slane %v848, 5
      %v851 = vor.u32 %v847, %v850
      %v852 = vrot.slane %v851, 4
      %v854 = vshll.u32 %v793, 16
      %v856 = vrot.slane %v854, 5
      %v857 = vsel %vm341, %v852, %v856
      %v859 = vshrl.u32 %v794, 16
      %v861 = vrot.slane %v859, 4
      %v862 = vshll.u32 %v794, 16
      %v864 = vrot.slane %v862, 5
      %v865 = vor.u32 %v861, %v864
      %v866 = vrot.slane %v865, 4
      %v868 = vshll.u32 %v795, 16
      %v870 = vrot.slane %v868, 5
      %v871 = vsel %vm341, %v866, %v870
      %v873 = vshrl.u32 %v796, 16
      %v875 = vrot.slane %v873, 4
      %v876 = vshll.u32 %v796, 16
      %v878 = vrot.slane %v876, 5
      %v879 = vor.u32 %v875, %v878
      %v880 = vrot.slane %v879, 4
      %v882 = vshll.u32 %v797, 16
      %v884 = vrot.slane %v882, 5
      %v885 = vsel %vm341, %v880, %v884
      %v887 = vshrl.u32 %v798, 16
      %v889 = vrot.slane %v887, 4
      %v890 = vshll.u32 %v798, 16
      %v892 = vrot.slane %v890, 5
      %v893 = vor.u32 %v889, %v892
      %v894 = vrot.slane %v893, 4
      %v896 = vshll.u32 %v799, 16
      %v898 = vrot.slane %v896, 5
      %v899 = vsel %vm341, %v894, %v898
      %v901 = vshrl.u32 %v800, 16
      %v903 = vrot.slane %v901, 4
      %v904 = vshll.u32 %v800, 16
      %v906 = vrot.slane %v904, 5
      %v907 = vor.u32 %v903, %v906
      %v908 = vrot.slane %v907, 4
      %v910 = vshll.u32 %v801, 16
      %v912 = vrot.slane %v910, 5
      %v913 = vsel %vm341, %v908, %v912
      %s914 = scalar_lea.vmem %s298, 16
      %v915 = vld [vmem:[%s914] sm:$0xf]
      %v916 = vunpack.c.l.b16 %v815
      %v917 = vunpack.c.l.b16 %v829
      %v918 = vunpack.c.l.b16 %v843
      %v919 = vunpack.c.l.b16 %v857
      %v920 = vunpack.c.l.b16 %v871
      %v921 = vunpack.c.l.b16 %v885
      %v922 = vunpack.c.l.b16 %v899
      %v923 = vunpack.c.l.b16 %v913
      %v924 = vpack.c.b16 %v917, %v916
      %v925 = vpack.c.b16 %v919, %v918
      %v926 = vpack.c.b16 %v921, %v920
      %v927 = vpack.c.b16 %v923, %v922
      %v929 = vsel %vm468, %v924, 0
      %v932 = vsel %vm468, %v925, 0
      %v935 = vsel %vm468, %v926, 0
      %v938 = vsel %vm468, %v927, 0
      %v941 = vsel %vm481, %v915, 0
      %943 = vmatpush.bf16.msra.mxu0 0
      %944 = vmatpush.bf16.msra.mxu0 0
      %945 = vmatpush.bf16.msra.mxu0 0
      %946 = vmatpush.bf16.msra.mxu0 0
      %947 = vmatpush.bf16.msra.mxu0 0
      %948 = vmatpush.bf16.msra.mxu0 0
      %949 = vmatpush.bf16.msra.mxu0 0
      %950 = vmatpush.bf16.msra.mxu0 %v941
      %951 = vmatmul.bf16.gmra.mxu0 %v929
      %v952 = vpop.f32.mrf.mxu0
      %v953 = vadd.f32 0.0, %v952
      %v954 = vpop.f32.mrf.mxu0
      %v955 = vadd.f32 0.0, %v954
      %956 = vmatmul.bf16.gmra.mxu0 %v932
      %v957 = vpop.f32.mrf.mxu0
      %v958 = vadd.f32 0.0, %v957
      %v959 = vpop.f32.mrf.mxu0
      %v960 = vadd.f32 0.0, %v959
      %961 = vmatmul.bf16.gmra.mxu0 %v935
      %v962 = vpop.f32.mrf.mxu0
      %v963 = vadd.f32 0.0, %v962
      %v964 = vpop.f32.mrf.mxu0
      %v965 = vadd.f32 0.0, %v964
      %966 = vmatmul.bf16.gmra.mxu0 %v938
      %v967 = vpop.f32.mrf.mxu0
      %v968 = vadd.f32 0.0, %v967
      %v969 = vpop.f32.mrf.mxu0
      %v970 = vadd.f32 0.0, %v969
      %971 = vdwg.mxu0
      %v972 = vadd.f32 %v778, %v953
      %v973 = vadd.f32 %v779, %v955
      %v974 = vadd.f32 %v780, %v958
      %v975 = vadd.f32 %v781, %v960
      %v976 = vadd.f32 %v782, %v963
      %v977 = vadd.f32 %v783, %v965
      %v978 = vadd.f32 %v784, %v968
      %v979 = vadd.f32 %v785, %v970
      %v980 = vld [vmem:[%s703] sm:$0xe]
      %v981 = vld [vmem:[%s703 + $0x8] sm:$0xe]
      %v982 = vld [vmem:[%s703 + $0x10] sm:$0xe]
      %v983 = vld [vmem:[%s703 + $0x18] sm:$0xe]
      %v984 = vld [vmem:[%s703 + $0x20] sm:$0xe]
      %v985 = vld [vmem:[%s703 + $0x28] sm:$0xe]
      %v986 = vld [vmem:[%s703 + $0x30] sm:$0xe]
      %v987 = vld [vmem:[%s703 + $0x38] sm:$0xe]
      %v1004 = vrot.slane %v980, 5
      %v1005 = vrot.slane %v1004, 4
      %v1006 = vrot.slane %v787, 5
      %v1007 = vsel %vm604, %v1005, %v1006
      %v1008 = vrot.slane %v981, 5
      %v1009 = vrot.slane %v1008, 4
      %v1010 = vrot.slane %v789, 5
      %v1011 = vsel %vm604, %v1009, %v1010
      %v1012 = vrot.slane %v982, 5
      %v1013 = vrot.slane %v1012, 4
      %v1014 = vrot.slane %v791, 5
      %v1015 = vsel %vm604, %v1013, %v1014
      %v1016 = vrot.slane %v983, 5
      %v1017 = vrot.slane %v1016, 4
      %v1018 = vrot.slane %v793, 5
      %v1019 = vsel %vm604, %v1017, %v1018
      %v1020 = vrot.slane %v984, 5
      %v1021 = vrot.slane %v1020, 4
      %v1022 = vrot.slane %v795, 5
      %v1023 = vsel %vm604, %v1021, %v1022
      %v1024 = vrot.slane %v985, 5
      %v1025 = vrot.slane %v1024, 4
      %v1026 = vrot.slane %v797, 5
      %v1027 = vsel %vm604, %v1025, %v1026
      %v1028 = vrot.slane %v986, 5
      %v1029 = vrot.slane %v1028, 4
      %v1030 = vrot.slane %v799, 5
      %v1031 = vsel %vm604, %v1029, %v1030
      %v1032 = vrot.slane %v987, 5
      %v1033 = vrot.slane %v1032, 4
      %v1034 = vrot.slane %v801, 5
      %v1035 = vsel %vm604, %v1033, %v1034
      %s1036 = scalar_lea.vmem %s298, 20
      %v1037 = vld [vmem:[%s1036] sm:$0xf]
      %v1038 = vunpack.c.l.b16 %v1007
      %v1039 = vunpack.c.l.b16 %v1011
      %v1040 = vunpack.c.l.b16 %v1015
      %v1041 = vunpack.c.l.b16 %v1019
      %v1042 = vunpack.c.l.b16 %v1023
      %v1043 = vunpack.c.l.b16 %v1027
      %v1044 = vunpack.c.l.b16 %v1031
      %v1045 = vunpack.c.l.b16 %v1035
      %v1046 = vpack.c.b16 %v1039, %v1038
      %v1047 = vpack.c.b16 %v1041, %v1040
      %v1048 = vpack.c.b16 %v1043, %v1042
      %v1049 = vpack.c.b16 %v1045, %v1044
      %v1051 = vsel %vm468, %v1046, 0
      %v1054 = vsel %vm468, %v1047, 0
      %v1057 = vsel %vm468, %v1048, 0
      %v1060 = vsel %vm468, %v1049, 0
      %v1063 = vsel %vm481, %v1037, 0
      %1065 = vmatpush.bf16.msra.mxu0 0
      %1066 = vmatpush.bf16.msra.mxu0 0
      %1067 = vmatpush.bf16.msra.mxu0 0
      %1068 = vmatpush.bf16.msra.mxu0 0
      %1069 = vmatpush.bf16.msra.mxu0 0
      %1070 = vmatpush.bf16.msra.mxu0 0
      %1071 = vmatpush.bf16.msra.mxu0 0
      %1072 = vmatpush.bf16.msra.mxu0 %v1063
      %1073 = vmatmul.bf16.gmra.mxu0 %v1051
      %v1074 = vpop.f32.mrf.mxu0
      %v1075 = vadd.f32 0.0, %v1074
      %v1076 = vpop.f32.mrf.mxu0
      %v1077 = vadd.f32 0.0, %v1076
      %1078 = vmatmul.bf16.gmra.mxu0 %v1054
      %v1079 = vpop.f32.mrf.mxu0
      %v1080 = vadd.f32 0.0, %v1079
      %v1081 = vpop.f32.mrf.mxu0
      %v1082 = vadd.f32 0.0, %v1081
      %1083 = vmatmul.bf16.gmra.mxu0 %v1057
      %v1084 = vpop.f32.mrf.mxu0
      %v1085 = vadd.f32 0.0, %v1084
      %v1086 = vpop.f32.mrf.mxu0
      %v1087 = vadd.f32 0.0, %v1086
      %1088 = vmatmul.bf16.gmra.mxu0 %v1060
      %v1089 = vpop.f32.mrf.mxu0
      %v1090 = vadd.f32 0.0, %v1089
      %v1091 = vpop.f32.mrf.mxu0
      %v1092 = vadd.f32 0.0, %v1091
      %1093 = vdwg.mxu0
      %v1094 = vadd.f32 %v972, %v1075
      %v1095 = vadd.f32 %v973, %v1077
      %v1096 = vadd.f32 %v974, %v1080
      %v1097 = vadd.f32 %v975, %v1082
      %v1098 = vadd.f32 %v976, %v1085
      %v1099 = vadd.f32 %v977, %v1087
      %v1100 = vadd.f32 %v978, %v1090
      %v1101 = vadd.f32 %v979, %v1092
      %s1102 = scalar_lea.vmem %s294, 16
      %v1103 = vld [vmem:[%s1102] sm:$0xf]
      %v1104 = vld [vmem:[%s1102 + $0x8] sm:$0xf]
      %v1105 = vld [vmem:[%s1102 + $0x10] sm:$0xf]
      %v1106 = vld [vmem:[%s1102 + $0x18] sm:$0xf]
      %v1107 = vld [vmem:[%s1102 + $0x20] sm:$0xf]
      %v1108 = vld [vmem:[%s1102 + $0x28] sm:$0xf]
      %v1109 = vld [vmem:[%s1102 + $0x30] sm:$0xf]
      %v1110 = vld [vmem:[%s1102 + $0x38] sm:$0xf]
      %s1111 = scalar_lea.vmem %s298, 24
      %v1112 = vld [vmem:[%s1111] sm:$0xf]
      %v1121 = vunpack.c.l.b16 %v1103
      %v1122 = vunpack.c.l.b16 %v1104
      %v1123 = vunpack.c.l.b16 %v1105
      %v1124 = vunpack.c.l.b16 %v1106
      %v1125 = vunpack.c.l.b16 %v1107
      %v1126 = vunpack.c.l.b16 %v1108
      %v1127 = vunpack.c.l.b16 %v1109
      %v1128 = vunpack.c.l.b16 %v1110
      %v1129 = vpack.c.b16 %v1122, %v1121
      %v1130 = vpack.c.b16 %v1124, %v1123
      %v1131 = vpack.c.b16 %v1126, %v1125
      %v1132 = vpack.c.b16 %v1128, %v1127
      %v1134 = vsel %vm468, %v1129, 0
      %v1137 = vsel %vm468, %v1130, 0
      %v1140 = vsel %vm468, %v1131, 0
      %v1143 = vsel %vm468, %v1132, 0
      %v1146 = vsel %vm481, %v1112, 0
      %1148 = vmatpush.bf16.msra.mxu0 0
      %1149 = vmatpush.bf16.msra.mxu0 0
      %1150 = vmatpush.bf16.msra.mxu0 0
      %1151 = vmatpush.bf16.msra.mxu0 0
      %1152 = vmatpush.bf16.msra.mxu0 0
      %1153 = vmatpush.bf16.msra.mxu0 0
      %1154 = vmatpush.bf16.msra.mxu0 0
      %1155 = vmatpush.bf16.msra.mxu0 %v1146
      %1156 = vmatmul.bf16.gmra.mxu0 %v1134
      %v1157 = vpop.f32.mrf.mxu0
      %v1158 = vadd.f32 0.0, %v1157
      %v1159 = vpop.f32.mrf.mxu0
      %v1160 = vadd.f32 0.0, %v1159
      %1161 = vmatmul.bf16.gmra.mxu0 %v1137
      %v1162 = vpop.f32.mrf.mxu0
      %v1163 = vadd.f32 0.0, %v1162
      %v1164 = vpop.f32.mrf.mxu0
      %v1165 = vadd.f32 0.0, %v1164
      %1166 = vmatmul.bf16.gmra.mxu0 %v1140
      %v1167 = vpop.f32.mrf.mxu0
      %v1168 = vadd.f32 0.0, %v1167
      %v1169 = vpop.f32.mrf.mxu0
      %v1170 = vadd.f32 0.0, %v1169
      %1171 = vmatmul.bf16.gmra.mxu0 %v1143
      %v1172 = vpop.f32.mrf.mxu0
      %v1173 = vadd.f32 0.0, %v1172
      %v1174 = vpop.f32.mrf.mxu0
      %v1175 = vadd.f32 0.0, %v1174
      %1176 = vdwg.mxu0
      %v1177 = vadd.f32 %v1094, %v1158
      %v1178 = vadd.f32 %v1095, %v1160
      %v1179 = vadd.f32 %v1096, %v1163
      %v1180 = vadd.f32 %v1097, %v1165
      %v1181 = vadd.f32 %v1098, %v1168
      %v1182 = vadd.f32 %v1099, %v1170
      %v1183 = vadd.f32 %v1100, %v1173
      %v1184 = vadd.f32 %v1101, %v1175
      %v1185 = vld [vmem:[%s1102] sm:$0xf]
      %v1186 = vld [vmem:[%s1102 + $0x4] sm:$0x1]
      %v1187 = vld [vmem:[%s1102 + $0x8] sm:$0xf]
      %v1188 = vld [vmem:[%s1102 + $0xc] sm:$0x1]
      %v1189 = vld [vmem:[%s1102 + $0x10] sm:$0xf]
      %v1190 = vld [vmem:[%s1102 + $0x14] sm:$0x1]
      %v1191 = vld [vmem:[%s1102 + $0x18] sm:$0xf]
      %v1192 = vld [vmem:[%s1102 + $0x1c] sm:$0x1]
      %v1193 = vld [vmem:[%s1102 + $0x20] sm:$0xf]
      %v1194 = vld [vmem:[%s1102 + $0x24] sm:$0x1]
      %v1195 = vld [vmem:[%s1102 + $0x28] sm:$0xf]
      %v1196 = vld [vmem:[%s1102 + $0x2c] sm:$0x1]
      %v1197 = vld [vmem:[%s1102 + $0x30] sm:$0xf]
      %v1198 = vld [vmem:[%s1102 + $0x34] sm:$0x1]
      %v1199 = vld [vmem:[%s1102 + $0x38] sm:$0xf]
      %v1200 = vld [vmem:[%s1102 + $0x3c] sm:$0x1]
      %v1202 = vshrl.u32 %v1185, 16
      %v1204 = vrot.slane %v1202, 4
      %v1205 = vshll.u32 %v1185, 16
      %v1207 = vrot.slane %v1205, 5
      %v1208 = vor.u32 %v1204, %v1207
      %v1209 = vrot.slane %v1208, 4
      %v1211 = vshll.u32 %v1186, 16
      %v1213 = vrot.slane %v1211, 5
      %v1214 = vsel %vm341, %v1209, %v1213
      %v1216 = vshrl.u32 %v1187, 16
      %v1218 = vrot.slane %v1216, 4
      %v1219 = vshll.u32 %v1187, 16
      %v1221 = vrot.slane %v1219, 5
      %v1222 = vor.u32 %v1218, %v1221
      %v1223 = vrot.slane %v1222, 4
      %v1225 = vshll.u32 %v1188, 16
      %v1227 = vrot.slane %v1225, 5
      %v1228 = vsel %vm341, %v1223, %v1227
      %v1230 = vshrl.u32 %v1189, 16
      %v1232 = vrot.slane %v1230, 4
      %v1233 = vshll.u32 %v1189, 16
      %v1235 = vrot.slane %v1233, 5
      %v1236 = vor.u32 %v1232, %v1235
      %v1237 = vrot.slane %v1236, 4
      %v1239 = vshll.u32 %v1190, 16
      %v1241 = vrot.slane %v1239, 5
      %v1242 = vsel %vm341, %v1237, %v1241
      %v1244 = vshrl.u32 %v1191, 16
      %v1246 = vrot.slane %v1244, 4
      %v1247 = vshll.u32 %v1191, 16
      %v1249 = vrot.slane %v1247, 5
      %v1250 = vor.u32 %v1246, %v1249
      %v1251 = vrot.slane %v1250, 4
      %v1253 = vshll.u32 %v1192, 16
      %v1255 = vrot.slane %v1253, 5
      %v1256 = vsel %vm341, %v1251, %v1255
      %v1258 = vshrl.u32 %v1193, 16
      %v1260 = vrot.slane %v1258, 4
      %v1261 = vshll.u32 %v1193, 16
      %v1263 = vrot.slane %v1261, 5
      %v1264 = vor.u32 %v1260, %v1263
      %v1265 = vrot.slane %v1264, 4
      %v1267 = vshll.u32 %v1194, 16
      %v1269 = vrot.slane %v1267, 5
      %v1270 = vsel %vm341, %v1265, %v1269
      %v1272 = vshrl.u32 %v1195, 16
      %v1274 = vrot.slane %v1272, 4
      %v1275 = vshll.u32 %v1195, 16
      %v1277 = vrot.slane %v1275, 5
      %v1278 = vor.u32 %v1274, %v1277
      %v1279 = vrot.slane %v1278, 4
      %v1281 = vshll.u32 %v1196, 16
      %v1283 = vrot.slane %v1281, 5
      %v1284 = vsel %vm341, %v1279, %v1283
      %v1286 = vshrl.u32 %v1197, 16
      %v1288 = vrot.slane %v1286, 4
      %v1289 = vshll.u32 %v1197, 16
      %v1291 = vrot.slane %v1289, 5
      %v1292 = vor.u32 %v1288, %v1291
      %v1293 = vrot.slane %v1292, 4
      %v1295 = vshll.u32 %v1198, 16
      %v1297 = vrot.slane %v1295, 5
      %v1298 = vsel %vm341, %v1293, %v1297
      %v1300 = vshrl.u32 %v1199, 16
      %v1302 = vrot.slane %v1300, 4
      %v1303 = vshll.u32 %v1199, 16
      %v1305 = vrot.slane %v1303, 5
      %v1306 = vor.u32 %v1302, %v1305
      %v1307 = vrot.slane %v1306, 4
      %v1309 = vshll.u32 %v1200, 16
      %v1311 = vrot.slane %v1309, 5
      %v1312 = vsel %vm341, %v1307, %v1311
      %s1313 = scalar_lea.vmem %s298, 28
      %v1314 = vld [vmem:[%s1313] sm:$0xf]
      %v1315 = vunpack.c.l.b16 %v1214
      %v1316 = vunpack.c.l.b16 %v1228
      %v1317 = vunpack.c.l.b16 %v1242
      %v1318 = vunpack.c.l.b16 %v1256
      %v1319 = vunpack.c.l.b16 %v1270
      %v1320 = vunpack.c.l.b16 %v1284
      %v1321 = vunpack.c.l.b16 %v1298
      %v1322 = vunpack.c.l.b16 %v1312
      %v1323 = vpack.c.b16 %v1316, %v1315
      %v1324 = vpack.c.b16 %v1318, %v1317
      %v1325 = vpack.c.b16 %v1320, %v1319
      %v1326 = vpack.c.b16 %v1322, %v1321
      %v1328 = vsel %vm468, %v1323, 0
      %v1331 = vsel %vm468, %v1324, 0
      %v1334 = vsel %vm468, %v1325, 0
      %v1337 = vsel %vm468, %v1326, 0
      %v1340 = vsel %vm481, %v1314, 0
      %1342 = vmatpush.bf16.msra.mxu0 0
      %1343 = vmatpush.bf16.msra.mxu0 0
      %1344 = vmatpush.bf16.msra.mxu0 0
      %1345 = vmatpush.bf16.msra.mxu0 0
      %1346 = vmatpush.bf16.msra.mxu0 0
      %1347 = vmatpush.bf16.msra.mxu0 0
      %1348 = vmatpush.bf16.msra.mxu0 0
      %1349 = vmatpush.bf16.msra.mxu0 %v1340
      %1350 = vmatmul.bf16.gmra.mxu0 %v1328
      %v1351 = vpop.f32.mrf.mxu0
      %v1352 = vadd.f32 0.0, %v1351
      %v1353 = vpop.f32.mrf.mxu0
      %v1354 = vadd.f32 0.0, %v1353
      %1355 = vmatmul.bf16.gmra.mxu0 %v1331
      %v1356 = vpop.f32.mrf.mxu0
      %v1357 = vadd.f32 0.0, %v1356
      %v1358 = vpop.f32.mrf.mxu0
      %v1359 = vadd.f32 0.0, %v1358
      %1360 = vmatmul.bf16.gmra.mxu0 %v1334
      %v1361 = vpop.f32.mrf.mxu0
      %v1362 = vadd.f32 0.0, %v1361
      %v1363 = vpop.f32.mrf.mxu0
      %v1364 = vadd.f32 0.0, %v1363
      %1365 = vmatmul.bf16.gmra.mxu0 %v1337
      %v1366 = vpop.f32.mrf.mxu0
      %v1367 = vadd.f32 0.0, %v1366
      %v1368 = vpop.f32.mrf.mxu0
      %v1369 = vadd.f32 0.0, %v1368
      %1370 = vdwg.mxu0
      %v1371 = vadd.f32 %v1177, %v1352
      %v1372 = vadd.f32 %v1178, %v1354
      %v1373 = vadd.f32 %v1179, %v1357
      %v1374 = vadd.f32 %v1180, %v1359
      %v1375 = vadd.f32 %v1181, %v1362
      %v1376 = vadd.f32 %v1182, %v1364
      %v1377 = vadd.f32 %v1183, %v1367
      %v1378 = vadd.f32 %v1184, %v1369
      %v1379 = vld [vmem:[%s1102] sm:$0xe]
      %v1380 = vld [vmem:[%s1102 + $0x8] sm:$0xe]
      %v1381 = vld [vmem:[%s1102 + $0x10] sm:$0xe]
      %v1382 = vld [vmem:[%s1102 + $0x18] sm:$0xe]
      %v1383 = vld [vmem:[%s1102 + $0x20] sm:$0xe]
      %v1384 = vld [vmem:[%s1102 + $0x28] sm:$0xe]
      %v1385 = vld [vmem:[%s1102 + $0x30] sm:$0xe]
      %v1386 = vld [vmem:[%s1102 + $0x38] sm:$0xe]
      %v1403 = vrot.slane %v1379, 5
      %v1404 = vrot.slane %v1403, 4
      %v1405 = vrot.slane %v1186, 5
      %v1406 = vsel %vm604, %v1404, %v1405
      %v1407 = vrot.slane %v1380, 5
      %v1408 = vrot.slane %v1407, 4
      %v1409 = vrot.slane %v1188, 5
      %v1410 = vsel %vm604, %v1408, %v1409
      %v1411 = vrot.slane %v1381, 5
      %v1412 = vrot.slane %v1411, 4
      %v1413 = vrot.slane %v1190, 5
      %v1414 = vsel %vm604, %v1412, %v1413
      %v1415 = vrot.slane %v1382, 5
      %v1416 = vrot.slane %v1415, 4
      %v1417 = vrot.slane %v1192, 5
      %v1418 = vsel %vm604, %v1416, %v1417
      %v1419 = vrot.slane %v1383, 5
      %v1420 = vrot.slane %v1419, 4
      %v1421 = vrot.slane %v1194, 5
      %v1422 = vsel %vm604, %v1420, %v1421
      %v1423 = vrot.slane %v1384, 5
      %v1424 = vrot.slane %v1423, 4
      %v1425 = vrot.slane %v1196, 5
      %v1426 = vsel %vm604, %v1424, %v1425
      %v1427 = vrot.slane %v1385, 5
      %v1428 = vrot.slane %v1427, 4
      %v1429 = vrot.slane %v1198, 5
      %v1430 = vsel %vm604, %v1428, %v1429
      %v1431 = vrot.slane %v1386, 5
      %v1432 = vrot.slane %v1431, 4
      %v1433 = vrot.slane %v1200, 5
      %v1434 = vsel %vm604, %v1432, %v1433
      %s1435 = scalar_lea.vmem %s298, 32
      %v1436 = vld [vmem:[%s1435] sm:$0xf]
      %v1437 = vunpack.c.l.b16 %v1406
      %v1438 = vunpack.c.l.b16 %v1410
      %v1439 = vunpack.c.l.b16 %v1414
      %v1440 = vunpack.c.l.b16 %v1418
      %v1441 = vunpack.c.l.b16 %v1422
      %v1442 = vunpack.c.l.b16 %v1426
      %v1443 = vunpack.c.l.b16 %v1430
      %v1444 = vunpack.c.l.b16 %v1434
      %v1445 = vpack.c.b16 %v1438, %v1437
      %v1446 = vpack.c.b16 %v1440, %v1439
      %v1447 = vpack.c.b16 %v1442, %v1441
      %v1448 = vpack.c.b16 %v1444, %v1443
      %v1450 = vsel %vm468, %v1445, 0
      %v1453 = vsel %vm468, %v1446, 0
      %v1456 = vsel %vm468, %v1447, 0
      %v1459 = vsel %vm468, %v1448, 0
      %v1462 = vsel %vm481, %v1436, 0
      %1464 = vmatpush.bf16.msra.mxu0 0
      %1465 = vmatpush.bf16.msra.mxu0 0
      %1466 = vmatpush.bf16.msra.mxu0 0
      %1467 = vmatpush.bf16.msra.mxu0 0
      %1468 = vmatpush.bf16.msra.mxu0 0
      %1469 = vmatpush.bf16.msra.mxu0 0
      %1470 = vmatpush.bf16.msra.mxu0 0
      %1471 = vmatpush.bf16.msra.mxu0 %v1462
      %1472 = vmatmul.bf16.gmra.mxu0 %v1450
      %v1473 = vpop.f32.mrf.mxu0
      %v1474 = vadd.f32 0.0, %v1473
      %v1475 = vpop.f32.mrf.mxu0
      %v1476 = vadd.f32 0.0, %v1475
      %1477 = vmatmul.bf16.gmra.mxu0 %v1453
      %v1478 = vpop.f32.mrf.mxu0
      %v1479 = vadd.f32 0.0, %v1478
      %v1480 = vpop.f32.mrf.mxu0
      %v1481 = vadd.f32 0.0, %v1480
      %1482 = vmatmul.bf16.gmra.mxu0 %v1456
      %v1483 = vpop.f32.mrf.mxu0
      %v1484 = vadd.f32 0.0, %v1483
      %v1485 = vpop.f32.mrf.mxu0
      %v1486 = vadd.f32 0.0, %v1485
      %1487 = vmatmul.bf16.gmra.mxu0 %v1459
      %v1488 = vpop.f32.mrf.mxu0
      %v1489 = vadd.f32 0.0, %v1488
      %v1490 = vpop.f32.mrf.mxu0
      %v1491 = vadd.f32 0.0, %v1490
      %1492 = vdwg.mxu0
      %v1493 = vadd.f32 %v1371, %v1474
      %v1494 = vadd.f32 %v1372, %v1476
      %v1495 = vadd.f32 %v1373, %v1479
      %v1496 = vadd.f32 %v1374, %v1481
      %v1497 = vadd.f32 %v1375, %v1484
      %v1498 = vadd.f32 %v1376, %v1486
      %v1499 = vadd.f32 %v1377, %v1489
      %v1500 = vadd.f32 %v1378, %v1491
      %v1501 = vld [vmem:[%s301] sm:$0x1]
      %v1503 = vperm.slane %v1501, 0
      %v1505 = vmul.f32 %v1493, %v1503
      %v1506 = vmul.f32 %v1494, %v1503
      %v1507 = vmul.f32 %v1495, %v1503
      %v1508 = vmul.f32 %v1496, %v1503
      %v1509 = vmul.f32 %v1497, %v1503
      %v1510 = vmul.f32 %v1498, %v1503
      %v1511 = vmul.f32 %v1499, %v1503
      %v1512 = vmul.f32 %v1500, %v1503
      %v1513 = vld [vmem:[%s304] sm:$0x1]
      %v1515 = vperm.slane %v1513, 0
      %v1517 = vadd.f32 %v1505, %v1515
      %v1518 = vadd.f32 %v1506, %v1515
      %v1519 = vadd.f32 %v1507, %v1515
      %v1520 = vadd.f32 %v1508, %v1515
      %v1521 = vadd.f32 %v1509, %v1515
      %v1522 = vadd.f32 %v1510, %v1515
      %v1523 = vadd.f32 %v1511, %v1515
      %v1524 = vadd.f32 %v1512, %v1515
      %v1525 = vld [vmem:[%s312] sm:$0xff]
      %v1526 = vld [vmem:[%s312 + $0x8] sm:$0xff]
      %v1527 = vld [vmem:[%s312 + $0x10] sm:$0xff]
      %v1528 = vld [vmem:[%s312 + $0x18] sm:$0xff]
      %v1529 = vld [vmem:[%s312 + $0x20] sm:$0xff]
      %v1530 = vld [vmem:[%s312 + $0x28] sm:$0xff]
      %v1531 = vld [vmem:[%s312 + $0x30] sm:$0xff]
      %v1532 = vld [vmem:[%s312 + $0x38] sm:$0xff]
      %v1533 = vadd.f32 %v1517, %v1525
      %v1534 = vadd.f32 %v1518, %v1526
      %v1535 = vadd.f32 %v1519, %v1527
      %v1536 = vadd.f32 %v1520, %v1528
      %v1537 = vadd.f32 %v1521, %v1529
      %v1538 = vadd.f32 %v1522, %v1530
      %v1539 = vadd.f32 %v1523, %v1531
      %v1540 = vadd.f32 %v1524, %v1532
      %v1541 = vmax.f32 %v1533, 0.0
      %v1542 = vmax.f32 %v1534, 0.0
      %v1543 = vmax.f32 %v1535, 0.0
      %v1544 = vmax.f32 %v1536, 0.0
      %v1545 = vmax.f32 %v1537, 0.0
      %v1546 = vmax.f32 %v1538, 0.0
      %v1547 = vmax.f32 %v1539, 0.0
      %v1548 = vmax.f32 %v1540, 0.0
      %1549 = vst [vmem:[%s320] sm:$0xff] %v1541
      %1550 = vst [vmem:[%s320 + $0x8] sm:$0xff] %v1542
      %1551 = vst [vmem:[%s320 + $0x10] sm:$0xff] %v1543
      %1552 = vst [vmem:[%s320 + $0x18] sm:$0xff] %v1544
      %1553 = vst [vmem:[%s320 + $0x20] sm:$0xff] %v1545
      %1554 = vst [vmem:[%s320 + $0x28] sm:$0xff] %v1546
      %1555 = vst [vmem:[%s320 + $0x30] sm:$0xff] %v1547
      %1556 = vst [vmem:[%s320 + $0x38] sm:$0xff] %v1548
      %p1557 = scmp.lt.s32.totalorder %s21, 1
      %s1558 = scalar_select %p1557, %s21, 1
      %p1559 = scmp.lt.s32.totalorder %s20, 0
      %s1560 = scalar_select %p1559, %s20, 0
      %s1561 = smul.addr %s1558, 8
      %s1562 = sadd.s32 %s1560, %s1561
      %s1563 = smul.addr %s1562, 8
      %s1564 = scalar_lea.vmem %s5, %s1563
      // Predicated region
      $region41: #{resblock_forward.5} parent=39 // pred_check
        %p1565 = pneg %p180
      $region42: #{resblock_forward.5} parent=39 // pred_check_branch
        %1567 = sbr.rel (%p1565) target = $region44
      $region43: #{resblock_forward.5} parent=39 // pred_region
        _
      $region44: #{resblock_forward.5} parent=39 // pred_fallthru
        _
    $region40: #{resblock_forward.5} parent=5 // pred_fallthru
      _
    %p1568 = scmp.le.s32.totalorder 2, %s11
    // Predicated region
    $region45: #{resblock_forward.5} parent=5 // pred_check
      %p1569 = pneg %p1568
    $region46: #{resblock_forward.5} parent=5 // pred_check_branch
      %1571 = sbr.rel (%p1569) target = $region48
    $region47: #{resblock_forward.5} parent=5 // pred_region
      %s1572 = ssub.s32 %s11, 2
      // Predicated region
      $region49: #{resblock_forward.5} parent=47 // pred_check
        %p1573 = pneg %p186
      $region50: #{resblock_forward.5} parent=47 // pred_check_branch
        %1575 = sbr.rel (%p1573) target = $region52
      $region51: #{resblock_forward.5} parent=47 // pred_region
        %p1576 = scmp.lt.s32.totalorder %s23, 1
        %s1577 = scalar_select %p1576, %s23, 1
        %p1578 = scmp.lt.s32.totalorder %s22, 0
        %s1579 = scalar_select %p1578, %s22, 0
        %s1580 = smul.addr %s1577, 8
        %s1581 = sadd.s32 %s1579, %s1580
        %s1582 = smul.addr %s1581, 8
        %s1583 = scalar_lea.vmem %s5, %s1582
      $region52: #{resblock_forward.5} parent=47 // pred_fallthru
        _
    $region48: #{resblock_forward.5} parent=5 // pred_fallthru
      _
  $region6: #{resblock_forward.5} parent=0 // loop_footer
    %s15 = sadd.s32 1, %s11
  $region7: #{resblock_forward.5} parent=0 // loop_footer_branch
    %10 = sbr.rel target = $region3
  $region8: #{resblock_forward.5} parent=0 // loop_exit
    _

</llo_original>
